<compile_context>
chip_gen: v7x
topology: tpu7x:2x2x1
jax: 0.10.0
libtpu: 0.0.40
codegen_flags: <defaults>
</compile_context>

<pallas_src>
import functools
import math

import jax
import jax.numpy as jnp
from jax.experimental import pallas as pl
from jax.experimental.pallas import tpu as pltpu


CFG = dict(conv_dims=(32, 32, 32), kernels=(10, 3, 3), strides=(5, 2, 2),
           hidden=32, heads=4, ffn=64, num_layers=2, proj=256, labels=6)

_LN_EPS = 1e-5


def _gelu(x):
    # tanh-approximate GELU (EUP-friendly). TODO(synk): HF uses exact erf GELU.
    return 0.5 * x * (1.0 + jnp.tanh(0.7978845608028654
                                     * (x + 0.044715 * x * x * x)))


def _layernorm(x, g, b, eps=_LN_EPS):
    mu = jnp.mean(x, axis=-1, keepdims=True)
    var = jnp.mean((x - mu) ** 2, axis=-1, keepdims=True)
    return (x - mu) * jax.lax.rsqrt(var + eps) * g + b


def _dot(a, b):
    """(M, K) @ (K, N), f32 accumulation on the MXU."""
    return jax.lax.dot_general(a, b, (((1,), (0,)), ((), ())),
                               preferred_element_type=jnp.float32)


def _dot_nt(a, b):
    """(M, K) x (N, K) -> (M, N): contraction on last dims, no explicit transpose."""
    return jax.lax.dot_general(a, b, (((1,), (1,)), ((), ())),
                               preferred_element_type=jnp.float32)


# --------------------------- single fused forward kernel ---------------------------

def _wav2vec_kernel(*refs, heads, num_layers, conv_tail):
    """Whole network for one sample: conv stack -> feature projection ->
    encoder layers -> final LN -> mean-pool -> projector -> classifier."""
    p_ref, o_ref, w = refs[0], refs[-1], refs[1:-1]
    it = iter(w)
    nxt = lambda: next(it)            # consume weights in the init_params order

    # ---- conv layer 1: pre-gathered patches -> matmul -> LayerNorm -> GELU ----
    cw, cb, cg, cbt = nxt(), nxt(), nxt(), nxt()
    y = _dot(p_ref[0].astype(jnp.bfloat16), cw[...]) + cb[...]       # (63, 32) f32
    y = _gelu(_layernorm(y, cg[...], cbt[...]))

    # ---- conv layers 2..n: in-kernel im2col + exact stride-S row selection ----
    for (kk, ss) in conv_tail:
        cw, cb, cg, cbt = nxt(), nxt(), nxt(), nxt()
        L_in = y.shape[0]
        L1 = L_in - kk + 1                     # stride-1 output length
        L_out = (L_in - kk) // ss + 1          # strided output length
        ps1 = jnp.concatenate([y[t:t + L1, :] for t in range(kk)], axis=-1)
        z = _dot(ps1.astype(jnp.bfloat16), cw[...]) + cb[...]        # (L1, C)
        # keep rows 0, ss, 2*ss, ... via an exact 0/1 selection matmul (MXU is idle)
        rows = jax.lax.broadcasted_iota(jnp.int32, (L_out, L1), 0)
        cols = jax.lax.broadcasted_iota(jnp.int32, (L_out, L1), 1)
        sel = (cols == ss * rows).astype(jnp.float32)
        z = jax.lax.dot_general(sel, z, (((1,), (0,)), ((), ())),
                                preferred_element_type=jnp.float32)  # (L_out, C)
        y = _gelu(_layernorm(z, cg[...], cbt[...]))

    # ---- feature projection: LayerNorm -> Linear(conv_dim, hidden) ----
    fg, fb, fw, fbias = nxt(), nxt(), nxt(), nxt()
    h = _dot(_layernorm(y, fg[...], fb[...]).astype(jnp.bfloat16),
             fw[...]) + fbias[...]                                   # (T, H) f32
    # TODO(synk): Wav2Vec2 positional conv embedding (weight-normed grouped conv) omitted.

    # ---- transformer encoder (pre-LN), static loop over stacked per-layer weights ----
    ln1_g, ln1_b, wqkv, bqkv = nxt(), nxt(), nxt(), nxt()
    wo, bo, ln2_g, ln2_b = nxt(), nxt(), nxt(), nxt()
    w1, b1, w2, b2 = nxt(), nxt(), nxt(), nxt()
    T, H = h.shape
    Dh = H // heads
    for l in range(num_layers):
        xin = h
        hn = _layernorm(xin, ln1_g[l], ln1_b[l])
        qkv = _dot(hn.astype(jnp.bfloat16), wqkv[l]) + bqkv[l]       # (T, 3H); Q pre-scaled
        wo_l = wo[l]                                                 # (H, H) bf16
        acc = xin + bo[l]                                            # residual + out-proj bias
        for hh in range(heads):                                      # static unroll, heads=4
            q = qkv[:, hh * Dh:(hh + 1) * Dh].astype(jnp.bfloat16)
            k = qkv[:, H + hh * Dh:H + (hh + 1) * Dh].astype(jnp.bfloat16)
            v = qkv[:, 2 * H + hh * Dh:2 * H + (hh + 1) * Dh].astype(jnp.bfloat16)
            s = _dot_nt(q, k)                                        # (T, T) f32 scores
            p = jnp.exp(s - jnp.max(s, axis=-1, keepdims=True))
            p = p * pl.reciprocal(jnp.sum(p, axis=-1, keepdims=True), approx=True)
            o_h = _dot(p.astype(jnp.bfloat16), v)                    # (T, Dh) f32
            # accumulate through the out-projection (no per-head concat)
            acc = acc + _dot(o_h.astype(jnp.bfloat16),
                             wo_l[hh * Dh:(hh + 1) * Dh, :])
        hn2 = _layernorm(acc, ln2_g[l], ln2_b[l])
        ff = _gelu(_dot(hn2.astype(jnp.bfloat16), w1[l]) + b1[l])
        ff = _dot(ff.astype(jnp.bfloat16), w2[l]) + b2[l]
        h = acc + ff                                                 # fused residual

    # ---- head: final LN -> mean-pool over time -> projector -> classifier ----
    lg, lb, pw, pb, cw2, cb2 = nxt(), nxt(), nxt(), nxt(), nxt(), nxt()
    pooled = jnp.mean(_layernorm(h, lg[...], lb[...]), axis=0, keepdims=True)  # (1, H)
    pr = _dot(pooled.astype(jnp.bfloat16), pw[...]) + pb[...]                  # (1, 256)
    o_ref[0] = (_dot(pr.astype(jnp.bfloat16), cw2[...]) + cb2[...]).astype(o_ref.dtype)


def _resident_spec(arr):
    """Whole-array block with a constant index map: stays VMEM-resident across grid."""
    nd = arr.ndim
    return pl.BlockSpec(arr.shape, lambda b, _n=nd: (0,) * _n)


# ------------------------------- model definition -------------------------------

def init_params(key):
    """All weight preparation (bf16 casts, bias reshapes, fused/scaled QKV,
    per-layer stacking) happens here, once, not in the forward path."""
    keys = iter(jax.random.split(key, 256))

    def nrm(shape, scale=0.05):
        return scale * jax.random.normal(next(keys), shape, dtype=jnp.float32)

    H, F = CFG["hidden"], CFG["ffn"]
    NL, heads = CFG["num_layers"], CFG["heads"]
    P, LBL = CFG["proj"], CFG["labels"]
    flat = []

    # conv feature extractor (conv bias + per-frame LayerNorm + GELU, XLSR-large style)
    cin = 1
    for cout, k in zip(CFG["conv_dims"], CFG["kernels"]):
        flat += [nrm((k * cin, cout)).astype(jnp.bfloat16),          # conv weight (K, Cout)
                 nrm((1, cout)),                                     # conv bias
                 jnp.ones((1, cout), jnp.float32),                   # LN gamma
                 jnp.zeros((1, cout), jnp.float32)]                  # LN beta
        cin = cout

    # feature projection: LayerNorm -> Linear(conv_dim, hidden)
    flat += [jnp.ones((1, cin), jnp.float32), jnp.zeros((1, cin), jnp.float32),
             nrm((cin, H)).astype(jnp.bfloat16), nrm((1, H))]

    # encoder layers stacked on a leading (num_layers, ...) axis;
    # QKV fused into one (H, 3H) weight with 1/sqrt(Dh) folded into Q weight+bias.
    scale = 1.0 / math.sqrt(H // heads)
    wqkv, bqkv, wo, bo, w1, b1, w2, b2 = [], [], [], [], [], [], [], []
    for _ in range(NL):
        wq, wk, wv = nrm((H, H)), nrm((H, H)), nrm((H, H))
        bq, bk, bv = nrm((H,)), nrm((H,)), nrm((H,))
        wqkv.append(jnp.concatenate([wq * scale, wk, wv], axis=1))
        bqkv.append(jnp.concatenate([bq * scale, bk, bv]).reshape(1, 3 * H))
        wo.append(nrm((H, H))); bo.append(nrm((1, H)))
        w1.append(nrm((H, F))); b1.append(nrm((1, F)))
        w2.append(nrm((F, H))); b2.append(nrm((1, H)))
    flat += [jnp.ones((NL, 1, H), jnp.float32), jnp.zeros((NL, 1, H), jnp.float32),
             jnp.stack(wqkv).astype(jnp.bfloat16), jnp.stack(bqkv),
             jnp.stack(wo).astype(jnp.bfloat16), jnp.stack(bo),
             jnp.ones((NL, 1, H), jnp.float32), jnp.zeros((NL, 1, H), jnp.float32),
             jnp.stack(w1).astype(jnp.bfloat16), jnp.stack(b1),
             jnp.stack(w2).astype(jnp.bfloat16), jnp.stack(b2)]

    # final encoder LN + projector Linear(hidden, 256) + classifier Linear(256, 6)
    flat += [jnp.ones((1, H), jnp.float32), jnp.zeros((1, H), jnp.float32),
             nrm((H, P)).astype(jnp.bfloat16), nrm((1, P)),
             nrm((P, LBL)).astype(jnp.bfloat16), nrm((1, LBL))]
    return {"flat": tuple(flat)}


def wav2vec_cls_forward(params, x):
    """x: (B, T_raw) raw waveform -> logits (B, num_labels). One pallas_call."""
    B, T_raw = x.shape
    k0, s0 = CFG["kernels"][0], CFG["strides"][0]
    L0 = (T_raw - k0) // s0 + 1
    span = (L0 - 1) * s0 + 1
    # layer-1 im2col from the raw audio (tiny; cheap strided XLA slices, tap-major).
    patches1 = jnp.stack([x[:, t:t + span:s0] for t in range(k0)], axis=-1)  # (B, L0, k0)

    weights = params["flat"]
    labels = CFG["labels"]
    kern = functools.partial(
        _wav2vec_kernel,
        heads=CFG["heads"], num_layers=CFG["num_layers"],
        conv_tail=tuple(zip(CFG["kernels"][1:], CFG["strides"][1:])))

    out = pl.pallas_call(
        kern,
        out_shape=jax.ShapeDtypeStruct((B, 1, labels), jnp.float32),
        grid=(B,),
        in_specs=[pl.BlockSpec((1, L0, k0), lambda b: (b, 0, 0))]
                 + [_resident_spec(a) for a in weights],
        out_specs=pl.BlockSpec((1, 1, labels), lambda b: (b, 0, 0)),
        compiler_params=pltpu.CompilerParams(dimension_semantics=("parallel",)),
    )(patches1, *weights)
    return out[:, 0, :]


if __name__ == "__main__":
    key = jax.random.PRNGKey(0)
    pkey, xkey = jax.random.split(key)
    params = init_params(pkey)
    x = jax.random.normal(xkey, (2, 320), dtype=jnp.float32)   # (B, T_raw) raw audio
    fwd = jax.jit(wav2vec_cls_forward)
    logits = fwd(params, x)
    jax.block_until_ready(logits)
    assert logits.shape == (2, CFG["labels"]) and logits.dtype == jnp.float32
    print("KERNEL_OK")
</pallas_src>

<mosaic_0001>
module attributes {stable_mosaic.version = 11 : i64} {
  func.func @_wav2vec_kernel(%arg0: i32, %arg1: memref<1x63x10xf32, #tpu.memory_space<vmem>>, %arg2: memref<10x32xbf16, #tpu.memory_space<vmem>>, %arg3: memref<1x32xf32, #tpu.memory_space<vmem>>, %arg4: memref<1x32xf32, #tpu.memory_space<vmem>>, %arg5: memref<1x32xf32, #tpu.memory_space<vmem>>, %arg6: memref<96x32xbf16, #tpu.memory_space<vmem>>, %arg7: memref<1x32xf32, #tpu.memory_space<vmem>>, %arg8: memref<1x32xf32, #tpu.memory_space<vmem>>, %arg9: memref<1x32xf32, #tpu.memory_space<vmem>>, %arg10: memref<96x32xbf16, #tpu.memory_space<vmem>>, %arg11: memref<1x32xf32, #tpu.memory_space<vmem>>, %arg12: memref<1x32xf32, #tpu.memory_space<vmem>>, %arg13: memref<1x32xf32, #tpu.memory_space<vmem>>, %arg14: memref<1x32xf32, #tpu.memory_space<vmem>>, %arg15: memref<1x32xf32, #tpu.memory_space<vmem>>, %arg16: memref<32x32xbf16, #tpu.memory_space<vmem>>, %arg17: memref<1x32xf32, #tpu.memory_space<vmem>>, %arg18: memref<2x1x32xf32, #tpu.memory_space<vmem>>, %arg19: memref<2x1x32xf32, #tpu.memory_space<vmem>>, %arg20: memref<2x32x96xbf16, #tpu.memory_space<vmem>>, %arg21: memref<2x1x96xf32, #tpu.memory_space<vmem>>, %arg22: memref<2x32x32xbf16, #tpu.memory_space<vmem>>, %arg23: memref<2x1x32xf32, #tpu.memory_space<vmem>>, %arg24: memref<2x1x32xf32, #tpu.memory_space<vmem>>, %arg25: memref<2x1x32xf32, #tpu.memory_space<vmem>>, %arg26: memref<2x32x64xbf16, #tpu.memory_space<vmem>>, %arg27: memref<2x1x64xf32, #tpu.memory_space<vmem>>, %arg28: memref<2x64x32xbf16, #tpu.memory_space<vmem>>, %arg29: memref<2x1x32xf32, #tpu.memory_space<vmem>>, %arg30: memref<1x32xf32, #tpu.memory_space<vmem>>, %arg31: memref<1x32xf32, #tpu.memory_space<vmem>>, %arg32: memref<32x256xbf16, #tpu.memory_space<vmem>>, %arg33: memref<1x256xf32, #tpu.memory_space<vmem>>, %arg34: memref<256x6xbf16, #tpu.memory_space<vmem>>, %arg35: memref<1x6xf32, #tpu.memory_space<vmem>>, %arg36: memref<1x1x6xf32, #tpu.memory_space<vmem>>) attributes {dimension_semantics = [#tpu.dimension_semantics<parallel>], iteration_bounds = array<i64: 2>, scalar_prefetch = 0 : i64, scratch_operands = 0 : i64, tpu.core_type = #tpu.core_type<tc>, window_params = [{transform_indices = @transform_0, window_bounds = array<i64: 1, 63, 10>}, {pipeline_mode = #tpu.pipeline_mode<synchronous>, transform_indices = @transform_1, window_bounds = array<i64: 10, 32>}, {pipeline_mode = #tpu.pipeline_mode<synchronous>, transform_indices = @transform_2, window_bounds = array<i64: 1, 32>}, {pipeline_mode = #tpu.pipeline_mode<synchronous>, transform_indices = @transform_3, window_bounds = array<i64: 1, 32>}, {pipeline_mode = #tpu.pipeline_mode<synchronous>, transform_indices = @transform_4, window_bounds = array<i64: 1, 32>}, {pipeline_mode = #tpu.pipeline_mode<synchronous>, transform_indices = @transform_5, window_bounds = array<i64: 96, 32>}, {pipeline_mode = #tpu.pipeline_mode<synchronous>, transform_indices = @transform_6, window_bounds = array<i64: 1, 32>}, {pipeline_mode = #tpu.pipeline_mode<synchronous>, transform_indices = @transform_7, window_bounds = array<i64: 1, 32>}, {pipeline_mode = #tpu.pipeline_mode<synchronous>, transform_indices = @transform_8, window_bounds = array<i64: 1, 32>}, {pipeline_mode = #tpu.pipeline_mode<synchronous>, transform_indices = @transform_9, window_bounds = array<i64: 96, 32>}, {pipeline_mode = #tpu.pipeline_mode<synchronous>, transform_indices = @transform_10, window_bounds = array<i64: 1, 32>}, {pipeline_mode = #tpu.pipeline_mode<synchronous>, transform_indices = @transform_11, window_bounds = array<i64: 1, 32>}, {pipeline_mode = #tpu.pipeline_mode<synchronous>, transform_indices = @transform_12, window_bounds = array<i64: 1, 32>}, {pipeline_mode = #tpu.pipeline_mode<synchronous>, transform_indices = @transform_13, window_bounds = array<i64: 1, 32>}, {pipeline_mode = #tpu.pipeline_mode<synchronous>, transform_indices = @transform_14, window_bounds = array<i64: 1, 32>}, {pipeline_mode = #tpu.pipeline_mode<synchronous>, transform_indices = @transform_15, window_bounds = array<i64: 32, 32>}, {pipeline_mode = #tpu.pipeline_mode<synchronous>, transform_indices = @transform_16, window_bounds = array<i64: 1, 32>}, {pipeline_mode = #tpu.pipeline_mode<synchronous>, transform_indices = @transform_17, window_bounds = array<i64: 2, 1, 32>}, {pipeline_mode = #tpu.pipeline_mode<synchronous>, transform_indices = @transform_18, window_bounds = array<i64: 2, 1, 32>}, {pipeline_mode = #tpu.pipeline_mode<synchronous>, transform_indices = @transform_19, window_bounds = array<i64: 2, 32, 96>}, {pipeline_mode = #tpu.pipeline_mode<synchronous>, transform_indices = @transform_20, window_bounds = array<i64: 2, 1, 96>}, {pipeline_mode = #tpu.pipeline_mode<synchronous>, transform_indices = @transform_21, window_bounds = array<i64: 2, 32, 32>}, {pipeline_mode = #tpu.pipeline_mode<synchronous>, transform_indices = @transform_22, window_bounds = array<i64: 2, 1, 32>}, {pipeline_mode = #tpu.pipeline_mode<synchronous>, transform_indices = @transform_23, window_bounds = array<i64: 2, 1, 32>}, {pipeline_mode = #tpu.pipeline_mode<synchronous>, transform_indices = @transform_24, window_bounds = array<i64: 2, 1, 32>}, {pipeline_mode = #tpu.pipeline_mode<synchronous>, transform_indices = @transform_25, window_bounds = array<i64: 2, 32, 64>}, {pipeline_mode = #tpu.pipeline_mode<synchronous>, transform_indices = @transform_26, window_bounds = array<i64: 2, 1, 64>}, {pipeline_mode = #tpu.pipeline_mode<synchronous>, transform_indices = @transform_27, window_bounds = array<i64: 2, 64, 32>}, {pipeline_mode = #tpu.pipeline_mode<synchronous>, transform_indices = @transform_28, window_bounds = array<i64: 2, 1, 32>}, {pipeline_mode = #tpu.pipeline_mode<synchronous>, transform_indices = @transform_29, window_bounds = array<i64: 1, 32>}, {pipeline_mode = #tpu.pipeline_mode<synchronous>, transform_indices = @transform_30, window_bounds = array<i64: 1, 32>}, {pipeline_mode = #tpu.pipeline_mode<synchronous>, transform_indices = @transform_31, window_bounds = array<i64: 32, 256>}, {pipeline_mode = #tpu.pipeline_mode<synchronous>, transform_indices = @transform_32, window_bounds = array<i64: 1, 256>}, {pipeline_mode = #tpu.pipeline_mode<synchronous>, transform_indices = @transform_33, window_bounds = array<i64: 256, 6>}, {pipeline_mode = #tpu.pipeline_mode<synchronous>, transform_indices = @transform_34, window_bounds = array<i64: 1, 6>}, {transform_indices = @transform_35, window_bounds = array<i64: 1, 1, 6>}]} {
    %c0 = arith.constant 0 : index
    %c0_0 = arith.constant 0 : index
    %c0_1 = arith.constant 0 : index
    %0 = vector.load %arg1[%c0, %c0_0, %c0_1] : memref<1x63x10xf32, #tpu.memory_space<vmem>>, vector<1x63x10xf32>
    %1 = vector.shape_cast %0 : vector<1x63x10xf32> to vector<63x10xf32>
    %2 = arith.truncf %1 : vector<63x10xf32> to vector<63x10xbf16>
    %c0_2 = arith.constant 0 : index
    %c0_3 = arith.constant 0 : index
    %3 = vector.load %arg2[%c0_2, %c0_3] : memref<10x32xbf16, #tpu.memory_space<vmem>>, vector<10x32xbf16>
    %cst = arith.constant dense<0.000000e+00> : vector<63x32xf32>
    %4 = tpu.matmul %2, %3, %cst {dimension_numbers = #tpu.dot_dimension_numbers<[1], [0], [0], [1], [0, 0, 1, 1], [], []>} : vector<63x10xbf16>, vector<10x32xbf16>, vector<63x32xf32> -> vector<63x32xf32>
    %c0_4 = arith.constant 0 : index
    %c0_5 = arith.constant 0 : index
    %5 = vector.load %arg3[%c0_4, %c0_5] : memref<1x32xf32, #tpu.memory_space<vmem>>, vector<1x32xf32>
    %6 = vector.broadcast %5 : vector<1x32xf32> to vector<63x32xf32>
    %7 = arith.addf %4, %6 : vector<63x32xf32>
    %c0_6 = arith.constant 0 : index
    %c0_7 = arith.constant 0 : index
    %8 = vector.load %arg4[%c0_6, %c0_7] : memref<1x32xf32, #tpu.memory_space<vmem>>, vector<1x32xf32>
    %c0_8 = arith.constant 0 : index
    %c0_9 = arith.constant 0 : index
    %9 = vector.load %arg5[%c0_8, %c0_9] : memref<1x32xf32, #tpu.memory_space<vmem>>, vector<1x32xf32>
    %cst_10 = arith.constant dense<0.000000e+00> : vector<63xf32>
    %10 = vector.multi_reduction <add>, %7, %cst_10 [1] : vector<63x32xf32> to vector<63xf32>
    %11 = vector.shape_cast %10 : vector<63xf32> to vector<63x1xf32>
    %cst_11 = arith.constant 3.200000e+01 : f32
    %12 = vector.broadcast %cst_11 : f32 to vector<63x1xf32>
    %13 = arith.divf %11, %12 : vector<63x1xf32>
    %14 = vector.broadcast %13 : vector<63x1xf32> to vector<63x32xf32>
    %15 = arith.subf %7, %14 : vector<63x32xf32>
    %16 = arith.mulf %15, %15 : vector<63x32xf32>
    %cst_12 = arith.constant dense<0.000000e+00> : vector<63xf32>
    %17 = vector.multi_reduction <add>, %16, %cst_12 [1] : vector<63x32xf32> to vector<63xf32>
    %18 = vector.shape_cast %17 : vector<63xf32> to vector<63x1xf32>
    %cst_13 = arith.constant 3.200000e+01 : f32
    %19 = vector.broadcast %cst_13 : f32 to vector<63x1xf32>
    %20 = arith.divf %18, %19 : vector<63x1xf32>
    %21 = vector.broadcast %13 : vector<63x1xf32> to vector<63x32xf32>
    %22 = arith.subf %7, %21 : vector<63x32xf32>
    %cst_14 = arith.constant 9.99999974E-6 : f32
    %23 = vector.broadcast %cst_14 : f32 to vector<63x1xf32>
    %24 = arith.addf %20, %23 : vector<63x1xf32>
    %25 = math.rsqrt %24 : vector<63x1xf32>
    %26 = vector.broadcast %25 : vector<63x1xf32> to vector<63x32xf32>
    %27 = arith.mulf %22, %26 : vector<63x32xf32>
    %28 = vector.broadcast %8 : vector<1x32xf32> to vector<63x32xf32>
    %29 = arith.mulf %27, %28 : vector<63x32xf32>
    %30 = vector.broadcast %9 : vector<1x32xf32> to vector<63x32xf32>
    %31 = arith.addf %29, %30 : vector<63x32xf32>
    %cst_15 = arith.constant 5.000000e-01 : f32
    %32 = vector.broadcast %cst_15 : f32 to vector<63x32xf32>
    %33 = arith.mulf %32, %31 : vector<63x32xf32>
    %cst_16 = arith.constant 4.471500e-02 : f32
    %34 = vector.broadcast %cst_16 : f32 to vector<63x32xf32>
    %35 = arith.mulf %34, %31 : vector<63x32xf32>
    %36 = arith.mulf %35, %31 : vector<63x32xf32>
    %37 = arith.mulf %36, %31 : vector<63x32xf32>
    %38 = arith.addf %31, %37 : vector<63x32xf32>
    %cst_17 = arith.constant 0.797884583 : f32
    %39 = vector.broadcast %cst_17 : f32 to vector<63x32xf32>
    %40 = arith.mulf %39, %38 : vector<63x32xf32>
    %41 = math.tanh %40 : vector<63x32xf32>
    %cst_18 = arith.constant 1.000000e+00 : f32
    %42 = vector.broadcast %cst_18 : f32 to vector<63x32xf32>
    %43 = arith.addf %42, %41 : vector<63x32xf32>
    %44 = arith.mulf %33, %43 : vector<63x32xf32>
    %45 = vector.extract_strided_slice %44 {offsets = [0, 0], sizes = [61, 32], strides = [1, 1]} : vector<63x32xf32> to vector<61x32xf32>
    %46 = vector.extract_strided_slice %44 {offsets = [1, 0], sizes = [61, 32], strides = [1, 1]} : vector<63x32xf32> to vector<61x32xf32>
    %47 = vector.extract_strided_slice %44 {offsets = [2, 0], sizes = [61, 32], strides = [1, 1]} : vector<63x32xf32> to vector<61x32xf32>
    %48 = tpu.concatenate %45, %46, %47 in 1 : vector<61x32xf32>, vector<61x32xf32>, vector<61x32xf32> -> vector<61x96xf32>
    %49 = arith.truncf %48 : vector<61x96xf32> to vector<61x96xbf16>
    %c0_19 = arith.constant 0 : index
    %c0_20 = arith.constant 0 : index
    %50 = vector.load %arg6[%c0_19, %c0_20] : memref<96x32xbf16, #tpu.memory_space<vmem>>, vector<96x32xbf16>
    %cst_21 = arith.constant dense<0.000000e+00> : vector<61x32xf32>
    %51 = tpu.matmul %49, %50, %cst_21 {dimension_numbers = #tpu.dot_dimension_numbers<[1], [0], [0], [1], [0, 0, 1, 1], [], []>} : vector<61x96xbf16>, vector<96x32xbf16>, vector<61x32xf32> -> vector<61x32xf32>
    %c0_22 = arith.constant 0 : index
    %c0_23 = arith.constant 0 : index
    %52 = vector.load %arg7[%c0_22, %c0_23] : memref<1x32xf32, #tpu.memory_space<vmem>>, vector<1x32xf32>
    %53 = vector.broadcast %52 : vector<1x32xf32> to vector<61x32xf32>
    %54 = arith.addf %51, %53 : vector<61x32xf32>
    %55 = tpu.iota {dimensions = array<i32: 0>} : vector<31x61xi32>
    %56 = tpu.iota {dimensions = array<i32: 1>} : vector<31x61xi32>
    %c2_i32 = arith.constant 2 : i32
    %57 = vector.broadcast %c2_i32 : i32 to vector<31x61xi32>
    %58 = arith.muli %57, %55 : vector<31x61xi32>
    %59 = arith.cmpi eq, %56, %58 : vector<31x61xi32>
    %60 = arith.extui %59 : vector<31x61xi1> to vector<31x61xi32>
    %61 = arith.sitofp %60 : vector<31x61xi32> to vector<31x61xf32>
    %cst_24 = arith.constant dense<0.000000e+00> : vector<31x32xf32>
    %62 = tpu.matmul %61, %54, %cst_24 {dimension_numbers = #tpu.dot_dimension_numbers<[1], [0], [0], [1], [0, 0, 1, 1], [], []>} : vector<31x61xf32>, vector<61x32xf32>, vector<31x32xf32> -> vector<31x32xf32>
    %c0_25 = arith.constant 0 : index
    %c0_26 = arith.constant 0 : index
    %63 = vector.load %arg8[%c0_25, %c0_26] : memref<1x32xf32, #tpu.memory_space<vmem>>, vector<1x32xf32>
    %c0_27 = arith.constant 0 : index
    %c0_28 = arith.constant 0 : index
    %64 = vector.load %arg9[%c0_27, %c0_28] : memref<1x32xf32, #tpu.memory_space<vmem>>, vector<1x32xf32>
    %cst_29 = arith.constant dense<0.000000e+00> : vector<31xf32>
    %65 = vector.multi_reduction <add>, %62, %cst_29 [1] : vector<31x32xf32> to vector<31xf32>
    %66 = vector.shape_cast %65 : vector<31xf32> to vector<31x1xf32>
    %cst_30 = arith.constant 3.200000e+01 : f32
    %67 = vector.broadcast %cst_30 : f32 to vector<31x1xf32>
    %68 = arith.divf %66, %67 : vector<31x1xf32>
    %69 = vector.broadcast %68 : vector<31x1xf32> to vector<31x32xf32>
    %70 = arith.subf %62, %69 : vector<31x32xf32>
    %71 = arith.mulf %70, %70 : vector<31x32xf32>
    %cst_31 = arith.constant dense<0.000000e+00> : vector<31xf32>
    %72 = vector.multi_reduction <add>, %71, %cst_31 [1] : vector<31x32xf32> to vector<31xf32>
    %73 = vector.shape_cast %72 : vector<31xf32> to vector<31x1xf32>
    %cst_32 = arith.constant 3.200000e+01 : f32
    %74 = vector.broadcast %cst_32 : f32 to vector<31x1xf32>
    %75 = arith.divf %73, %74 : vector<31x1xf32>
    %76 = vector.broadcast %68 : vector<31x1xf32> to vector<31x32xf32>
    %77 = arith.subf %62, %76 : vector<31x32xf32>
    %cst_33 = arith.constant 9.99999974E-6 : f32
    %78 = vector.broadcast %cst_33 : f32 to vector<31x1xf32>
    %79 = arith.addf %75, %78 : vector<31x1xf32>
    %80 = math.rsqrt %79 : vector<31x1xf32>
    %81 = vector.broadcast %80 : vector<31x1xf32> to vector<31x32xf32>
    %82 = arith.mulf %77, %81 : vector<31x32xf32>
    %83 = vector.broadcast %63 : vector<1x32xf32> to vector<31x32xf32>
    %84 = arith.mulf %82, %83 : vector<31x32xf32>
    %85 = vector.broadcast %64 : vector<1x32xf32> to vector<31x32xf32>
    %86 = arith.addf %84, %85 : vector<31x32xf32>
    %cst_34 = arith.constant 5.000000e-01 : f32
    %87 = vector.broadcast %cst_34 : f32 to vector<31x32xf32>
    %88 = arith.mulf %87, %86 : vector<31x32xf32>
    %cst_35 = arith.constant 4.471500e-02 : f32
    %89 = vector.broadcast %cst_35 : f32 to vector<31x32xf32>
    %90 = arith.mulf %89, %86 : vector<31x32xf32>
    %91 = arith.mulf %90, %86 : vector<31x32xf32>
    %92 = arith.mulf %91, %86 : vector<31x32xf32>
    %93 = arith.addf %86, %92 : vector<31x32xf32>
    %cst_36 = arith.constant 0.797884583 : f32
    %94 = vector.broadcast %cst_36 : f32 to vector<31x32xf32>
    %95 = arith.mulf %94, %93 : vector<31x32xf32>
    %96 = math.tanh %95 : vector<31x32xf32>
    %cst_37 = arith.constant 1.000000e+00 : f32
    %97 = vector.broadcast %cst_37 : f32 to vector<31x32xf32>
    %98 = arith.addf %97, %96 : vector<31x32xf32>
    %99 = arith.mulf %88, %98 : vector<31x32xf32>
    %100 = vector.extract_strided_slice %99 {offsets = [0, 0], sizes = [29, 32], strides = [1, 1]} : vector<31x32xf32> to vector<29x32xf32>
    %101 = vector.extract_strided_slice %99 {offsets = [1, 0], sizes = [29, 32], strides = [1, 1]} : vector<31x32xf32> to vector<29x32xf32>
    %102 = vector.extract_strided_slice %99 {offsets = [2, 0], sizes = [29, 32], strides = [1, 1]} : vector<31x32xf32> to vector<29x32xf32>
    %103 = tpu.concatenate %100, %101, %102 in 1 : vector<29x32xf32>, vector<29x32xf32>, vector<29x32xf32> -> vector<29x96xf32>
    %104 = arith.truncf %103 : vector<29x96xf32> to vector<29x96xbf16>
    %c0_38 = arith.constant 0 : index
    %c0_39 = arith.constant 0 : index
    %105 = vector.load %arg10[%c0_38, %c0_39] : memref<96x32xbf16, #tpu.memory_space<vmem>>, vector<96x32xbf16>
    %cst_40 = arith.constant dense<0.000000e+00> : vector<29x32xf32>
    %106 = tpu.matmul %104, %105, %cst_40 {dimension_numbers = #tpu.dot_dimension_numbers<[1], [0], [0], [1], [0, 0, 1, 1], [], []>} : vector<29x96xbf16>, vector<96x32xbf16>, vector<29x32xf32> -> vector<29x32xf32>
    %c0_41 = arith.constant 0 : index
    %c0_42 = arith.constant 0 : index
    %107 = vector.load %arg11[%c0_41, %c0_42] : memref<1x32xf32, #tpu.memory_space<vmem>>, vector<1x32xf32>
    %108 = vector.broadcast %107 : vector<1x32xf32> to vector<29x32xf32>
    %109 = arith.addf %106, %108 : vector<29x32xf32>
    %110 = tpu.iota {dimensions = array<i32: 0>} : vector<15x29xi32>
    %111 = tpu.iota {dimensions = array<i32: 1>} : vector<15x29xi32>
    %c2_i32_43 = arith.constant 2 : i32
    %112 = vector.broadcast %c2_i32_43 : i32 to vector<15x29xi32>
    %113 = arith.muli %112, %110 : vector<15x29xi32>
    %114 = arith.cmpi eq, %111, %113 : vector<15x29xi32>
    %115 = arith.extui %114 : vector<15x29xi1> to vector<15x29xi32>
    %116 = arith.sitofp %115 : vector<15x29xi32> to vector<15x29xf32>
    %cst_44 = arith.constant dense<0.000000e+00> : vector<15x32xf32>
    %117 = tpu.matmul %116, %109, %cst_44 {dimension_numbers = #tpu.dot_dimension_numbers<[1], [0], [0], [1], [0, 0, 1, 1], [], []>} : vector<15x29xf32>, vector<29x32xf32>, vector<15x32xf32> -> vector<15x32xf32>
    %c0_45 = arith.constant 0 : index
    %c0_46 = arith.constant 0 : index
    %118 = vector.load %arg12[%c0_45, %c0_46] : memref<1x32xf32, #tpu.memory_space<vmem>>, vector<1x32xf32>
    %c0_47 = arith.constant 0 : index
    %c0_48 = arith.constant 0 : index
    %119 = vector.load %arg13[%c0_47, %c0_48] : memref<1x32xf32, #tpu.memory_space<vmem>>, vector<1x32xf32>
    %cst_49 = arith.constant dense<0.000000e+00> : vector<15xf32>
    %120 = vector.multi_reduction <add>, %117, %cst_49 [1] : vector<15x32xf32> to vector<15xf32>
    %121 = vector.shape_cast %120 : vector<15xf32> to vector<15x1xf32>
    %cst_50 = arith.constant 3.200000e+01 : f32
    %122 = vector.broadcast %cst_50 : f32 to vector<15x1xf32>
    %123 = arith.divf %121, %122 : vector<15x1xf32>
    %124 = vector.broadcast %123 : vector<15x1xf32> to vector<15x32xf32>
    %125 = arith.subf %117, %124 : vector<15x32xf32>
    %126 = arith.mulf %125, %125 : vector<15x32xf32>
    %cst_51 = arith.constant dense<0.000000e+00> : vector<15xf32>
    %127 = vector.multi_reduction <add>, %126, %cst_51 [1] : vector<15x32xf32> to vector<15xf32>
    %128 = vector.shape_cast %127 : vector<15xf32> to vector<15x1xf32>
    %cst_52 = arith.constant 3.200000e+01 : f32
    %129 = vector.broadcast %cst_52 : f32 to vector<15x1xf32>
    %130 = arith.divf %128, %129 : vector<15x1xf32>
    %131 = vector.broadcast %123 : vector<15x1xf32> to vector<15x32xf32>
    %132 = arith.subf %117, %131 : vector<15x32xf32>
    %cst_53 = arith.constant 9.99999974E-6 : f32
    %133 = vector.broadcast %cst_53 : f32 to vector<15x1xf32>
    %134 = arith.addf %130, %133 : vector<15x1xf32>
    %135 = math.rsqrt %134 : vector<15x1xf32>
    %136 = vector.broadcast %135 : vector<15x1xf32> to vector<15x32xf32>
    %137 = arith.mulf %132, %136 : vector<15x32xf32>
    %138 = vector.broadcast %118 : vector<1x32xf32> to vector<15x32xf32>
    %139 = arith.mulf %137, %138 : vector<15x32xf32>
    %140 = vector.broadcast %119 : vector<1x32xf32> to vector<15x32xf32>
    %141 = arith.addf %139, %140 : vector<15x32xf32>
    %cst_54 = arith.constant 5.000000e-01 : f32
    %142 = vector.broadcast %cst_54 : f32 to vector<15x32xf32>
    %143 = arith.mulf %142, %141 : vector<15x32xf32>
    %cst_55 = arith.constant 4.471500e-02 : f32
    %144 = vector.broadcast %cst_55 : f32 to vector<15x32xf32>
    %145 = arith.mulf %144, %141 : vector<15x32xf32>
    %146 = arith.mulf %145, %141 : vector<15x32xf32>
    %147 = arith.mulf %146, %141 : vector<15x32xf32>
    %148 = arith.addf %141, %147 : vector<15x32xf32>
    %cst_56 = arith.constant 0.797884583 : f32
    %149 = vector.broadcast %cst_56 : f32 to vector<15x32xf32>
    %150 = arith.mulf %149, %148 : vector<15x32xf32>
    %151 = math.tanh %150 : vector<15x32xf32>
    %cst_57 = arith.constant 1.000000e+00 : f32
    %152 = vector.broadcast %cst_57 : f32 to vector<15x32xf32>
    %153 = arith.addf %152, %151 : vector<15x32xf32>
    %154 = arith.mulf %143, %153 : vector<15x32xf32>
    %c0_58 = arith.constant 0 : index
    %c0_59 = arith.constant 0 : index
    %155 = vector.load %arg14[%c0_58, %c0_59] : memref<1x32xf32, #tpu.memory_space<vmem>>, vector<1x32xf32>
    %c0_60 = arith.constant 0 : index
    %c0_61 = arith.constant 0 : index
    %156 = vector.load %arg15[%c0_60, %c0_61] : memref<1x32xf32, #tpu.memory_space<vmem>>, vector<1x32xf32>
    %cst_62 = arith.constant dense<0.000000e+00> : vector<15xf32>
    %157 = vector.multi_reduction <add>, %154, %cst_62 [1] : vector<15x32xf32> to vector<15xf32>
    %158 = vector.shape_cast %157 : vector<15xf32> to vector<15x1xf32>
    %cst_63 = arith.constant 3.200000e+01 : f32
    %159 = vector.broadcast %cst_63 : f32 to vector<15x1xf32>
    %160 = arith.divf %158, %159 : vector<15x1xf32>
    %161 = vector.broadcast %160 : vector<15x1xf32> to vector<15x32xf32>
    %162 = arith.subf %154, %161 : vector<15x32xf32>
    %163 = arith.mulf %162, %162 : vector<15x32xf32>
    %cst_64 = arith.constant dense<0.000000e+00> : vector<15xf32>
    %164 = vector.multi_reduction <add>, %163, %cst_64 [1] : vector<15x32xf32> to vector<15xf32>
    %165 = vector.shape_cast %164 : vector<15xf32> to vector<15x1xf32>
    %cst_65 = arith.constant 3.200000e+01 : f32
    %166 = vector.broadcast %cst_65 : f32 to vector<15x1xf32>
    %167 = arith.divf %165, %166 : vector<15x1xf32>
    %168 = vector.broadcast %160 : vector<15x1xf32> to vector<15x32xf32>
    %169 = arith.subf %154, %168 : vector<15x32xf32>
    %cst_66 = arith.constant 9.99999974E-6 : f32
    %170 = vector.broadcast %cst_66 : f32 to vector<15x1xf32>
    %171 = arith.addf %167, %170 : vector<15x1xf32>
    %172 = math.rsqrt %171 : vector<15x1xf32>
    %173 = vector.broadcast %172 : vector<15x1xf32> to vector<15x32xf32>
    %174 = arith.mulf %169, %173 : vector<15x32xf32>
    %175 = vector.broadcast %155 : vector<1x32xf32> to vector<15x32xf32>
    %176 = arith.mulf %174, %175 : vector<15x32xf32>
    %177 = vector.broadcast %156 : vector<1x32xf32> to vector<15x32xf32>
    %178 = arith.addf %176, %177 : vector<15x32xf32>
    %179 = arith.truncf %178 : vector<15x32xf32> to vector<15x32xbf16>
    %c0_67 = arith.constant 0 : index
    %c0_68 = arith.constant 0 : index
    %180 = vector.load %arg16[%c0_67, %c0_68] : memref<32x32xbf16, #tpu.memory_space<vmem>>, vector<32x32xbf16>
    %cst_69 = arith.constant dense<0.000000e+00> : vector<15x32xf32>
    %181 = tpu.matmul %179, %180, %cst_69 {dimension_numbers = #tpu.dot_dimension_numbers<[1], [0], [0], [1], [0, 0, 1, 1], [], []>} : vector<15x32xbf16>, vector<32x32xbf16>, vector<15x32xf32> -> vector<15x32xf32>
    %c0_70 = arith.constant 0 : index
    %c0_71 = arith.constant 0 : index
    %182 = vector.load %arg17[%c0_70, %c0_71] : memref<1x32xf32, #tpu.memory_space<vmem>>, vector<1x32xf32>
    %183 = vector.broadcast %182 : vector<1x32xf32> to vector<15x32xf32>
    %184 = arith.addf %181, %183 : vector<15x32xf32>
    %c0_72 = arith.constant 0 : index
    %c0_73 = arith.constant 0 : index
    %c0_74 = arith.constant 0 : index
    %185 = vector.load %arg18[%c0_72, %c0_73, %c0_74] : memref<2x1x32xf32, #tpu.memory_space<vmem>>, vector<1x1x32xf32>
    %186 = vector.shape_cast %185 : vector<1x1x32xf32> to vector<1x32xf32>
    %c0_75 = arith.constant 0 : index
    %c0_76 = arith.constant 0 : index
    %c0_77 = arith.constant 0 : index
    %187 = vector.load %arg19[%c0_75, %c0_76, %c0_77] : memref<2x1x32xf32, #tpu.memory_space<vmem>>, vector<1x1x32xf32>
    %188 = vector.shape_cast %187 : vector<1x1x32xf32> to vector<1x32xf32>
    %cst_78 = arith.constant dense<0.000000e+00> : vector<15xf32>
    %189 = vector.multi_reduction <add>, %184, %cst_78 [1] : vector<15x32xf32> to vector<15xf32>
    %190 = vector.shape_cast %189 : vector<15xf32> to vector<15x1xf32>
    %cst_79 = arith.constant 3.200000e+01 : f32
    %191 = vector.broadcast %cst_79 : f32 to vector<15x1xf32>
    %192 = arith.divf %190, %191 : vector<15x1xf32>
    %193 = vector.broadcast %192 : vector<15x1xf32> to vector<15x32xf32>
    %194 = arith.subf %184, %193 : vector<15x32xf32>
    %195 = arith.mulf %194, %194 : vector<15x32xf32>
    %cst_80 = arith.constant dense<0.000000e+00> : vector<15xf32>
    %196 = vector.multi_reduction <add>, %195, %cst_80 [1] : vector<15x32xf32> to vector<15xf32>
    %197 = vector.shape_cast %196 : vector<15xf32> to vector<15x1xf32>
    %cst_81 = arith.constant 3.200000e+01 : f32
    %198 = vector.broadcast %cst_81 : f32 to vector<15x1xf32>
    %199 = arith.divf %197, %198 : vector<15x1xf32>
    %200 = vector.broadcast %192 : vector<15x1xf32> to vector<15x32xf32>
    %201 = arith.subf %184, %200 : vector<15x32xf32>
    %cst_82 = arith.constant 9.99999974E-6 : f32
    %202 = vector.broadcast %cst_82 : f32 to vector<15x1xf32>
    %203 = arith.addf %199, %202 : vector<15x1xf32>
    %204 = math.rsqrt %203 : vector<15x1xf32>
    %205 = vector.broadcast %204 : vector<15x1xf32> to vector<15x32xf32>
    %206 = arith.mulf %201, %205 : vector<15x32xf32>
    %207 = vector.broadcast %186 : vector<1x32xf32> to vector<15x32xf32>
    %208 = arith.mulf %206, %207 : vector<15x32xf32>
    %209 = vector.broadcast %188 : vector<1x32xf32> to vector<15x32xf32>
    %210 = arith.addf %208, %209 : vector<15x32xf32>
    %211 = arith.truncf %210 : vector<15x32xf32> to vector<15x32xbf16>
    %c0_83 = arith.constant 0 : index
    %c0_84 = arith.constant 0 : index
    %c0_85 = arith.constant 0 : index
    %212 = vector.load %arg20[%c0_83, %c0_84, %c0_85] : memref<2x32x96xbf16, #tpu.memory_space<vmem>>, vector<1x32x96xbf16>
    %213 = vector.shape_cast %212 : vector<1x32x96xbf16> to vector<32x96xbf16>
    %cst_86 = arith.constant dense<0.000000e+00> : vector<15x96xf32>
    %214 = tpu.matmul %211, %213, %cst_86 {dimension_numbers = #tpu.dot_dimension_numbers<[1], [0], [0], [1], [0, 0, 1, 1], [], []>} : vector<15x32xbf16>, vector<32x96xbf16>, vector<15x96xf32> -> vector<15x96xf32>
    %c0_87 = arith.constant 0 : index
    %c0_88 = arith.constant 0 : index
    %c0_89 = arith.constant 0 : index
    %215 = vector.load %arg21[%c0_87, %c0_88, %c0_89] : memref<2x1x96xf32, #tpu.memory_space<vmem>>, vector<1x1x96xf32>
    %216 = vector.shape_cast %215 : vector<1x1x96xf32> to vector<1x96xf32>
    %217 = vector.broadcast %216 : vector<1x96xf32> to vector<15x96xf32>
    %218 = arith.addf %214, %217 : vector<15x96xf32>
    %c0_90 = arith.constant 0 : index
    %c0_91 = arith.constant 0 : index
    %c0_92 = arith.constant 0 : index
    %219 = vector.load %arg22[%c0_90, %c0_91, %c0_92] : memref<2x32x32xbf16, #tpu.memory_space<vmem>>, vector<1x32x32xbf16>
    %220 = vector.shape_cast %219 : vector<1x32x32xbf16> to vector<32x32xbf16>
    %c0_93 = arith.constant 0 : index
    %c0_94 = arith.constant 0 : index
    %c0_95 = arith.constant 0 : index
    %221 = vector.load %arg23[%c0_93, %c0_94, %c0_95] : memref<2x1x32xf32, #tpu.memory_space<vmem>>, vector<1x1x32xf32>
    %222 = vector.shape_cast %221 : vector<1x1x32xf32> to vector<1x32xf32>
    %223 = vector.broadcast %222 : vector<1x32xf32> to vector<15x32xf32>
    %224 = arith.addf %184, %223 : vector<15x32xf32>
    %225 = vector.extract_strided_slice %218 {offsets = [0, 0], sizes = [15, 8], strides = [1, 1]} : vector<15x96xf32> to vector<15x8xf32>
    %226 = arith.truncf %225 : vector<15x8xf32> to vector<15x8xbf16>
    %227 = vector.extract_strided_slice %218 {offsets = [0, 32], sizes = [15, 8], strides = [1, 1]} : vector<15x96xf32> to vector<15x8xf32>
    %228 = arith.truncf %227 : vector<15x8xf32> to vector<15x8xbf16>
    %229 = vector.extract_strided_slice %218 {offsets = [0, 64], sizes = [15, 8], strides = [1, 1]} : vector<15x96xf32> to vector<15x8xf32>
    %230 = arith.truncf %229 : vector<15x8xf32> to vector<15x8xbf16>
    %cst_96 = arith.constant dense<0.000000e+00> : vector<15x15xf32>
    %231 = tpu.matmul %226, %228, %cst_96 {dimension_numbers = #tpu.dot_dimension_numbers<[1], [1], [0], [0], [0, 0, 1, 0], [], []>} : vector<15x8xbf16>, vector<15x8xbf16>, vector<15x15xf32> -> vector<15x15xf32>
    %cst_97 = arith.constant dense<0xFF800000> : vector<15xf32>
    %232 = vector.multi_reduction <maximumf>, %231, %cst_97 [1] : vector<15x15xf32> to vector<15xf32>
    %233 = vector.shape_cast %232 : vector<15xf32> to vector<15x1xf32>
    %234 = vector.broadcast %233 : vector<15x1xf32> to vector<15x15xf32>
    %235 = arith.subf %231, %234 : vector<15x15xf32>
    %236 = math.exp %235 : vector<15x15xf32>
    %cst_98 = arith.constant dense<0.000000e+00> : vector<15xf32>
    %237 = vector.multi_reduction <add>, %236, %cst_98 [1] : vector<15x15xf32> to vector<15xf32>
    %238 = vector.shape_cast %237 : vector<15xf32> to vector<15x1xf32>
    %239 = tpu.reciprocal %238 {approx = true} : vector<15x1xf32> -> vector<15x1xf32>
    %240 = vector.broadcast %239 : vector<15x1xf32> to vector<15x15xf32>
    %241 = arith.mulf %236, %240 : vector<15x15xf32>
    %242 = arith.truncf %241 : vector<15x15xf32> to vector<15x15xbf16>
    %cst_99 = arith.constant dense<0.000000e+00> : vector<15x8xf32>
    %243 = tpu.matmul %242, %230, %cst_99 {dimension_numbers = #tpu.dot_dimension_numbers<[1], [0], [0], [1], [0, 0, 1, 1], [], []>} : vector<15x15xbf16>, vector<15x8xbf16>, vector<15x8xf32> -> vector<15x8xf32>
    %244 = arith.truncf %243 : vector<15x8xf32> to vector<15x8xbf16>
    %245 = vector.extract_strided_slice %220 {offsets = [0, 0], sizes = [8, 32], strides = [1, 1]} : vector<32x32xbf16> to vector<8x32xbf16>
    %cst_100 = arith.constant dense<0.000000e+00> : vector<15x32xf32>
    %246 = tpu.matmul %244, %245, %cst_100 {dimension_numbers = #tpu.dot_dimension_numbers<[1], [0], [0], [1], [0, 0, 1, 1], [], []>} : vector<15x8xbf16>, vector<8x32xbf16>, vector<15x32xf32> -> vector<15x32xf32>
    %247 = arith.addf %224, %246 : vector<15x32xf32>
    %248 = vector.extract_strided_slice %218 {offsets = [0, 8], sizes = [15, 8], strides = [1, 1]} : vector<15x96xf32> to vector<15x8xf32>
    %249 = arith.truncf %248 : vector<15x8xf32> to vector<15x8xbf16>
    %250 = vector.extract_strided_slice %218 {offsets = [0, 40], sizes = [15, 8], strides = [1, 1]} : vector<15x96xf32> to vector<15x8xf32>
    %251 = arith.truncf %250 : vector<15x8xf32> to vector<15x8xbf16>
    %252 = vector.extract_strided_slice %218 {offsets = [0, 72], sizes = [15, 8], strides = [1, 1]} : vector<15x96xf32> to vector<15x8xf32>
    %253 = arith.truncf %252 : vector<15x8xf32> to vector<15x8xbf16>
    %cst_101 = arith.constant dense<0.000000e+00> : vector<15x15xf32>
    %254 = tpu.matmul %249, %251, %cst_101 {dimension_numbers = #tpu.dot_dimension_numbers<[1], [1], [0], [0], [0, 0, 1, 0], [], []>} : vector<15x8xbf16>, vector<15x8xbf16>, vector<15x15xf32> -> vector<15x15xf32>
    %cst_102 = arith.constant dense<0xFF800000> : vector<15xf32>
    %255 = vector.multi_reduction <maximumf>, %254, %cst_102 [1] : vector<15x15xf32> to vector<15xf32>
    %256 = vector.shape_cast %255 : vector<15xf32> to vector<15x1xf32>
    %257 = vector.broadcast %256 : vector<15x1xf32> to vector<15x15xf32>
    %258 = arith.subf %254, %257 : vector<15x15xf32>
    %259 = math.exp %258 : vector<15x15xf32>
    %cst_103 = arith.constant dense<0.000000e+00> : vector<15xf32>
    %260 = vector.multi_reduction <add>, %259, %cst_103 [1] : vector<15x15xf32> to vector<15xf32>
    %261 = vector.shape_cast %260 : vector<15xf32> to vector<15x1xf32>
    %262 = tpu.reciprocal %261 {approx = true} : vector<15x1xf32> -> vector<15x1xf32>
    %263 = vector.broadcast %262 : vector<15x1xf32> to vector<15x15xf32>
    %264 = arith.mulf %259, %263 : vector<15x15xf32>
    %265 = arith.truncf %264 : vector<15x15xf32> to vector<15x15xbf16>
    %cst_104 = arith.constant dense<0.000000e+00> : vector<15x8xf32>
    %266 = tpu.matmul %265, %253, %cst_104 {dimension_numbers = #tpu.dot_dimension_numbers<[1], [0], [0], [1], [0, 0, 1, 1], [], []>} : vector<15x15xbf16>, vector<15x8xbf16>, vector<15x8xf32> -> vector<15x8xf32>
    %267 = arith.truncf %266 : vector<15x8xf32> to vector<15x8xbf16>
    %268 = vector.extract_strided_slice %220 {offsets = [8, 0], sizes = [8, 32], strides = [1, 1]} : vector<32x32xbf16> to vector<8x32xbf16>
    %cst_105 = arith.constant dense<0.000000e+00> : vector<15x32xf32>
    %269 = tpu.matmul %267, %268, %cst_105 {dimension_numbers = #tpu.dot_dimension_numbers<[1], [0], [0], [1], [0, 0, 1, 1], [], []>} : vector<15x8xbf16>, vector<8x32xbf16>, vector<15x32xf32> -> vector<15x32xf32>
    %270 = arith.addf %247, %269 : vector<15x32xf32>
    %271 = vector.extract_strided_slice %218 {offsets = [0, 16], sizes = [15, 8], strides = [1, 1]} : vector<15x96xf32> to vector<15x8xf32>
    %272 = arith.truncf %271 : vector<15x8xf32> to vector<15x8xbf16>
    %273 = vector.extract_strided_slice %218 {offsets = [0, 48], sizes = [15, 8], strides = [1, 1]} : vector<15x96xf32> to vector<15x8xf32>
    %274 = arith.truncf %273 : vector<15x8xf32> to vector<15x8xbf16>
    %275 = vector.extract_strided_slice %218 {offsets = [0, 80], sizes = [15, 8], strides = [1, 1]} : vector<15x96xf32> to vector<15x8xf32>
    %276 = arith.truncf %275 : vector<15x8xf32> to vector<15x8xbf16>
    %cst_106 = arith.constant dense<0.000000e+00> : vector<15x15xf32>
    %277 = tpu.matmul %272, %274, %cst_106 {dimension_numbers = #tpu.dot_dimension_numbers<[1], [1], [0], [0], [0, 0, 1, 0], [], []>} : vector<15x8xbf16>, vector<15x8xbf16>, vector<15x15xf32> -> vector<15x15xf32>
    %cst_107 = arith.constant dense<0xFF800000> : vector<15xf32>
    %278 = vector.multi_reduction <maximumf>, %277, %cst_107 [1] : vector<15x15xf32> to vector<15xf32>
    %279 = vector.shape_cast %278 : vector<15xf32> to vector<15x1xf32>
    %280 = vector.broadcast %279 : vector<15x1xf32> to vector<15x15xf32>
    %281 = arith.subf %277, %280 : vector<15x15xf32>
    %282 = math.exp %281 : vector<15x15xf32>
    %cst_108 = arith.constant dense<0.000000e+00> : vector<15xf32>
    %283 = vector.multi_reduction <add>, %282, %cst_108 [1] : vector<15x15xf32> to vector<15xf32>
    %284 = vector.shape_cast %283 : vector<15xf32> to vector<15x1xf32>
    %285 = tpu.reciprocal %284 {approx = true} : vector<15x1xf32> -> vector<15x1xf32>
    %286 = vector.broadcast %285 : vector<15x1xf32> to vector<15x15xf32>
    %287 = arith.mulf %282, %286 : vector<15x15xf32>
    %288 = arith.truncf %287 : vector<15x15xf32> to vector<15x15xbf16>
    %cst_109 = arith.constant dense<0.000000e+00> : vector<15x8xf32>
    %289 = tpu.matmul %288, %276, %cst_109 {dimension_numbers = #tpu.dot_dimension_numbers<[1], [0], [0], [1], [0, 0, 1, 1], [], []>} : vector<15x15xbf16>, vector<15x8xbf16>, vector<15x8xf32> -> vector<15x8xf32>
    %290 = arith.truncf %289 : vector<15x8xf32> to vector<15x8xbf16>
    %291 = vector.extract_strided_slice %220 {offsets = [16, 0], sizes = [8, 32], strides = [1, 1]} : vector<32x32xbf16> to vector<8x32xbf16>
    %cst_110 = arith.constant dense<0.000000e+00> : vector<15x32xf32>
    %292 = tpu.matmul %290, %291, %cst_110 {dimension_numbers = #tpu.dot_dimension_numbers<[1], [0], [0], [1], [0, 0, 1, 1], [], []>} : vector<15x8xbf16>, vector<8x32xbf16>, vector<15x32xf32> -> vector<15x32xf32>
    %293 = arith.addf %270, %292 : vector<15x32xf32>
    %294 = vector.extract_strided_slice %218 {offsets = [0, 24], sizes = [15, 8], strides = [1, 1]} : vector<15x96xf32> to vector<15x8xf32>
    %295 = arith.truncf %294 : vector<15x8xf32> to vector<15x8xbf16>
    %296 = vector.extract_strided_slice %218 {offsets = [0, 56], sizes = [15, 8], strides = [1, 1]} : vector<15x96xf32> to vector<15x8xf32>
    %297 = arith.truncf %296 : vector<15x8xf32> to vector<15x8xbf16>
    %298 = vector.extract_strided_slice %218 {offsets = [0, 88], sizes = [15, 8], strides = [1, 1]} : vector<15x96xf32> to vector<15x8xf32>
    %299 = arith.truncf %298 : vector<15x8xf32> to vector<15x8xbf16>
    %cst_111 = arith.constant dense<0.000000e+00> : vector<15x15xf32>
    %300 = tpu.matmul %295, %297, %cst_111 {dimension_numbers = #tpu.dot_dimension_numbers<[1], [1], [0], [0], [0, 0, 1, 0], [], []>} : vector<15x8xbf16>, vector<15x8xbf16>, vector<15x15xf32> -> vector<15x15xf32>
    %cst_112 = arith.constant dense<0xFF800000> : vector<15xf32>
    %301 = vector.multi_reduction <maximumf>, %300, %cst_112 [1] : vector<15x15xf32> to vector<15xf32>
    %302 = vector.shape_cast %301 : vector<15xf32> to vector<15x1xf32>
    %303 = vector.broadcast %302 : vector<15x1xf32> to vector<15x15xf32>
    %304 = arith.subf %300, %303 : vector<15x15xf32>
    %305 = math.exp %304 : vector<15x15xf32>
    %cst_113 = arith.constant dense<0.000000e+00> : vector<15xf32>
    %306 = vector.multi_reduction <add>, %305, %cst_113 [1] : vector<15x15xf32> to vector<15xf32>
    %307 = vector.shape_cast %306 : vector<15xf32> to vector<15x1xf32>
    %308 = tpu.reciprocal %307 {approx = true} : vector<15x1xf32> -> vector<15x1xf32>
    %309 = vector.broadcast %308 : vector<15x1xf32> to vector<15x15xf32>
    %310 = arith.mulf %305, %309 : vector<15x15xf32>
    %311 = arith.truncf %310 : vector<15x15xf32> to vector<15x15xbf16>
    %cst_114 = arith.constant dense<0.000000e+00> : vector<15x8xf32>
    %312 = tpu.matmul %311, %299, %cst_114 {dimension_numbers = #tpu.dot_dimension_numbers<[1], [0], [0], [1], [0, 0, 1, 1], [], []>} : vector<15x15xbf16>, vector<15x8xbf16>, vector<15x8xf32> -> vector<15x8xf32>
    %313 = arith.truncf %312 : vector<15x8xf32> to vector<15x8xbf16>
    %314 = vector.extract_strided_slice %220 {offsets = [24, 0], sizes = [8, 32], strides = [1, 1]} : vector<32x32xbf16> to vector<8x32xbf16>
    %cst_115 = arith.constant dense<0.000000e+00> : vector<15x32xf32>
    %315 = tpu.matmul %313, %314, %cst_115 {dimension_numbers = #tpu.dot_dimension_numbers<[1], [0], [0], [1], [0, 0, 1, 1], [], []>} : vector<15x8xbf16>, vector<8x32xbf16>, vector<15x32xf32> -> vector<15x32xf32>
    %316 = arith.addf %293, %315 : vector<15x32xf32>
    %c0_116 = arith.constant 0 : index
    %c0_117 = arith.constant 0 : index
    %c0_118 = arith.constant 0 : index
    %317 = vector.load %arg24[%c0_116, %c0_117, %c0_118] : memref<2x1x32xf32, #tpu.memory_space<vmem>>, vector<1x1x32xf32>
    %318 = vector.shape_cast %317 : vector<1x1x32xf32> to vector<1x32xf32>
    %c0_119 = arith.constant 0 : index
    %c0_120 = arith.constant 0 : index
    %c0_121 = arith.constant 0 : index
    %319 = vector.load %arg25[%c0_119, %c0_120, %c0_121] : memref<2x1x32xf32, #tpu.memory_space<vmem>>, vector<1x1x32xf32>
    %320 = vector.shape_cast %319 : vector<1x1x32xf32> to vector<1x32xf32>
    %cst_122 = arith.constant dense<0.000000e+00> : vector<15xf32>
    %321 = vector.multi_reduction <add>, %316, %cst_122 [1] : vector<15x32xf32> to vector<15xf32>
    %322 = vector.shape_cast %321 : vector<15xf32> to vector<15x1xf32>
    %cst_123 = arith.constant 3.200000e+01 : f32
    %323 = vector.broadcast %cst_123 : f32 to vector<15x1xf32>
    %324 = arith.divf %322, %323 : vector<15x1xf32>
    %325 = vector.broadcast %324 : vector<15x1xf32> to vector<15x32xf32>
    %326 = arith.subf %316, %325 : vector<15x32xf32>
    %327 = arith.mulf %326, %326 : vector<15x32xf32>
    %cst_124 = arith.constant dense<0.000000e+00> : vector<15xf32>
    %328 = vector.multi_reduction <add>, %327, %cst_124 [1] : vector<15x32xf32> to vector<15xf32>
    %329 = vector.shape_cast %328 : vector<15xf32> to vector<15x1xf32>
    %cst_125 = arith.constant 3.200000e+01 : f32
    %330 = vector.broadcast %cst_125 : f32 to vector<15x1xf32>
    %331 = arith.divf %329, %330 : vector<15x1xf32>
    %332 = vector.broadcast %324 : vector<15x1xf32> to vector<15x32xf32>
    %333 = arith.subf %316, %332 : vector<15x32xf32>
    %cst_126 = arith.constant 9.99999974E-6 : f32
    %334 = vector.broadcast %cst_126 : f32 to vector<15x1xf32>
    %335 = arith.addf %331, %334 : vector<15x1xf32>
    %336 = math.rsqrt %335 : vector<15x1xf32>
    %337 = vector.broadcast %336 : vector<15x1xf32> to vector<15x32xf32>
    %338 = arith.mulf %333, %337 : vector<15x32xf32>
    %339 = vector.broadcast %318 : vector<1x32xf32> to vector<15x32xf32>
    %340 = arith.mulf %338, %339 : vector<15x32xf32>
    %341 = vector.broadcast %320 : vector<1x32xf32> to vector<15x32xf32>
    %342 = arith.addf %340, %341 : vector<15x32xf32>
    %343 = arith.truncf %342 : vector<15x32xf32> to vector<15x32xbf16>
    %c0_127 = arith.constant 0 : index
    %c0_128 = arith.constant 0 : index
    %c0_129 = arith.constant 0 : index
    %344 = vector.load %arg26[%c0_127, %c0_128, %c0_129] : memref<2x32x64xbf16, #tpu.memory_space<vmem>>, vector<1x32x64xbf16>
    %345 = vector.shape_cast %344 : vector<1x32x64xbf16> to vector<32x64xbf16>
    %cst_130 = arith.constant dense<0.000000e+00> : vector<15x64xf32>
    %346 = tpu.matmul %343, %345, %cst_130 {dimension_numbers = #tpu.dot_dimension_numbers<[1], [0], [0], [1], [0, 0, 1, 1], [], []>} : vector<15x32xbf16>, vector<32x64xbf16>, vector<15x64xf32> -> vector<15x64xf32>
    %c0_131 = arith.constant 0 : index
    %c0_132 = arith.constant 0 : index
    %c0_133 = arith.constant 0 : index
    %347 = vector.load %arg27[%c0_131, %c0_132, %c0_133] : memref<2x1x64xf32, #tpu.memory_space<vmem>>, vector<1x1x64xf32>
    %348 = vector.shape_cast %347 : vector<1x1x64xf32> to vector<1x64xf32>
    %349 = vector.broadcast %348 : vector<1x64xf32> to vector<15x64xf32>
    %350 = arith.addf %346, %349 : vector<15x64xf32>
    %cst_134 = arith.constant 5.000000e-01 : f32
    %351 = vector.broadcast %cst_134 : f32 to vector<15x64xf32>
    %352 = arith.mulf %351, %350 : vector<15x64xf32>
    %cst_135 = arith.constant 4.471500e-02 : f32
    %353 = vector.broadcast %cst_135 : f32 to vector<15x64xf32>
    %354 = arith.mulf %353, %350 : vector<15x64xf32>
    %355 = arith.mulf %354, %350 : vector<15x64xf32>
    %356 = arith.mulf %355, %350 : vector<15x64xf32>
    %357 = arith.addf %350, %356 : vector<15x64xf32>
    %cst_136 = arith.constant 0.797884583 : f32
    %358 = vector.broadcast %cst_136 : f32 to vector<15x64xf32>
    %359 = arith.mulf %358, %357 : vector<15x64xf32>
    %360 = math.tanh %359 : vector<15x64xf32>
    %cst_137 = arith.constant 1.000000e+00 : f32
    %361 = vector.broadcast %cst_137 : f32 to vector<15x64xf32>
    %362 = arith.addf %361, %360 : vector<15x64xf32>
    %363 = arith.mulf %352, %362 : vector<15x64xf32>
    %364 = arith.truncf %363 : vector<15x64xf32> to vector<15x64xbf16>
    %c0_138 = arith.constant 0 : index
    %c0_139 = arith.constant 0 : index
    %c0_140 = arith.constant 0 : index
    %365 = vector.load %arg28[%c0_138, %c0_139, %c0_140] : memref<2x64x32xbf16, #tpu.memory_space<vmem>>, vector<1x64x32xbf16>
    %366 = vector.shape_cast %365 : vector<1x64x32xbf16> to vector<64x32xbf16>
    %cst_141 = arith.constant dense<0.000000e+00> : vector<15x32xf32>
    %367 = tpu.matmul %364, %366, %cst_141 {dimension_numbers = #tpu.dot_dimension_numbers<[1], [0], [0], [1], [0, 0, 1, 1], [], []>} : vector<15x64xbf16>, vector<64x32xbf16>, vector<15x32xf32> -> vector<15x32xf32>
    %c0_142 = arith.constant 0 : index
    %c0_143 = arith.constant 0 : index
    %c0_144 = arith.constant 0 : index
    %368 = vector.load %arg29[%c0_142, %c0_143, %c0_144] : memref<2x1x32xf32, #tpu.memory_space<vmem>>, vector<1x1x32xf32>
    %369 = vector.shape_cast %368 : vector<1x1x32xf32> to vector<1x32xf32>
    %370 = vector.broadcast %369 : vector<1x32xf32> to vector<15x32xf32>
    %371 = arith.addf %367, %370 : vector<15x32xf32>
    %372 = arith.addf %316, %371 : vector<15x32xf32>
    %c1 = arith.constant 1 : index
    %c0_145 = arith.constant 0 : index
    %c0_146 = arith.constant 0 : index
    %373 = vector.load %arg18[%c1, %c0_145, %c0_146] : memref<2x1x32xf32, #tpu.memory_space<vmem>>, vector<1x1x32xf32>
    %374 = vector.shape_cast %373 : vector<1x1x32xf32> to vector<1x32xf32>
    %c1_147 = arith.constant 1 : index
    %c0_148 = arith.constant 0 : index
    %c0_149 = arith.constant 0 : index
    %375 = vector.load %arg19[%c1_147, %c0_148, %c0_149] : memref<2x1x32xf32, #tpu.memory_space<vmem>>, vector<1x1x32xf32>
    %376 = vector.shape_cast %375 : vector<1x1x32xf32> to vector<1x32xf32>
    %cst_150 = arith.constant dense<0.000000e+00> : vector<15xf32>
    %377 = vector.multi_reduction <add>, %372, %cst_150 [1] : vector<15x32xf32> to vector<15xf32>
    %378 = vector.shape_cast %377 : vector<15xf32> to vector<15x1xf32>
    %cst_151 = arith.constant 3.200000e+01 : f32
    %379 = vector.broadcast %cst_151 : f32 to vector<15x1xf32>
    %380 = arith.divf %378, %379 : vector<15x1xf32>
    %381 = vector.broadcast %380 : vector<15x1xf32> to vector<15x32xf32>
    %382 = arith.subf %372, %381 : vector<15x32xf32>
    %383 = arith.mulf %382, %382 : vector<15x32xf32>
    %cst_152 = arith.constant dense<0.000000e+00> : vector<15xf32>
    %384 = vector.multi_reduction <add>, %383, %cst_152 [1] : vector<15x32xf32> to vector<15xf32>
    %385 = vector.shape_cast %384 : vector<15xf32> to vector<15x1xf32>
    %cst_153 = arith.constant 3.200000e+01 : f32
    %386 = vector.broadcast %cst_153 : f32 to vector<15x1xf32>
    %387 = arith.divf %385, %386 : vector<15x1xf32>
    %388 = vector.broadcast %380 : vector<15x1xf32> to vector<15x32xf32>
    %389 = arith.subf %372, %388 : vector<15x32xf32>
    %cst_154 = arith.constant 9.99999974E-6 : f32
    %390 = vector.broadcast %cst_154 : f32 to vector<15x1xf32>
    %391 = arith.addf %387, %390 : vector<15x1xf32>
    %392 = math.rsqrt %391 : vector<15x1xf32>
    %393 = vector.broadcast %392 : vector<15x1xf32> to vector<15x32xf32>
    %394 = arith.mulf %389, %393 : vector<15x32xf32>
    %395 = vector.broadcast %374 : vector<1x32xf32> to vector<15x32xf32>
    %396 = arith.mulf %394, %395 : vector<15x32xf32>
    %397 = vector.broadcast %376 : vector<1x32xf32> to vector<15x32xf32>
    %398 = arith.addf %396, %397 : vector<15x32xf32>
    %399 = arith.truncf %398 : vector<15x32xf32> to vector<15x32xbf16>
    %c1_155 = arith.constant 1 : index
    %c0_156 = arith.constant 0 : index
    %c0_157 = arith.constant 0 : index
    %400 = vector.load %arg20[%c1_155, %c0_156, %c0_157] : memref<2x32x96xbf16, #tpu.memory_space<vmem>>, vector<1x32x96xbf16>
    %401 = vector.shape_cast %400 : vector<1x32x96xbf16> to vector<32x96xbf16>
    %cst_158 = arith.constant dense<0.000000e+00> : vector<15x96xf32>
    %402 = tpu.matmul %399, %401, %cst_158 {dimension_numbers = #tpu.dot_dimension_numbers<[1], [0], [0], [1], [0, 0, 1, 1], [], []>} : vector<15x32xbf16>, vector<32x96xbf16>, vector<15x96xf32> -> vector<15x96xf32>
    %c1_159 = arith.constant 1 : index
    %c0_160 = arith.constant 0 : index
    %c0_161 = arith.constant 0 : index
    %403 = vector.load %arg21[%c1_159, %c0_160, %c0_161] : memref<2x1x96xf32, #tpu.memory_space<vmem>>, vector<1x1x96xf32>
    %404 = vector.shape_cast %403 : vector<1x1x96xf32> to vector<1x96xf32>
    %405 = vector.broadcast %404 : vector<1x96xf32> to vector<15x96xf32>
    %406 = arith.addf %402, %405 : vector<15x96xf32>
    %c1_162 = arith.constant 1 : index
    %c0_163 = arith.constant 0 : index
    %c0_164 = arith.constant 0 : index
    %407 = vector.load %arg22[%c1_162, %c0_163, %c0_164] : memref<2x32x32xbf16, #tpu.memory_space<vmem>>, vector<1x32x32xbf16>
    %408 = vector.shape_cast %407 : vector<1x32x32xbf16> to vector<32x32xbf16>
    %c1_165 = arith.constant 1 : index
    %c0_166 = arith.constant 0 : index
    %c0_167 = arith.constant 0 : index
    %409 = vector.load %arg23[%c1_165, %c0_166, %c0_167] : memref<2x1x32xf32, #tpu.memory_space<vmem>>, vector<1x1x32xf32>
    %410 = vector.shape_cast %409 : vector<1x1x32xf32> to vector<1x32xf32>
    %411 = vector.broadcast %410 : vector<1x32xf32> to vector<15x32xf32>
    %412 = arith.addf %372, %411 : vector<15x32xf32>
    %413 = vector.extract_strided_slice %406 {offsets = [0, 0], sizes = [15, 8], strides = [1, 1]} : vector<15x96xf32> to vector<15x8xf32>
    %414 = arith.truncf %413 : vector<15x8xf32> to vector<15x8xbf16>
    %415 = vector.extract_strided_slice %406 {offsets = [0, 32], sizes = [15, 8], strides = [1, 1]} : vector<15x96xf32> to vector<15x8xf32>
    %416 = arith.truncf %415 : vector<15x8xf32> to vector<15x8xbf16>
    %417 = vector.extract_strided_slice %406 {offsets = [0, 64], sizes = [15, 8], strides = [1, 1]} : vector<15x96xf32> to vector<15x8xf32>
    %418 = arith.truncf %417 : vector<15x8xf32> to vector<15x8xbf16>
    %cst_168 = arith.constant dense<0.000000e+00> : vector<15x15xf32>
    %419 = tpu.matmul %414, %416, %cst_168 {dimension_numbers = #tpu.dot_dimension_numbers<[1], [1], [0], [0], [0, 0, 1, 0], [], []>} : vector<15x8xbf16>, vector<15x8xbf16>, vector<15x15xf32> -> vector<15x15xf32>
    %cst_169 = arith.constant dense<0xFF800000> : vector<15xf32>
    %420 = vector.multi_reduction <maximumf>, %419, %cst_169 [1] : vector<15x15xf32> to vector<15xf32>
    %421 = vector.shape_cast %420 : vector<15xf32> to vector<15x1xf32>
    %422 = vector.broadcast %421 : vector<15x1xf32> to vector<15x15xf32>
    %423 = arith.subf %419, %422 : vector<15x15xf32>
    %424 = math.exp %423 : vector<15x15xf32>
    %cst_170 = arith.constant dense<0.000000e+00> : vector<15xf32>
    %425 = vector.multi_reduction <add>, %424, %cst_170 [1] : vector<15x15xf32> to vector<15xf32>
    %426 = vector.shape_cast %425 : vector<15xf32> to vector<15x1xf32>
    %427 = tpu.reciprocal %426 {approx = true} : vector<15x1xf32> -> vector<15x1xf32>
    %428 = vector.broadcast %427 : vector<15x1xf32> to vector<15x15xf32>
    %429 = arith.mulf %424, %428 : vector<15x15xf32>
    %430 = arith.truncf %429 : vector<15x15xf32> to vector<15x15xbf16>
    %cst_171 = arith.constant dense<0.000000e+00> : vector<15x8xf32>
    %431 = tpu.matmul %430, %418, %cst_171 {dimension_numbers = #tpu.dot_dimension_numbers<[1], [0], [0], [1], [0, 0, 1, 1], [], []>} : vector<15x15xbf16>, vector<15x8xbf16>, vector<15x8xf32> -> vector<15x8xf32>
    %432 = arith.truncf %431 : vector<15x8xf32> to vector<15x8xbf16>
    %433 = vector.extract_strided_slice %408 {offsets = [0, 0], sizes = [8, 32], strides = [1, 1]} : vector<32x32xbf16> to vector<8x32xbf16>
    %cst_172 = arith.constant dense<0.000000e+00> : vector<15x32xf32>
    %434 = tpu.matmul %432, %433, %cst_172 {dimension_numbers = #tpu.dot_dimension_numbers<[1], [0], [0], [1], [0, 0, 1, 1], [], []>} : vector<15x8xbf16>, vector<8x32xbf16>, vector<15x32xf32> -> vector<15x32xf32>
    %435 = arith.addf %412, %434 : vector<15x32xf32>
    %436 = vector.extract_strided_slice %406 {offsets = [0, 8], sizes = [15, 8], strides = [1, 1]} : vector<15x96xf32> to vector<15x8xf32>
    %437 = arith.truncf %436 : vector<15x8xf32> to vector<15x8xbf16>
    %438 = vector.extract_strided_slice %406 {offsets = [0, 40], sizes = [15, 8], strides = [1, 1]} : vector<15x96xf32> to vector<15x8xf32>
    %439 = arith.truncf %438 : vector<15x8xf32> to vector<15x8xbf16>
    %440 = vector.extract_strided_slice %406 {offsets = [0, 72], sizes = [15, 8], strides = [1, 1]} : vector<15x96xf32> to vector<15x8xf32>
    %441 = arith.truncf %440 : vector<15x8xf32> to vector<15x8xbf16>
    %cst_173 = arith.constant dense<0.000000e+00> : vector<15x15xf32>
    %442 = tpu.matmul %437, %439, %cst_173 {dimension_numbers = #tpu.dot_dimension_numbers<[1], [1], [0], [0], [0, 0, 1, 0], [], []>} : vector<15x8xbf16>, vector<15x8xbf16>, vector<15x15xf32> -> vector<15x15xf32>
    %cst_174 = arith.constant dense<0xFF800000> : vector<15xf32>
    %443 = vector.multi_reduction <maximumf>, %442, %cst_174 [1] : vector<15x15xf32> to vector<15xf32>
    %444 = vector.shape_cast %443 : vector<15xf32> to vector<15x1xf32>
    %445 = vector.broadcast %444 : vector<15x1xf32> to vector<15x15xf32>
    %446 = arith.subf %442, %445 : vector<15x15xf32>
    %447 = math.exp %446 : vector<15x15xf32>
    %cst_175 = arith.constant dense<0.000000e+00> : vector<15xf32>
    %448 = vector.multi_reduction <add>, %447, %cst_175 [1] : vector<15x15xf32> to vector<15xf32>
    %449 = vector.shape_cast %448 : vector<15xf32> to vector<15x1xf32>
    %450 = tpu.reciprocal %449 {approx = true} : vector<15x1xf32> -> vector<15x1xf32>
    %451 = vector.broadcast %450 : vector<15x1xf32> to vector<15x15xf32>
    %452 = arith.mulf %447, %451 : vector<15x15xf32>
    %453 = arith.truncf %452 : vector<15x15xf32> to vector<15x15xbf16>
    %cst_176 = arith.constant dense<0.000000e+00> : vector<15x8xf32>
    %454 = tpu.matmul %453, %441, %cst_176 {dimension_numbers = #tpu.dot_dimension_numbers<[1], [0], [0], [1], [0, 0, 1, 1], [], []>} : vector<15x15xbf16>, vector<15x8xbf16>, vector<15x8xf32> -> vector<15x8xf32>
    %455 = arith.truncf %454 : vector<15x8xf32> to vector<15x8xbf16>
    %456 = vector.extract_strided_slice %408 {offsets = [8, 0], sizes = [8, 32], strides = [1, 1]} : vector<32x32xbf16> to vector<8x32xbf16>
    %cst_177 = arith.constant dense<0.000000e+00> : vector<15x32xf32>
    %457 = tpu.matmul %455, %456, %cst_177 {dimension_numbers = #tpu.dot_dimension_numbers<[1], [0], [0], [1], [0, 0, 1, 1], [], []>} : vector<15x8xbf16>, vector<8x32xbf16>, vector<15x32xf32> -> vector<15x32xf32>
    %458 = arith.addf %435, %457 : vector<15x32xf32>
    %459 = vector.extract_strided_slice %406 {offsets = [0, 16], sizes = [15, 8], strides = [1, 1]} : vector<15x96xf32> to vector<15x8xf32>
    %460 = arith.truncf %459 : vector<15x8xf32> to vector<15x8xbf16>
    %461 = vector.extract_strided_slice %406 {offsets = [0, 48], sizes = [15, 8], strides = [1, 1]} : vector<15x96xf32> to vector<15x8xf32>
    %462 = arith.truncf %461 : vector<15x8xf32> to vector<15x8xbf16>
    %463 = vector.extract_strided_slice %406 {offsets = [0, 80], sizes = [15, 8], strides = [1, 1]} : vector<15x96xf32> to vector<15x8xf32>
    %464 = arith.truncf %463 : vector<15x8xf32> to vector<15x8xbf16>
    %cst_178 = arith.constant dense<0.000000e+00> : vector<15x15xf32>
    %465 = tpu.matmul %460, %462, %cst_178 {dimension_numbers = #tpu.dot_dimension_numbers<[1], [1], [0], [0], [0, 0, 1, 0], [], []>} : vector<15x8xbf16>, vector<15x8xbf16>, vector<15x15xf32> -> vector<15x15xf32>
    %cst_179 = arith.constant dense<0xFF800000> : vector<15xf32>
    %466 = vector.multi_reduction <maximumf>, %465, %cst_179 [1] : vector<15x15xf32> to vector<15xf32>
    %467 = vector.shape_cast %466 : vector<15xf32> to vector<15x1xf32>
    %468 = vector.broadcast %467 : vector<15x1xf32> to vector<15x15xf32>
    %469 = arith.subf %465, %468 : vector<15x15xf32>
    %470 = math.exp %469 : vector<15x15xf32>
    %cst_180 = arith.constant dense<0.000000e+00> : vector<15xf32>
    %471 = vector.multi_reduction <add>, %470, %cst_180 [1] : vector<15x15xf32> to vector<15xf32>
    %472 = vector.shape_cast %471 : vector<15xf32> to vector<15x1xf32>
    %473 = tpu.reciprocal %472 {approx = true} : vector<15x1xf32> -> vector<15x1xf32>
    %474 = vector.broadcast %473 : vector<15x1xf32> to vector<15x15xf32>
    %475 = arith.mulf %470, %474 : vector<15x15xf32>
    %476 = arith.truncf %475 : vector<15x15xf32> to vector<15x15xbf16>
    %cst_181 = arith.constant dense<0.000000e+00> : vector<15x8xf32>
    %477 = tpu.matmul %476, %464, %cst_181 {dimension_numbers = #tpu.dot_dimension_numbers<[1], [0], [0], [1], [0, 0, 1, 1], [], []>} : vector<15x15xbf16>, vector<15x8xbf16>, vector<15x8xf32> -> vector<15x8xf32>
    %478 = arith.truncf %477 : vector<15x8xf32> to vector<15x8xbf16>
    %479 = vector.extract_strided_slice %408 {offsets = [16, 0], sizes = [8, 32], strides = [1, 1]} : vector<32x32xbf16> to vector<8x32xbf16>
    %cst_182 = arith.constant dense<0.000000e+00> : vector<15x32xf32>
    %480 = tpu.matmul %478, %479, %cst_182 {dimension_numbers = #tpu.dot_dimension_numbers<[1], [0], [0], [1], [0, 0, 1, 1], [], []>} : vector<15x8xbf16>, vector<8x32xbf16>, vector<15x32xf32> -> vector<15x32xf32>
    %481 = arith.addf %458, %480 : vector<15x32xf32>
    %482 = vector.extract_strided_slice %406 {offsets = [0, 24], sizes = [15, 8], strides = [1, 1]} : vector<15x96xf32> to vector<15x8xf32>
    %483 = arith.truncf %482 : vector<15x8xf32> to vector<15x8xbf16>
    %484 = vector.extract_strided_slice %406 {offsets = [0, 56], sizes = [15, 8], strides = [1, 1]} : vector<15x96xf32> to vector<15x8xf32>
    %485 = arith.truncf %484 : vector<15x8xf32> to vector<15x8xbf16>
    %486 = vector.extract_strided_slice %406 {offsets = [0, 88], sizes = [15, 8], strides = [1, 1]} : vector<15x96xf32> to vector<15x8xf32>
    %487 = arith.truncf %486 : vector<15x8xf32> to vector<15x8xbf16>
    %cst_183 = arith.constant dense<0.000000e+00> : vector<15x15xf32>
    %488 = tpu.matmul %483, %485, %cst_183 {dimension_numbers = #tpu.dot_dimension_numbers<[1], [1], [0], [0], [0, 0, 1, 0], [], []>} : vector<15x8xbf16>, vector<15x8xbf16>, vector<15x15xf32> -> vector<15x15xf32>
    %cst_184 = arith.constant dense<0xFF800000> : vector<15xf32>
    %489 = vector.multi_reduction <maximumf>, %488, %cst_184 [1] : vector<15x15xf32> to vector<15xf32>
    %490 = vector.shape_cast %489 : vector<15xf32> to vector<15x1xf32>
    %491 = vector.broadcast %490 : vector<15x1xf32> to vector<15x15xf32>
    %492 = arith.subf %488, %491 : vector<15x15xf32>
    %493 = math.exp %492 : vector<15x15xf32>
    %cst_185 = arith.constant dense<0.000000e+00> : vector<15xf32>
    %494 = vector.multi_reduction <add>, %493, %cst_185 [1] : vector<15x15xf32> to vector<15xf32>
    %495 = vector.shape_cast %494 : vector<15xf32> to vector<15x1xf32>
    %496 = tpu.reciprocal %495 {approx = true} : vector<15x1xf32> -> vector<15x1xf32>
    %497 = vector.broadcast %496 : vector<15x1xf32> to vector<15x15xf32>
    %498 = arith.mulf %493, %497 : vector<15x15xf32>
    %499 = arith.truncf %498 : vector<15x15xf32> to vector<15x15xbf16>
    %cst_186 = arith.constant dense<0.000000e+00> : vector<15x8xf32>
    %500 = tpu.matmul %499, %487, %cst_186 {dimension_numbers = #tpu.dot_dimension_numbers<[1], [0], [0], [1], [0, 0, 1, 1], [], []>} : vector<15x15xbf16>, vector<15x8xbf16>, vector<15x8xf32> -> vector<15x8xf32>
    %501 = arith.truncf %500 : vector<15x8xf32> to vector<15x8xbf16>
    %502 = vector.extract_strided_slice %408 {offsets = [24, 0], sizes = [8, 32], strides = [1, 1]} : vector<32x32xbf16> to vector<8x32xbf16>
    %cst_187 = arith.constant dense<0.000000e+00> : vector<15x32xf32>
    %503 = tpu.matmul %501, %502, %cst_187 {dimension_numbers = #tpu.dot_dimension_numbers<[1], [0], [0], [1], [0, 0, 1, 1], [], []>} : vector<15x8xbf16>, vector<8x32xbf16>, vector<15x32xf32> -> vector<15x32xf32>
    %504 = arith.addf %481, %503 : vector<15x32xf32>
    %c1_188 = arith.constant 1 : index
    %c0_189 = arith.constant 0 : index
    %c0_190 = arith.constant 0 : index
    %505 = vector.load %arg24[%c1_188, %c0_189, %c0_190] : memref<2x1x32xf32, #tpu.memory_space<vmem>>, vector<1x1x32xf32>
    %506 = vector.shape_cast %505 : vector<1x1x32xf32> to vector<1x32xf32>
    %c1_191 = arith.constant 1 : index
    %c0_192 = arith.constant 0 : index
    %c0_193 = arith.constant 0 : index
    %507 = vector.load %arg25[%c1_191, %c0_192, %c0_193] : memref<2x1x32xf32, #tpu.memory_space<vmem>>, vector<1x1x32xf32>
    %508 = vector.shape_cast %507 : vector<1x1x32xf32> to vector<1x32xf32>
    %cst_194 = arith.constant dense<0.000000e+00> : vector<15xf32>
    %509 = vector.multi_reduction <add>, %504, %cst_194 [1] : vector<15x32xf32> to vector<15xf32>
    %510 = vector.shape_cast %509 : vector<15xf32> to vector<15x1xf32>
    %cst_195 = arith.constant 3.200000e+01 : f32
    %511 = vector.broadcast %cst_195 : f32 to vector<15x1xf32>
    %512 = arith.divf %510, %511 : vector<15x1xf32>
    %513 = vector.broadcast %512 : vector<15x1xf32> to vector<15x32xf32>
    %514 = arith.subf %504, %513 : vector<15x32xf32>
    %515 = arith.mulf %514, %514 : vector<15x32xf32>
    %cst_196 = arith.constant dense<0.000000e+00> : vector<15xf32>
    %516 = vector.multi_reduction <add>, %515, %cst_196 [1] : vector<15x32xf32> to vector<15xf32>
    %517 = vector.shape_cast %516 : vector<15xf32> to vector<15x1xf32>
    %cst_197 = arith.constant 3.200000e+01 : f32
    %518 = vector.broadcast %cst_197 : f32 to vector<15x1xf32>
    %519 = arith.divf %517, %518 : vector<15x1xf32>
    %520 = vector.broadcast %512 : vector<15x1xf32> to vector<15x32xf32>
    %521 = arith.subf %504, %520 : vector<15x32xf32>
    %cst_198 = arith.constant 9.99999974E-6 : f32
    %522 = vector.broadcast %cst_198 : f32 to vector<15x1xf32>
    %523 = arith.addf %519, %522 : vector<15x1xf32>
    %524 = math.rsqrt %523 : vector<15x1xf32>
    %525 = vector.broadcast %524 : vector<15x1xf32> to vector<15x32xf32>
    %526 = arith.mulf %521, %525 : vector<15x32xf32>
    %527 = vector.broadcast %506 : vector<1x32xf32> to vector<15x32xf32>
    %528 = arith.mulf %526, %527 : vector<15x32xf32>
    %529 = vector.broadcast %508 : vector<1x32xf32> to vector<15x32xf32>
    %530 = arith.addf %528, %529 : vector<15x32xf32>
    %531 = arith.truncf %530 : vector<15x32xf32> to vector<15x32xbf16>
    %c1_199 = arith.constant 1 : index
    %c0_200 = arith.constant 0 : index
    %c0_201 = arith.constant 0 : index
    %532 = vector.load %arg26[%c1_199, %c0_200, %c0_201] : memref<2x32x64xbf16, #tpu.memory_space<vmem>>, vector<1x32x64xbf16>
    %533 = vector.shape_cast %532 : vector<1x32x64xbf16> to vector<32x64xbf16>
    %cst_202 = arith.constant dense<0.000000e+00> : vector<15x64xf32>
    %534 = tpu.matmul %531, %533, %cst_202 {dimension_numbers = #tpu.dot_dimension_numbers<[1], [0], [0], [1], [0, 0, 1, 1], [], []>} : vector<15x32xbf16>, vector<32x64xbf16>, vector<15x64xf32> -> vector<15x64xf32>
    %c1_203 = arith.constant 1 : index
    %c0_204 = arith.constant 0 : index
    %c0_205 = arith.constant 0 : index
    %535 = vector.load %arg27[%c1_203, %c0_204, %c0_205] : memref<2x1x64xf32, #tpu.memory_space<vmem>>, vector<1x1x64xf32>
    %536 = vector.shape_cast %535 : vector<1x1x64xf32> to vector<1x64xf32>
    %537 = vector.broadcast %536 : vector<1x64xf32> to vector<15x64xf32>
    %538 = arith.addf %534, %537 : vector<15x64xf32>
    %cst_206 = arith.constant 5.000000e-01 : f32
    %539 = vector.broadcast %cst_206 : f32 to vector<15x64xf32>
    %540 = arith.mulf %539, %538 : vector<15x64xf32>
    %cst_207 = arith.constant 4.471500e-02 : f32
    %541 = vector.broadcast %cst_207 : f32 to vector<15x64xf32>
    %542 = arith.mulf %541, %538 : vector<15x64xf32>
    %543 = arith.mulf %542, %538 : vector<15x64xf32>
    %544 = arith.mulf %543, %538 : vector<15x64xf32>
    %545 = arith.addf %538, %544 : vector<15x64xf32>
    %cst_208 = arith.constant 0.797884583 : f32
    %546 = vector.broadcast %cst_208 : f32 to vector<15x64xf32>
    %547 = arith.mulf %546, %545 : vector<15x64xf32>
    %548 = math.tanh %547 : vector<15x64xf32>
    %cst_209 = arith.constant 1.000000e+00 : f32
    %549 = vector.broadcast %cst_209 : f32 to vector<15x64xf32>
    %550 = arith.addf %549, %548 : vector<15x64xf32>
    %551 = arith.mulf %540, %550 : vector<15x64xf32>
    %552 = arith.truncf %551 : vector<15x64xf32> to vector<15x64xbf16>
    %c1_210 = arith.constant 1 : index
    %c0_211 = arith.constant 0 : index
    %c0_212 = arith.constant 0 : index
    %553 = vector.load %arg28[%c1_210, %c0_211, %c0_212] : memref<2x64x32xbf16, #tpu.memory_space<vmem>>, vector<1x64x32xbf16>
    %554 = vector.shape_cast %553 : vector<1x64x32xbf16> to vector<64x32xbf16>
    %cst_213 = arith.constant dense<0.000000e+00> : vector<15x32xf32>
    %555 = tpu.matmul %552, %554, %cst_213 {dimension_numbers = #tpu.dot_dimension_numbers<[1], [0], [0], [1], [0, 0, 1, 1], [], []>} : vector<15x64xbf16>, vector<64x32xbf16>, vector<15x32xf32> -> vector<15x32xf32>
    %c1_214 = arith.constant 1 : index
    %c0_215 = arith.constant 0 : index
    %c0_216 = arith.constant 0 : index
    %556 = vector.load %arg29[%c1_214, %c0_215, %c0_216] : memref<2x1x32xf32, #tpu.memory_space<vmem>>, vector<1x1x32xf32>
    %557 = vector.shape_cast %556 : vector<1x1x32xf32> to vector<1x32xf32>
    %558 = vector.broadcast %557 : vector<1x32xf32> to vector<15x32xf32>
    %559 = arith.addf %555, %558 : vector<15x32xf32>
    %560 = arith.addf %504, %559 : vector<15x32xf32>
    %c0_217 = arith.constant 0 : index
    %c0_218 = arith.constant 0 : index
    %561 = vector.load %arg30[%c0_217, %c0_218] : memref<1x32xf32, #tpu.memory_space<vmem>>, vector<1x32xf32>
    %c0_219 = arith.constant 0 : index
    %c0_220 = arith.constant 0 : index
    %562 = vector.load %arg31[%c0_219, %c0_220] : memref<1x32xf32, #tpu.memory_space<vmem>>, vector<1x32xf32>
    %cst_221 = arith.constant dense<0.000000e+00> : vector<15xf32>
    %563 = vector.multi_reduction <add>, %560, %cst_221 [1] : vector<15x32xf32> to vector<15xf32>
    %564 = vector.shape_cast %563 : vector<15xf32> to vector<15x1xf32>
    %cst_222 = arith.constant 3.200000e+01 : f32
    %565 = vector.broadcast %cst_222 : f32 to vector<15x1xf32>
    %566 = arith.divf %564, %565 : vector<15x1xf32>
    %567 = vector.broadcast %566 : vector<15x1xf32> to vector<15x32xf32>
    %568 = arith.subf %560, %567 : vector<15x32xf32>
    %569 = arith.mulf %568, %568 : vector<15x32xf32>
    %cst_223 = arith.constant dense<0.000000e+00> : vector<15xf32>
    %570 = vector.multi_reduction <add>, %569, %cst_223 [1] : vector<15x32xf32> to vector<15xf32>
    %571 = vector.shape_cast %570 : vector<15xf32> to vector<15x1xf32>
    %cst_224 = arith.constant 3.200000e+01 : f32
    %572 = vector.broadcast %cst_224 : f32 to vector<15x1xf32>
    %573 = arith.divf %571, %572 : vector<15x1xf32>
    %574 = vector.broadcast %566 : vector<15x1xf32> to vector<15x32xf32>
    %575 = arith.subf %560, %574 : vector<15x32xf32>
    %cst_225 = arith.constant 9.99999974E-6 : f32
    %576 = vector.broadcast %cst_225 : f32 to vector<15x1xf32>
    %577 = arith.addf %573, %576 : vector<15x1xf32>
    %578 = math.rsqrt %577 : vector<15x1xf32>
    %579 = vector.broadcast %578 : vector<15x1xf32> to vector<15x32xf32>
    %580 = arith.mulf %575, %579 : vector<15x32xf32>
    %581 = vector.broadcast %561 : vector<1x32xf32> to vector<15x32xf32>
    %582 = arith.mulf %580, %581 : vector<15x32xf32>
    %583 = vector.broadcast %562 : vector<1x32xf32> to vector<15x32xf32>
    %584 = arith.addf %582, %583 : vector<15x32xf32>
    %cst_226 = arith.constant dense<0.000000e+00> : vector<32xf32>
    %585 = vector.multi_reduction <add>, %584, %cst_226 [0] : vector<15x32xf32> to vector<32xf32>
    %586 = vector.shape_cast %585 : vector<32xf32> to vector<1x32xf32>
    %cst_227 = arith.constant 1.500000e+01 : f32
    %587 = vector.broadcast %cst_227 : f32 to vector<1x32xf32>
    %588 = arith.divf %586, %587 : vector<1x32xf32>
    %589 = arith.truncf %588 : vector<1x32xf32> to vector<1x32xbf16>
    %c0_228 = arith.constant 0 : index
    %c0_229 = arith.constant 0 : index
    %590 = vector.load %arg32[%c0_228, %c0_229] : memref<32x256xbf16, #tpu.memory_space<vmem>>, vector<32x256xbf16>
    %cst_230 = arith.constant dense<0.000000e+00> : vector<1x256xf32>
    %591 = tpu.matmul %589, %590, %cst_230 {dimension_numbers = #tpu.dot_dimension_numbers<[1], [0], [0], [1], [0, 0, 1, 1], [], []>} : vector<1x32xbf16>, vector<32x256xbf16>, vector<1x256xf32> -> vector<1x256xf32>
    %c0_231 = arith.constant 0 : index
    %c0_232 = arith.constant 0 : index
    %592 = vector.load %arg33[%c0_231, %c0_232] : memref<1x256xf32, #tpu.memory_space<vmem>>, vector<1x256xf32>
    %593 = arith.addf %591, %592 : vector<1x256xf32>
    %594 = arith.truncf %593 : vector<1x256xf32> to vector<1x256xbf16>
    %c0_233 = arith.constant 0 : index
    %c0_234 = arith.constant 0 : index
    %595 = vector.load %arg34[%c0_233, %c0_234] : memref<256x6xbf16, #tpu.memory_space<vmem>>, vector<256x6xbf16>
    %cst_235 = arith.constant dense<0.000000e+00> : vector<1x6xf32>
    %596 = tpu.matmul %594, %595, %cst_235 {dimension_numbers = #tpu.dot_dimension_numbers<[1], [0], [0], [1], [0, 0, 1, 1], [], []>} : vector<1x256xbf16>, vector<256x6xbf16>, vector<1x6xf32> -> vector<1x6xf32>
    %c0_236 = arith.constant 0 : index
    %c0_237 = arith.constant 0 : index
    %597 = vector.load %arg35[%c0_236, %c0_237] : memref<1x6xf32, #tpu.memory_space<vmem>>, vector<1x6xf32>
    %598 = arith.addf %596, %597 : vector<1x6xf32>
    %c0_238 = arith.constant 0 : index
    %c0_239 = arith.constant 0 : index
    %c0_240 = arith.constant 0 : index
    %599 = vector.load %arg36[%c0_238, %c0_239, %c0_240] : memref<1x1x6xf32, #tpu.memory_space<vmem>>, vector<1x1x6xf32>
    %600 = vector.shape_cast %599 : vector<1x1x6xf32> to vector<1x6xf32>
    %601 = vector.shape_cast %598 : vector<1x6xf32> to vector<1x1x6xf32>
    tpu.vector_store %arg36[%c0_238, %c0_239, %c0_240], %601 {strides = array<i32>} : memref<1x1x6xf32, #tpu.memory_space<vmem>>, vector<1x1x6xf32>,
    return
  }
  func.func @transform_0(%arg0: i32) -> (i32, i32, i32) {
    %c0_i32 = arith.constant 0 : i32
    %c0_i32_0 = arith.constant 0 : i32
    %c0_i32_1 = arith.constant 0 : i32
    return %arg0, %c0_i32, %c0_i32_0 : i32, i32, i32
  }
  func.func @transform_1(%arg0: i32) -> (i32, i32) {
    %c0_i32 = arith.constant 0 : i32
    %c0_i32_0 = arith.constant 0 : i32
    %c0_i32_1 = arith.constant 0 : i32
    return %c0_i32, %c0_i32_0 : i32, i32
  }
  func.func @transform_2(%arg0: i32) -> (i32, i32) {
    %c0_i32 = arith.constant 0 : i32
    %c0_i32_0 = arith.constant 0 : i32
    %c0_i32_1 = arith.constant 0 : i32
    return %c0_i32, %c0_i32_0 : i32, i32
  }
  func.func @transform_3(%arg0: i32) -> (i32, i32) {
    %c0_i32 = arith.constant 0 : i32
    %c0_i32_0 = arith.constant 0 : i32
    %c0_i32_1 = arith.constant 0 : i32
    return %c0_i32, %c0_i32_0 : i32, i32
  }
  func.func @transform_4(%arg0: i32) -> (i32, i32) {
    %c0_i32 = arith.constant 0 : i32
    %c0_i32_0 = arith.constant 0 : i32
    %c0_i32_1 = arith.constant 0 : i32
    return %c0_i32, %c0_i32_0 : i32, i32
  }
  func.func @transform_5(%arg0: i32) -> (i32, i32) {
    %c0_i32 = arith.constant 0 : i32
    %c0_i32_0 = arith.constant 0 : i32
    %c0_i32_1 = arith.constant 0 : i32
    return %c0_i32, %c0_i32_0 : i32, i32
  }
  func.func @transform_6(%arg0: i32) -> (i32, i32) {
    %c0_i32 = arith.constant 0 : i32
    %c0_i32_0 = arith.constant 0 : i32
    %c0_i32_1 = arith.constant 0 : i32
    return %c0_i32, %c0_i32_0 : i32, i32
  }
  func.func @transform_7(%arg0: i32) -> (i32, i32) {
    %c0_i32 = arith.constant 0 : i32
    %c0_i32_0 = arith.constant 0 : i32
    %c0_i32_1 = arith.constant 0 : i32
    return %c0_i32, %c0_i32_0 : i32, i32
  }
  func.func @transform_8(%arg0: i32) -> (i32, i32) {
    %c0_i32 = arith.constant 0 : i32
    %c0_i32_0 = arith.constant 0 : i32
    %c0_i32_1 = arith.constant 0 : i32
    return %c0_i32, %c0_i32_0 : i32, i32
  }
  func.func @transform_9(%arg0: i32) -> (i32, i32) {
    %c0_i32 = arith.constant 0 : i32
    %c0_i32_0 = arith.constant 0 : i32
    %c0_i32_1 = arith.constant 0 : i32
    return %c0_i32, %c0_i32_0 : i32, i32
  }
  func.func @transform_10(%arg0: i32) -> (i32, i32) {
    %c0_i32 = arith.constant 0 : i32
    %c0_i32_0 = arith.constant 0 : i32
    %c0_i32_1 = arith.constant 0 : i32
    return %c0_i32, %c0_i32_0 : i32, i32
  }
  func.func @transform_11(%arg0: i32) -> (i32, i32) {
    %c0_i32 = arith.constant 0 : i32
    %c0_i32_0 = arith.constant 0 : i32
    %c0_i32_1 = arith.constant 0 : i32
    return %c0_i32, %c0_i32_0 : i32, i32
  }
  func.func @transform_12(%arg0: i32) -> (i32, i32) {
    %c0_i32 = arith.constant 0 : i32
    %c0_i32_0 = arith.constant 0 : i32
    %c0_i32_1 = arith.constant 0 : i32
    return %c0_i32, %c0_i32_0 : i32, i32
  }
  func.func @transform_13(%arg0: i32) -> (i32, i32) {
    %c0_i32 = arith.constant 0 : i32
    %c0_i32_0 = arith.constant 0 : i32
    %c0_i32_1 = arith.constant 0 : i32
    return %c0_i32, %c0_i32_0 : i32, i32
  }
  func.func @transform_14(%arg0: i32) -> (i32, i32) {
    %c0_i32 = arith.constant 0 : i32
    %c0_i32_0 = arith.constant 0 : i32
    %c0_i32_1 = arith.constant 0 : i32
    return %c0_i32, %c0_i32_0 : i32, i32
  }
  func.func @transform_15(%arg0: i32) -> (i32, i32) {
    %c0_i32 = arith.constant 0 : i32
    %c0_i32_0 = arith.constant 0 : i32
    %c0_i32_1 = arith.constant 0 : i32
    return %c0_i32, %c0_i32_0 : i32, i32
  }
  func.func @transform_16(%arg0: i32) -> (i32, i32) {
    %c0_i32 = arith.constant 0 : i32
    %c0_i32_0 = arith.constant 0 : i32
    %c0_i32_1 = arith.constant 0 : i32
    return %c0_i32, %c0_i32_0 : i32, i32
  }
  func.func @transform_17(%arg0: i32) -> (i32, i32, i32) {
    %c0_i32 = arith.constant 0 : i32
    %c0_i32_0 = arith.constant 0 : i32
    %c0_i32_1 = arith.constant 0 : i32
    %c0_i32_2 = arith.constant 0 : i32
    return %c0_i32, %c0_i32_0, %c0_i32_1 : i32, i32, i32
  }
  func.func @transform_18(%arg0: i32) -> (i32, i32, i32) {
    %c0_i32 = arith.constant 0 : i32
    %c0_i32_0 = arith.constant 0 : i32
    %c0_i32_1 = arith.constant 0 : i32
    %c0_i32_2 = arith.constant 0 : i32
    return %c0_i32, %c0_i32_0, %c0_i32_1 : i32, i32, i32
  }
  func.func @transform_19(%arg0: i32) -> (i32, i32, i32) {
    %c0_i32 = arith.constant 0 : i32
    %c0_i32_0 = arith.constant 0 : i32
    %c0_i32_1 = arith.constant 0 : i32
    %c0_i32_2 = arith.constant 0 : i32
    return %c0_i32, %c0_i32_0, %c0_i32_1 : i32, i32, i32
  }
  func.func @transform_20(%arg0: i32) -> (i32, i32, i32) {
    %c0_i32 = arith.constant 0 : i32
    %c0_i32_0 = arith.constant 0 : i32
    %c0_i32_1 = arith.constant 0 : i32
    %c0_i32_2 = arith.constant 0 : i32
    return %c0_i32, %c0_i32_0, %c0_i32_1 : i32, i32, i32
  }
  func.func @transform_21(%arg0: i32) -> (i32, i32, i32) {
    %c0_i32 = arith.constant 0 : i32
    %c0_i32_0 = arith.constant 0 : i32
    %c0_i32_1 = arith.constant 0 : i32
    %c0_i32_2 = arith.constant 0 : i32
    return %c0_i32, %c0_i32_0, %c0_i32_1 : i32, i32, i32
  }
  func.func @transform_22(%arg0: i32) -> (i32, i32, i32) {
    %c0_i32 = arith.constant 0 : i32
    %c0_i32_0 = arith.constant 0 : i32
    %c0_i32_1 = arith.constant 0 : i32
    %c0_i32_2 = arith.constant 0 : i32
    return %c0_i32, %c0_i32_0, %c0_i32_1 : i32, i32, i32
  }
  func.func @transform_23(%arg0: i32) -> (i32, i32, i32) {
    %c0_i32 = arith.constant 0 : i32
    %c0_i32_0 = arith.constant 0 : i32
    %c0_i32_1 = arith.constant 0 : i32
    %c0_i32_2 = arith.constant 0 : i32
    return %c0_i32, %c0_i32_0, %c0_i32_1 : i32, i32, i32
  }
  func.func @transform_24(%arg0: i32) -> (i32, i32, i32) {
    %c0_i32 = arith.constant 0 : i32
    %c0_i32_0 = arith.constant 0 : i32
    %c0_i32_1 = arith.constant 0 : i32
    %c0_i32_2 = arith.constant 0 : i32
    return %c0_i32, %c0_i32_0, %c0_i32_1 : i32, i32, i32
  }
  func.func @transform_25(%arg0: i32) -> (i32, i32, i32) {
    %c0_i32 = arith.constant 0 : i32
    %c0_i32_0 = arith.constant 0 : i32
    %c0_i32_1 = arith.constant 0 : i32
    %c0_i32_2 = arith.constant 0 : i32
    return %c0_i32, %c0_i32_0, %c0_i32_1 : i32, i32, i32
  }
  func.func @transform_26(%arg0: i32) -> (i32, i32, i32) {
    %c0_i32 = arith.constant 0 : i32
    %c0_i32_0 = arith.constant 0 : i32
    %c0_i32_1 = arith.constant 0 : i32
    %c0_i32_2 = arith.constant 0 : i32
    return %c0_i32, %c0_i32_0, %c0_i32_1 : i32, i32, i32
  }
  func.func @transform_27(%arg0: i32) -> (i32, i32, i32) {
    %c0_i32 = arith.constant 0 : i32
    %c0_i32_0 = arith.constant 0 : i32
    %c0_i32_1 = arith.constant 0 : i32
    %c0_i32_2 = arith.constant 0 : i32
    return %c0_i32, %c0_i32_0, %c0_i32_1 : i32, i32, i32
  }
  func.func @transform_28(%arg0: i32) -> (i32, i32, i32) {
    %c0_i32 = arith.constant 0 : i32
    %c0_i32_0 = arith.constant 0 : i32
    %c0_i32_1 = arith.constant 0 : i32
    %c0_i32_2 = arith.constant 0 : i32
    return %c0_i32, %c0_i32_0, %c0_i32_1 : i32, i32, i32
  }
  func.func @transform_29(%arg0: i32) -> (i32, i32) {
    %c0_i32 = arith.constant 0 : i32
    %c0_i32_0 = arith.constant 0 : i32
    %c0_i32_1 = arith.constant 0 : i32
    return %c0_i32, %c0_i32_0 : i32, i32
  }
  func.func @transform_30(%arg0: i32) -> (i32, i32) {
    %c0_i32 = arith.constant 0 : i32
    %c0_i32_0 = arith.constant 0 : i32
    %c0_i32_1 = arith.constant 0 : i32
    return %c0_i32, %c0_i32_0 : i32, i32
  }
  func.func @transform_31(%arg0: i32) -> (i32, i32) {
    %c0_i32 = arith.constant 0 : i32
    %c0_i32_0 = arith.constant 0 : i32
    %c0_i32_1 = arith.constant 0 : i32
    return %c0_i32, %c0_i32_0 : i32, i32
  }
  func.func @transform_32(%arg0: i32) -> (i32, i32) {
    %c0_i32 = arith.constant 0 : i32
    %c0_i32_0 = arith.constant 0 : i32
    %c0_i32_1 = arith.constant 0 : i32
    return %c0_i32, %c0_i32_0 : i32, i32
  }
  func.func @transform_33(%arg0: i32) -> (i32, i32) {
    %c0_i32 = arith.constant 0 : i32
    %c0_i32_0 = arith.constant 0 : i32
    %c0_i32_1 = arith.constant 0 : i32
    return %c0_i32, %c0_i32_0 : i32, i32
  }
  func.func @transform_34(%arg0: i32) -> (i32, i32) {
    %c0_i32 = arith.constant 0 : i32
    %c0_i32_0 = arith.constant 0 : i32
    %c0_i32_1 = arith.constant 0 : i32
    return %c0_i32, %c0_i32_0 : i32, i32
  }
  func.func @transform_35(%arg0: i32) -> (i32, i32, i32) {
    %c0_i32 = arith.constant 0 : i32
    %c0_i32_0 = arith.constant 0 : i32
    %c0_i32_1 = arith.constant 0 : i32
    return %arg0, %c0_i32, %c0_i32_0 : i32, i32, i32
  }
}

</mosaic_0001>

<llo_original>
// kernel: wav2vec_cls_forward.1
$region0: #{wav2vec_cls_forward.1}
  #allocation0 [shape = 'u32[]', space=smem, size = 0x4, offset = 0x4, fixed_abs, tag = 'smem constant byte address 0x4 - core index']
  #allocation1 [shape = 'u32[144,128]{1,0:T(1,128)}', space=vmem, size = 0x12000, scoped, tag = 'internal scratch']
  %s0 = inlined_call_operand.smem [shape: u32[36], index: -1, kind: input, shape index: {}]
  %s1 = sld [smem:[%s0]]
  %s2 = scalar_lea.smem %s0, 1
  %s3 = sld [smem:[%s2]]
  %s4 = scalar_lea.smem %s0, 2
  %s5 = sld [smem:[%s4]]
  %s6 = scalar_lea.smem %s0, 3
  %s7 = sld [smem:[%s6]]
  %s8 = scalar_lea.smem %s0, 4
  %s9 = sld [smem:[%s8]]
  %s10 = scalar_lea.smem %s0, 5
  %s11 = sld [smem:[%s10]]
  %s12 = scalar_lea.smem %s0, 6
  %s13 = sld [smem:[%s12]]
  %s14 = scalar_lea.smem %s0, 7
  %s15 = sld [smem:[%s14]]
  %s16 = scalar_lea.smem %s0, 8
  %s17 = sld [smem:[%s16]]
  %s18 = scalar_lea.smem %s0, 9
  %s19 = sld [smem:[%s18]]
  %s20 = scalar_lea.smem %s0, 10
  %s21 = sld [smem:[%s20]]
  %s22 = scalar_lea.smem %s0, 11
  %s23 = sld [smem:[%s22]]
  %s24 = scalar_lea.smem %s0, 12
  %s25 = sld [smem:[%s24]]
  %s26 = scalar_lea.smem %s0, 13
  %s27 = sld [smem:[%s26]]
  %s28 = scalar_lea.smem %s0, 14
  %s29 = sld [smem:[%s28]]
  %s30 = scalar_lea.smem %s0, 15
  %s31 = sld [smem:[%s30]]
  %s32 = scalar_lea.smem %s0, 16
  %s33 = sld [smem:[%s32]]
  %s34 = scalar_lea.smem %s0, 17
  %s35 = sld [smem:[%s34]]
  %s36 = scalar_lea.smem %s0, 18
  %s37 = sld [smem:[%s36]]
  %s38 = scalar_lea.smem %s0, 19
  %s39 = sld [smem:[%s38]]
  %s40 = scalar_lea.smem %s0, 20
  %s41 = sld [smem:[%s40]]
  %s42 = scalar_lea.smem %s0, 21
  %s43 = sld [smem:[%s42]]
  %s44 = scalar_lea.smem %s0, 22
  %s45 = sld [smem:[%s44]]
  %s46 = scalar_lea.smem %s0, 23
  %s47 = sld [smem:[%s46]]
  %s48 = scalar_lea.smem %s0, 24
  %s49 = sld [smem:[%s48]]
  %s50 = scalar_lea.smem %s0, 25
  %s51 = sld [smem:[%s50]]
  %s52 = scalar_lea.smem %s0, 26
  %s53 = sld [smem:[%s52]]
  %s54 = scalar_lea.smem %s0, 27
  %s55 = sld [smem:[%s54]]
  %s56 = scalar_lea.smem %s0, 28
  %s57 = sld [smem:[%s56]]
  %s58 = scalar_lea.smem %s0, 29
  %s59 = sld [smem:[%s58]]
  %s60 = scalar_lea.smem %s0, 30
  %s61 = sld [smem:[%s60]]
  %s62 = scalar_lea.smem %s0, 31
  %s63 = sld [smem:[%s62]]
  %s64 = scalar_lea.smem %s0, 32
  %s65 = sld [smem:[%s64]]
  %s66 = scalar_lea.smem %s0, 33
  %s67 = sld [smem:[%s66]]
  %s68 = scalar_lea.smem %s0, 34
  %s69 = sld [smem:[%s68]]
  %s70 = scalar_lea.smem %s0, 35
  %s71 = sld [smem:[%s70]]
  %s72 = sld [smem:[#allocation0]]
  $region173: #{wav2vec_cls_forward.1} parent=0
    _
  %s74 = ssub.s32 1, %s72
  %s75 = scalar_select 0, %s74, %s72
  $region1: #{wav2vec_cls_forward.1} parent=0
    #allocation2 [shape = 'u8[1024]{0}', space=vmem, size = 0x400, scoped, tag = 'output window, operand 0']
    #allocation3 [shape = 's32[2]{0}', space=sflag, size = 0x8, scoped, tag = 'scoped memory for wav2vec_cls_forward.1']
    %76 = vsyncpa [#allocation3], 0
    %s77 = scalar_lea.sflag [#allocation3], 1
    %78 = vsyncpa %s77, 0
    loop: start=0, step=1, limit=4
    $region2: #{wav2vec_cls_forward.1} parent=1 // loop_pre_header
      _
    $region3: #{wav2vec_cls_forward.1} parent=1 // loop_header
      %s80 = sphi 0, %s84
      %p81 = scmp.ge.s32.totalorder %s80, 4
      %s90 = sphi 0, %s92
      %s93 = sphi 0, %s90
      %s94 = sphi 0, %s93
      %s110 = sphi 0, %s94
      %s114 = sphi 0, %s114
      %s116 = sphi 0, %s114
      %s117 = sphi 0, %s116
      %s131 = sphi 0, %s117
      %s135 = sphi 0, %s135
      %s137 = sphi 0, %s135
      %s138 = sphi 0, %s137
      %s152 = sphi 0, %s138
      %s156 = sphi 0, %s156
      %s158 = sphi 0, %s156
      %s159 = sphi 0, %s158
      %s173 = sphi 0, %s159
      %s177 = sphi 0, %s177
      %s179 = sphi 0, %s177
      %s180 = sphi 0, %s179
      %s194 = sphi 0, %s180
      %s198 = sphi 0, %s198
      %s200 = sphi 0, %s198
      %s201 = sphi 0, %s200
      %s215 = sphi 0, %s201
      %s219 = sphi 0, %s219
      %s221 = sphi 0, %s219
      %s222 = sphi 0, %s221
      %s236 = sphi 0, %s222
      %s240 = sphi 0, %s240
      %s242 = sphi 0, %s240
      %s243 = sphi 0, %s242
      %s257 = sphi 0, %s243
      %s261 = sphi 0, %s261
      %s263 = sphi 0, %s261
      %s264 = sphi 0, %s263
      %s278 = sphi 0, %s264
      %s282 = sphi 0, %s282
      %s284 = sphi 0, %s282
      %s285 = sphi 0, %s284
      %s299 = sphi 0, %s285
      %s303 = sphi 0, %s303
      %s305 = sphi 0, %s303
      %s306 = sphi 0, %s305
      %s320 = sphi 0, %s306
      %s324 = sphi 0, %s324
      %s326 = sphi 0, %s324
      %s327 = sphi 0, %s326
      %s341 = sphi 0, %s327
      %s345 = sphi 0, %s345
      %s347 = sphi 0, %s345
      %s348 = sphi 0, %s347
      %s362 = sphi 0, %s348
      %s366 = sphi 0, %s366
      %s368 = sphi 0, %s366
      %s369 = sphi 0, %s368
      %s383 = sphi 0, %s369
      %s387 = sphi 0, %s387
      %s389 = sphi 0, %s387
      %s390 = sphi 0, %s389
      %s404 = sphi 0, %s390
      %s408 = sphi 0, %s408
      %s410 = sphi 0, %s408
      %s411 = sphi 0, %s410
      %s425 = sphi 0, %s411
      %s429 = sphi 0, %s429
      %s431 = sphi 0, %s429
      %s432 = sphi 0, %s431
      %s446 = sphi 0, %s432
      %s450 = sphi 0, %s450
      %s452 = sphi 0, %s450
      %s453 = sphi 0, %s452
      %s467 = sphi 0, %s453
      %s471 = sphi 0, %s471
      %s473 = sphi 0, %s471
      %s474 = sphi 0, %s473
      %s488 = sphi 0, %s474
      %s492 = sphi 0, %s492
      %s494 = sphi 0, %s492
      %s495 = sphi 0, %s494
      %s509 = sphi 0, %s495
      %s513 = sphi 0, %s513
      %s515 = sphi 0, %s513
      %s516 = sphi 0, %s515
      %s530 = sphi 0, %s516
      %s534 = sphi 0, %s534
      %s536 = sphi 0, %s534
      %s537 = sphi 0, %s536
      %s551 = sphi 0, %s537
      %s555 = sphi 0, %s555
      %s557 = sphi 0, %s555
      %s558 = sphi 0, %s557
      %s572 = sphi 0, %s558
      %s576 = sphi 0, %s576
      %s578 = sphi 0, %s576
      %s579 = sphi 0, %s578
      %s593 = sphi 0, %s579
      %s597 = sphi 0, %s597
      %s599 = sphi 0, %s597
      %s600 = sphi 0, %s599
      %s614 = sphi 0, %s600
      %s618 = sphi 0, %s618
      %s620 = sphi 0, %s618
      %s621 = sphi 0, %s620
      %s635 = sphi 0, %s621
      %s639 = sphi 0, %s639
      %s641 = sphi 0, %s639
      %s642 = sphi 0, %s641
      %s656 = sphi 0, %s642
      %s660 = sphi 0, %s660
      %s662 = sphi 0, %s660
      %s663 = sphi 0, %s662
      %s677 = sphi 0, %s663
      %s681 = sphi 0, %s681
      %s683 = sphi 0, %s681
      %s684 = sphi 0, %s683
      %s698 = sphi 0, %s684
      %s702 = sphi 0, %s702
      %s704 = sphi 0, %s702
      %s705 = sphi 0, %s704
      %s719 = sphi 0, %s705
      %s723 = sphi 0, %s723
      %s725 = sphi 0, %s723
      %s726 = sphi 0, %s725
      %s740 = sphi 0, %s726
      %s744 = sphi 0, %s744
      %s746 = sphi 0, %s744
      %s747 = sphi 0, %s746
      %s761 = sphi 0, %s747
      %s765 = sphi 0, %s765
      %s767 = sphi 0, %s765
      %s768 = sphi 0, %s767
      %s782 = sphi 0, %s768
      %s786 = sphi 0, %s786
      %s788 = sphi 0, %s786
      %s789 = sphi 0, %s788
      %s803 = sphi 0, %s789
      %s807 = sphi 0, %s807
      %s809 = sphi 0, %s807
      %s810 = sphi 0, %s809
      %s824 = sphi 0, %s810
      %s830 = sphi 0, %s832
      %s833 = sphi 0, %s830
      %s834 = sphi 0, %s833
      %s850 = sphi 0, %s834
    $region4: #{wav2vec_cls_forward.1} parent=1 // loop_header_branch
      %83 = sbr.rel (%p81) target = $region8
    $region5: #{wav2vec_cls_forward.1} parent=1 // loop_body
      %s85 = ssub.s32 %s80, 1
      %s86 = ssub.s32 %s80, 2
      %s87 = sadd.s32 %s80, 1
      %s88 = ssub.s32 %s80, %s87
      %p89 = scmp.eq.s32.totalorder %s88, 0
      %s91 = sadd.s32 %s90, 1
      %s92 = scalar_select %p89, %s90, %s91
      %p95 = pneg %p89
      %p96 = scmp.eq.s32.totalorder %s80, 1
      %p97 = por %p95, %p96
      %p98 = scmp.ne.s32.totalorder %s90, %s93
      %p99 = scmp.eq.s32.totalorder %s80, 0
      %p100 = por %p98, %p99
      %p101 = scmp.ne.s32.totalorder %s90, %s93
      %p102 = scmp.eq.s32.totalorder %s85, 1
      %p103 = por %p101, %p102
      %p104 = scmp.ne.s32.totalorder %s93, %s94
      %p105 = scmp.eq.s32.totalorder %s85, 0
      %p106 = por %p104, %p105
      %p107 = scmp.ne.s32.totalorder %s93, %s94
      %p108 = scmp.eq.s32.totalorder %s86, 1
      %p109 = por %p107, %p108
      %p111 = scmp.ne.s32.totalorder %s94, %s110
      %p112 = scmp.eq.s32.totalorder %s86, 0
      %p113 = por %p111, %p112
      %s115 = sadd.s32 %s114, 1
      %p118 = scmp.eq.s32.totalorder %s80, 1
      %p119 = scmp.ne.s32.totalorder %s114, %s116
      %p120 = scmp.eq.s32.totalorder %s80, 0
      %p121 = por %p119, %p120
      %p122 = scmp.ne.s32.totalorder %s114, %s116
      %p123 = scmp.eq.s32.totalorder %s85, 1
      %p124 = por %p122, %p123
      %p125 = scmp.ne.s32.totalorder %s116, %s117
      %p126 = scmp.eq.s32.totalorder %s85, 0
      %p127 = por %p125, %p126
      %p128 = scmp.ne.s32.totalorder %s116, %s117
      %p129 = scmp.eq.s32.totalorder %s86, 1
      %p130 = por %p128, %p129
      %p132 = scmp.ne.s32.totalorder %s117, %s131
      %p133 = scmp.eq.s32.totalorder %s86, 0
      %p134 = por %p132, %p133
      %s136 = sadd.s32 %s135, 1
      %p139 = scmp.eq.s32.totalorder %s80, 1
      %p140 = scmp.ne.s32.totalorder %s135, %s137
      %p141 = scmp.eq.s32.totalorder %s80, 0
      %p142 = por %p140, %p141
      %p143 = scmp.ne.s32.totalorder %s135, %s137
      %p144 = scmp.eq.s32.totalorder %s85, 1
      %p145 = por %p143, %p144
      %p146 = scmp.ne.s32.totalorder %s137, %s138
      %p147 = scmp.eq.s32.totalorder %s85, 0
      %p148 = por %p146, %p147
      %p149 = scmp.ne.s32.totalorder %s137, %s138
      %p150 = scmp.eq.s32.totalorder %s86, 1
      %p151 = por %p149, %p150
      %p153 = scmp.ne.s32.totalorder %s138, %s152
      %p154 = scmp.eq.s32.totalorder %s86, 0
      %p155 = por %p153, %p154
      %s157 = sadd.s32 %s156, 1
      %p160 = scmp.eq.s32.totalorder %s80, 1
      %p161 = scmp.ne.s32.totalorder %s156, %s158
      %p162 = scmp.eq.s32.totalorder %s80, 0
      %p163 = por %p161, %p162
      %p164 = scmp.ne.s32.totalorder %s156, %s158
      %p165 = scmp.eq.s32.totalorder %s85, 1
      %p166 = por %p164, %p165
      %p167 = scmp.ne.s32.totalorder %s158, %s159
      %p168 = scmp.eq.s32.totalorder %s85, 0
      %p169 = por %p167, %p168
      %p170 = scmp.ne.s32.totalorder %s158, %s159
      %p171 = scmp.eq.s32.totalorder %s86, 1
      %p172 = por %p170, %p171
      %p174 = scmp.ne.s32.totalorder %s159, %s173
      %p175 = scmp.eq.s32.totalorder %s86, 0
      %p176 = por %p174, %p175
      %s178 = sadd.s32 %s177, 1
      %p181 = scmp.eq.s32.totalorder %s80, 1
      %p182 = scmp.ne.s32.totalorder %s177, %s179
      %p183 = scmp.eq.s32.totalorder %s80, 0
      %p184 = por %p182, %p183
      %p185 = scmp.ne.s32.totalorder %s177, %s179
      %p186 = scmp.eq.s32.totalorder %s85, 1
      %p187 = por %p185, %p186
      %p188 = scmp.ne.s32.totalorder %s179, %s180
      %p189 = scmp.eq.s32.totalorder %s85, 0
      %p190 = por %p188, %p189
      %p191 = scmp.ne.s32.totalorder %s179, %s180
      %p192 = scmp.eq.s32.totalorder %s86, 1
      %p193 = por %p191, %p192
      %p195 = scmp.ne.s32.totalorder %s180, %s194
      %p196 = scmp.eq.s32.totalorder %s86, 0
      %p197 = por %p195, %p196
      %s199 = sadd.s32 %s198, 1
      %p202 = scmp.eq.s32.totalorder %s80, 1
      %p203 = scmp.ne.s32.totalorder %s198, %s200
      %p204 = scmp.eq.s32.totalorder %s80, 0
      %p205 = por %p203, %p204
      %p206 = scmp.ne.s32.totalorder %s198, %s200
      %p207 = scmp.eq.s32.totalorder %s85, 1
      %p208 = por %p206, %p207
      %p209 = scmp.ne.s32.totalorder %s200, %s201
      %p210 = scmp.eq.s32.totalorder %s85, 0
      %p211 = por %p209, %p210
      %p212 = scmp.ne.s32.totalorder %s200, %s201
      %p213 = scmp.eq.s32.totalorder %s86, 1
      %p214 = por %p212, %p213
      %p216 = scmp.ne.s32.totalorder %s201, %s215
      %p217 = scmp.eq.s32.totalorder %s86, 0
      %p218 = por %p216, %p217
      %s220 = sadd.s32 %s219, 1
      %p223 = scmp.eq.s32.totalorder %s80, 1
      %p224 = scmp.ne.s32.totalorder %s219, %s221
      %p225 = scmp.eq.s32.totalorder %s80, 0
      %p226 = por %p224, %p225
      %p227 = scmp.ne.s32.totalorder %s219, %s221
      %p228 = scmp.eq.s32.totalorder %s85, 1
      %p229 = por %p227, %p228
      %p230 = scmp.ne.s32.totalorder %s221, %s222
      %p231 = scmp.eq.s32.totalorder %s85, 0
      %p232 = por %p230, %p231
      %p233 = scmp.ne.s32.totalorder %s221, %s222
      %p234 = scmp.eq.s32.totalorder %s86, 1
      %p235 = por %p233, %p234
      %p237 = scmp.ne.s32.totalorder %s222, %s236
      %p238 = scmp.eq.s32.totalorder %s86, 0
      %p239 = por %p237, %p238
      %s241 = sadd.s32 %s240, 1
      %p244 = scmp.eq.s32.totalorder %s80, 1
      %p245 = scmp.ne.s32.totalorder %s240, %s242
      %p246 = scmp.eq.s32.totalorder %s80, 0
      %p247 = por %p245, %p246
      %p248 = scmp.ne.s32.totalorder %s240, %s242
      %p249 = scmp.eq.s32.totalorder %s85, 1
      %p250 = por %p248, %p249
      %p251 = scmp.ne.s32.totalorder %s242, %s243
      %p252 = scmp.eq.s32.totalorder %s85, 0
      %p253 = por %p251, %p252
      %p254 = scmp.ne.s32.totalorder %s242, %s243
      %p255 = scmp.eq.s32.totalorder %s86, 1
      %p256 = por %p254, %p255
      %p258 = scmp.ne.s32.totalorder %s243, %s257
      %p259 = scmp.eq.s32.totalorder %s86, 0
      %p260 = por %p258, %p259
      %s262 = sadd.s32 %s261, 1
      %p265 = scmp.eq.s32.totalorder %s80, 1
      %p266 = scmp.ne.s32.totalorder %s261, %s263
      %p267 = scmp.eq.s32.totalorder %s80, 0
      %p268 = por %p266, %p267
      %p269 = scmp.ne.s32.totalorder %s261, %s263
      %p270 = scmp.eq.s32.totalorder %s85, 1
      %p271 = por %p269, %p270
      %p272 = scmp.ne.s32.totalorder %s263, %s264
      %p273 = scmp.eq.s32.totalorder %s85, 0
      %p274 = por %p272, %p273
      %p275 = scmp.ne.s32.totalorder %s263, %s264
      %p276 = scmp.eq.s32.totalorder %s86, 1
      %p277 = por %p275, %p276
      %p279 = scmp.ne.s32.totalorder %s264, %s278
      %p280 = scmp.eq.s32.totalorder %s86, 0
      %p281 = por %p279, %p280
      %s283 = sadd.s32 %s282, 1
      %p286 = scmp.eq.s32.totalorder %s80, 1
      %p287 = scmp.ne.s32.totalorder %s282, %s284
      %p288 = scmp.eq.s32.totalorder %s80, 0
      %p289 = por %p287, %p288
      %p290 = scmp.ne.s32.totalorder %s282, %s284
      %p291 = scmp.eq.s32.totalorder %s85, 1
      %p292 = por %p290, %p291
      %p293 = scmp.ne.s32.totalorder %s284, %s285
      %p294 = scmp.eq.s32.totalorder %s85, 0
      %p295 = por %p293, %p294
      %p296 = scmp.ne.s32.totalorder %s284, %s285
      %p297 = scmp.eq.s32.totalorder %s86, 1
      %p298 = por %p296, %p297
      %p300 = scmp.ne.s32.totalorder %s285, %s299
      %p301 = scmp.eq.s32.totalorder %s86, 0
      %p302 = por %p300, %p301
      %s304 = sadd.s32 %s303, 1
      %p307 = scmp.eq.s32.totalorder %s80, 1
      %p308 = scmp.ne.s32.totalorder %s303, %s305
      %p309 = scmp.eq.s32.totalorder %s80, 0
      %p310 = por %p308, %p309
      %p311 = scmp.ne.s32.totalorder %s303, %s305
      %p312 = scmp.eq.s32.totalorder %s85, 1
      %p313 = por %p311, %p312
      %p314 = scmp.ne.s32.totalorder %s305, %s306
      %p315 = scmp.eq.s32.totalorder %s85, 0
      %p316 = por %p314, %p315
      %p317 = scmp.ne.s32.totalorder %s305, %s306
      %p318 = scmp.eq.s32.totalorder %s86, 1
      %p319 = por %p317, %p318
      %p321 = scmp.ne.s32.totalorder %s306, %s320
      %p322 = scmp.eq.s32.totalorder %s86, 0
      %p323 = por %p321, %p322
      %s325 = sadd.s32 %s324, 1
      %p328 = scmp.eq.s32.totalorder %s80, 1
      %p329 = scmp.ne.s32.totalorder %s324, %s326
      %p330 = scmp.eq.s32.totalorder %s80, 0
      %p331 = por %p329, %p330
      %p332 = scmp.ne.s32.totalorder %s324, %s326
      %p333 = scmp.eq.s32.totalorder %s85, 1
      %p334 = por %p332, %p333
      %p335 = scmp.ne.s32.totalorder %s326, %s327
      %p336 = scmp.eq.s32.totalorder %s85, 0
      %p337 = por %p335, %p336
      %p338 = scmp.ne.s32.totalorder %s326, %s327
      %p339 = scmp.eq.s32.totalorder %s86, 1
      %p340 = por %p338, %p339
      %p342 = scmp.ne.s32.totalorder %s327, %s341
      %p343 = scmp.eq.s32.totalorder %s86, 0
      %p344 = por %p342, %p343
      %s346 = sadd.s32 %s345, 1
      %p349 = scmp.eq.s32.totalorder %s80, 1
      %p350 = scmp.ne.s32.totalorder %s345, %s347
      %p351 = scmp.eq.s32.totalorder %s80, 0
      %p352 = por %p350, %p351
      %p353 = scmp.ne.s32.totalorder %s345, %s347
      %p354 = scmp.eq.s32.totalorder %s85, 1
      %p355 = por %p353, %p354
      %p356 = scmp.ne.s32.totalorder %s347, %s348
      %p357 = scmp.eq.s32.totalorder %s85, 0
      %p358 = por %p356, %p357
      %p359 = scmp.ne.s32.totalorder %s347, %s348
      %p360 = scmp.eq.s32.totalorder %s86, 1
      %p361 = por %p359, %p360
      %p363 = scmp.ne.s32.totalorder %s348, %s362
      %p364 = scmp.eq.s32.totalorder %s86, 0
      %p365 = por %p363, %p364
      %s367 = sadd.s32 %s366, 1
      %p370 = scmp.eq.s32.totalorder %s80, 1
      %p371 = scmp.ne.s32.totalorder %s366, %s368
      %p372 = scmp.eq.s32.totalorder %s80, 0
      %p373 = por %p371, %p372
      %p374 = scmp.ne.s32.totalorder %s366, %s368
      %p375 = scmp.eq.s32.totalorder %s85, 1
      %p376 = por %p374, %p375
      %p377 = scmp.ne.s32.totalorder %s368, %s369
      %p378 = scmp.eq.s32.totalorder %s85, 0
      %p379 = por %p377, %p378
      %p380 = scmp.ne.s32.totalorder %s368, %s369
      %p381 = scmp.eq.s32.totalorder %s86, 1
      %p382 = por %p380, %p381
      %p384 = scmp.ne.s32.totalorder %s369, %s383
      %p385 = scmp.eq.s32.totalorder %s86, 0
      %p386 = por %p384, %p385
      %s388 = sadd.s32 %s387, 1
      %p391 = scmp.eq.s32.totalorder %s80, 1
      %p392 = scmp.ne.s32.totalorder %s387, %s389
      %p393 = scmp.eq.s32.totalorder %s80, 0
      %p394 = por %p392, %p393
      %p395 = scmp.ne.s32.totalorder %s387, %s389
      %p396 = scmp.eq.s32.totalorder %s85, 1
      %p397 = por %p395, %p396
      %p398 = scmp.ne.s32.totalorder %s389, %s390
      %p399 = scmp.eq.s32.totalorder %s85, 0
      %p400 = por %p398, %p399
      %p401 = scmp.ne.s32.totalorder %s389, %s390
      %p402 = scmp.eq.s32.totalorder %s86, 1
      %p403 = por %p401, %p402
      %p405 = scmp.ne.s32.totalorder %s390, %s404
      %p406 = scmp.eq.s32.totalorder %s86, 0
      %p407 = por %p405, %p406
      %s409 = sadd.s32 %s408, 1
      %p412 = scmp.eq.s32.totalorder %s80, 1
      %p413 = scmp.ne.s32.totalorder %s408, %s410
      %p414 = scmp.eq.s32.totalorder %s80, 0
      %p415 = por %p413, %p414
      %p416 = scmp.ne.s32.totalorder %s408, %s410
      %p417 = scmp.eq.s32.totalorder %s85, 1
      %p418 = por %p416, %p417
      %p419 = scmp.ne.s32.totalorder %s410, %s411
      %p420 = scmp.eq.s32.totalorder %s85, 0
      %p421 = por %p419, %p420
      %p422 = scmp.ne.s32.totalorder %s410, %s411
      %p423 = scmp.eq.s32.totalorder %s86, 1
      %p424 = por %p422, %p423
      %p426 = scmp.ne.s32.totalorder %s411, %s425
      %p427 = scmp.eq.s32.totalorder %s86, 0
      %p428 = por %p426, %p427
      %s430 = sadd.s32 %s429, 1
      %p433 = scmp.eq.s32.totalorder %s80, 1
      %p434 = scmp.ne.s32.totalorder %s429, %s431
      %p435 = scmp.eq.s32.totalorder %s80, 0
      %p436 = por %p434, %p435
      %p437 = scmp.ne.s32.totalorder %s429, %s431
      %p438 = scmp.eq.s32.totalorder %s85, 1
      %p439 = por %p437, %p438
      %p440 = scmp.ne.s32.totalorder %s431, %s432
      %p441 = scmp.eq.s32.totalorder %s85, 0
      %p442 = por %p440, %p441
      %p443 = scmp.ne.s32.totalorder %s431, %s432
      %p444 = scmp.eq.s32.totalorder %s86, 1
      %p445 = por %p443, %p444
      %p447 = scmp.ne.s32.totalorder %s432, %s446
      %p448 = scmp.eq.s32.totalorder %s86, 0
      %p449 = por %p447, %p448
      %s451 = sadd.s32 %s450, 1
      %p454 = scmp.eq.s32.totalorder %s80, 1
      %p455 = scmp.ne.s32.totalorder %s450, %s452
      %p456 = scmp.eq.s32.totalorder %s80, 0
      %p457 = por %p455, %p456
      %p458 = scmp.ne.s32.totalorder %s450, %s452
      %p459 = scmp.eq.s32.totalorder %s85, 1
      %p460 = por %p458, %p459
      %p461 = scmp.ne.s32.totalorder %s452, %s453
      %p462 = scmp.eq.s32.totalorder %s85, 0
      %p463 = por %p461, %p462
      %p464 = scmp.ne.s32.totalorder %s452, %s453
      %p465 = scmp.eq.s32.totalorder %s86, 1
      %p466 = por %p464, %p465
      %p468 = scmp.ne.s32.totalorder %s453, %s467
      %p469 = scmp.eq.s32.totalorder %s86, 0
      %p470 = por %p468, %p469
      %s472 = sadd.s32 %s471, 1
      %p475 = scmp.eq.s32.totalorder %s80, 1
      %p476 = scmp.ne.s32.totalorder %s471, %s473
      %p477 = scmp.eq.s32.totalorder %s80, 0
      %p478 = por %p476, %p477
      %p479 = scmp.ne.s32.totalorder %s471, %s473
      %p480 = scmp.eq.s32.totalorder %s85, 1
      %p481 = por %p479, %p480
      %p482 = scmp.ne.s32.totalorder %s473, %s474
      %p483 = scmp.eq.s32.totalorder %s85, 0
      %p484 = por %p482, %p483
      %p485 = scmp.ne.s32.totalorder %s473, %s474
      %p486 = scmp.eq.s32.totalorder %s86, 1
      %p487 = por %p485, %p486
      %p489 = scmp.ne.s32.totalorder %s474, %s488
      %p490 = scmp.eq.s32.totalorder %s86, 0
      %p491 = por %p489, %p490
      %s493 = sadd.s32 %s492, 1
      %p496 = scmp.eq.s32.totalorder %s80, 1
      %p497 = scmp.ne.s32.totalorder %s492, %s494
      %p498 = scmp.eq.s32.totalorder %s80, 0
      %p499 = por %p497, %p498
      %p500 = scmp.ne.s32.totalorder %s492, %s494
      %p501 = scmp.eq.s32.totalorder %s85, 1
      %p502 = por %p500, %p501
      %p503 = scmp.ne.s32.totalorder %s494, %s495
      %p504 = scmp.eq.s32.totalorder %s85, 0
      %p505 = por %p503, %p504
      %p506 = scmp.ne.s32.totalorder %s494, %s495
      %p507 = scmp.eq.s32.totalorder %s86, 1
      %p508 = por %p506, %p507
      %p510 = scmp.ne.s32.totalorder %s495, %s509
      %p511 = scmp.eq.s32.totalorder %s86, 0
      %p512 = por %p510, %p511
      %s514 = sadd.s32 %s513, 1
      %p517 = scmp.eq.s32.totalorder %s80, 1
      %p518 = scmp.ne.s32.totalorder %s513, %s515
      %p519 = scmp.eq.s32.totalorder %s80, 0
      %p520 = por %p518, %p519
      %p521 = scmp.ne.s32.totalorder %s513, %s515
      %p522 = scmp.eq.s32.totalorder %s85, 1
      %p523 = por %p521, %p522
      %p524 = scmp.ne.s32.totalorder %s515, %s516
      %p525 = scmp.eq.s32.totalorder %s85, 0
      %p526 = por %p524, %p525
      %p527 = scmp.ne.s32.totalorder %s515, %s516
      %p528 = scmp.eq.s32.totalorder %s86, 1
      %p529 = por %p527, %p528
      %p531 = scmp.ne.s32.totalorder %s516, %s530
      %p532 = scmp.eq.s32.totalorder %s86, 0
      %p533 = por %p531, %p532
      %s535 = sadd.s32 %s534, 1
      %p538 = scmp.eq.s32.totalorder %s80, 1
      %p539 = scmp.ne.s32.totalorder %s534, %s536
      %p540 = scmp.eq.s32.totalorder %s80, 0
      %p541 = por %p539, %p540
      %p542 = scmp.ne.s32.totalorder %s534, %s536
      %p543 = scmp.eq.s32.totalorder %s85, 1
      %p544 = por %p542, %p543
      %p545 = scmp.ne.s32.totalorder %s536, %s537
      %p546 = scmp.eq.s32.totalorder %s85, 0
      %p547 = por %p545, %p546
      %p548 = scmp.ne.s32.totalorder %s536, %s537
      %p549 = scmp.eq.s32.totalorder %s86, 1
      %p550 = por %p548, %p549
      %p552 = scmp.ne.s32.totalorder %s537, %s551
      %p553 = scmp.eq.s32.totalorder %s86, 0
      %p554 = por %p552, %p553
      %s556 = sadd.s32 %s555, 1
      %p559 = scmp.eq.s32.totalorder %s80, 1
      %p560 = scmp.ne.s32.totalorder %s555, %s557
      %p561 = scmp.eq.s32.totalorder %s80, 0
      %p562 = por %p560, %p561
      %p563 = scmp.ne.s32.totalorder %s555, %s557
      %p564 = scmp.eq.s32.totalorder %s85, 1
      %p565 = por %p563, %p564
      %p566 = scmp.ne.s32.totalorder %s557, %s558
      %p567 = scmp.eq.s32.totalorder %s85, 0
      %p568 = por %p566, %p567
      %p569 = scmp.ne.s32.totalorder %s557, %s558
      %p570 = scmp.eq.s32.totalorder %s86, 1
      %p571 = por %p569, %p570
      %p573 = scmp.ne.s32.totalorder %s558, %s572
      %p574 = scmp.eq.s32.totalorder %s86, 0
      %p575 = por %p573, %p574
      %s577 = sadd.s32 %s576, 1
      %p580 = scmp.eq.s32.totalorder %s80, 1
      %p581 = scmp.ne.s32.totalorder %s576, %s578
      %p582 = scmp.eq.s32.totalorder %s80, 0
      %p583 = por %p581, %p582
      %p584 = scmp.ne.s32.totalorder %s576, %s578
      %p585 = scmp.eq.s32.totalorder %s85, 1
      %p586 = por %p584, %p585
      %p587 = scmp.ne.s32.totalorder %s578, %s579
      %p588 = scmp.eq.s32.totalorder %s85, 0
      %p589 = por %p587, %p588
      %p590 = scmp.ne.s32.totalorder %s578, %s579
      %p591 = scmp.eq.s32.totalorder %s86, 1
      %p592 = por %p590, %p591
      %p594 = scmp.ne.s32.totalorder %s579, %s593
      %p595 = scmp.eq.s32.totalorder %s86, 0
      %p596 = por %p594, %p595
      %s598 = sadd.s32 %s597, 1
      %p601 = scmp.eq.s32.totalorder %s80, 1
      %p602 = scmp.ne.s32.totalorder %s597, %s599
      %p603 = scmp.eq.s32.totalorder %s80, 0
      %p604 = por %p602, %p603
      %p605 = scmp.ne.s32.totalorder %s597, %s599
      %p606 = scmp.eq.s32.totalorder %s85, 1
      %p607 = por %p605, %p606
      %p608 = scmp.ne.s32.totalorder %s599, %s600
      %p609 = scmp.eq.s32.totalorder %s85, 0
      %p610 = por %p608, %p609
      %p611 = scmp.ne.s32.totalorder %s599, %s600
      %p612 = scmp.eq.s32.totalorder %s86, 1
      %p613 = por %p611, %p612
      %p615 = scmp.ne.s32.totalorder %s600, %s614
      %p616 = scmp.eq.s32.totalorder %s86, 0
      %p617 = por %p615, %p616
      %s619 = sadd.s32 %s618, 1
      %p622 = scmp.eq.s32.totalorder %s80, 1
      %p623 = scmp.ne.s32.totalorder %s618, %s620
      %p624 = scmp.eq.s32.totalorder %s80, 0
      %p625 = por %p623, %p624
      %p626 = scmp.ne.s32.totalorder %s618, %s620
      %p627 = scmp.eq.s32.totalorder %s85, 1
      %p628 = por %p626, %p627
      %p629 = scmp.ne.s32.totalorder %s620, %s621
      %p630 = scmp.eq.s32.totalorder %s85, 0
      %p631 = por %p629, %p630
      %p632 = scmp.ne.s32.totalorder %s620, %s621
      %p633 = scmp.eq.s32.totalorder %s86, 1
      %p634 = por %p632, %p633
      %p636 = scmp.ne.s32.totalorder %s621, %s635
      %p637 = scmp.eq.s32.totalorder %s86, 0
      %p638 = por %p636, %p637
      %s640 = sadd.s32 %s639, 1
      %p643 = scmp.eq.s32.totalorder %s80, 1
      %p644 = scmp.ne.s32.totalorder %s639, %s641
      %p645 = scmp.eq.s32.totalorder %s80, 0
      %p646 = por %p644, %p645
      %p647 = scmp.ne.s32.totalorder %s639, %s641
      %p648 = scmp.eq.s32.totalorder %s85, 1
      %p649 = por %p647, %p648
      %p650 = scmp.ne.s32.totalorder %s641, %s642
      %p651 = scmp.eq.s32.totalorder %s85, 0
      %p652 = por %p650, %p651
      %p653 = scmp.ne.s32.totalorder %s641, %s642
      %p654 = scmp.eq.s32.totalorder %s86, 1
      %p655 = por %p653, %p654
      %p657 = scmp.ne.s32.totalorder %s642, %s656
      %p658 = scmp.eq.s32.totalorder %s86, 0
      %p659 = por %p657, %p658
      %s661 = sadd.s32 %s660, 1
      %p664 = scmp.eq.s32.totalorder %s80, 1
      %p665 = scmp.ne.s32.totalorder %s660, %s662
      %p666 = scmp.eq.s32.totalorder %s80, 0
      %p667 = por %p665, %p666
      %p668 = scmp.ne.s32.totalorder %s660, %s662
      %p669 = scmp.eq.s32.totalorder %s85, 1
      %p670 = por %p668, %p669
      %p671 = scmp.ne.s32.totalorder %s662, %s663
      %p672 = scmp.eq.s32.totalorder %s85, 0
      %p673 = por %p671, %p672
      %p674 = scmp.ne.s32.totalorder %s662, %s663
      %p675 = scmp.eq.s32.totalorder %s86, 1
      %p676 = por %p674, %p675
      %p678 = scmp.ne.s32.totalorder %s663, %s677
      %p679 = scmp.eq.s32.totalorder %s86, 0
      %p680 = por %p678, %p679
      %s682 = sadd.s32 %s681, 1
      %p685 = scmp.eq.s32.totalorder %s80, 1
      %p686 = scmp.ne.s32.totalorder %s681, %s683
      %p687 = scmp.eq.s32.totalorder %s80, 0
      %p688 = por %p686, %p687
      %p689 = scmp.ne.s32.totalorder %s681, %s683
      %p690 = scmp.eq.s32.totalorder %s85, 1
      %p691 = por %p689, %p690
      %p692 = scmp.ne.s32.totalorder %s683, %s684
      %p693 = scmp.eq.s32.totalorder %s85, 0
      %p694 = por %p692, %p693
      %p695 = scmp.ne.s32.totalorder %s683, %s684
      %p696 = scmp.eq.s32.totalorder %s86, 1
      %p697 = por %p695, %p696
      %p699 = scmp.ne.s32.totalorder %s684, %s698
      %p700 = scmp.eq.s32.totalorder %s86, 0
      %p701 = por %p699, %p700
      %s703 = sadd.s32 %s702, 1
      %p706 = scmp.eq.s32.totalorder %s80, 1
      %p707 = scmp.ne.s32.totalorder %s702, %s704
      %p708 = scmp.eq.s32.totalorder %s80, 0
      %p709 = por %p707, %p708
      %p710 = scmp.ne.s32.totalorder %s702, %s704
      %p711 = scmp.eq.s32.totalorder %s85, 1
      %p712 = por %p710, %p711
      %p713 = scmp.ne.s32.totalorder %s704, %s705
      %p714 = scmp.eq.s32.totalorder %s85, 0
      %p715 = por %p713, %p714
      %p716 = scmp.ne.s32.totalorder %s704, %s705
      %p717 = scmp.eq.s32.totalorder %s86, 1
      %p718 = por %p716, %p717
      %p720 = scmp.ne.s32.totalorder %s705, %s719
      %p721 = scmp.eq.s32.totalorder %s86, 0
      %p722 = por %p720, %p721
      %s724 = sadd.s32 %s723, 1
      %p727 = scmp.eq.s32.totalorder %s80, 1
      %p728 = scmp.ne.s32.totalorder %s723, %s725
      %p729 = scmp.eq.s32.totalorder %s80, 0
      %p730 = por %p728, %p729
      %p731 = scmp.ne.s32.totalorder %s723, %s725
      %p732 = scmp.eq.s32.totalorder %s85, 1
      %p733 = por %p731, %p732
      %p734 = scmp.ne.s32.totalorder %s725, %s726
      %p735 = scmp.eq.s32.totalorder %s85, 0
      %p736 = por %p734, %p735
      %p737 = scmp.ne.s32.totalorder %s725, %s726
      %p738 = scmp.eq.s32.totalorder %s86, 1
      %p739 = por %p737, %p738
      %p741 = scmp.ne.s32.totalorder %s726, %s740
      %p742 = scmp.eq.s32.totalorder %s86, 0
      %p743 = por %p741, %p742
      %s745 = sadd.s32 %s744, 1
      %p748 = scmp.eq.s32.totalorder %s80, 1
      %p749 = scmp.ne.s32.totalorder %s744, %s746
      %p750 = scmp.eq.s32.totalorder %s80, 0
      %p751 = por %p749, %p750
      %p752 = scmp.ne.s32.totalorder %s744, %s746
      %p753 = scmp.eq.s32.totalorder %s85, 1
      %p754 = por %p752, %p753
      %p755 = scmp.ne.s32.totalorder %s746, %s747
      %p756 = scmp.eq.s32.totalorder %s85, 0
      %p757 = por %p755, %p756
      %p758 = scmp.ne.s32.totalorder %s746, %s747
      %p759 = scmp.eq.s32.totalorder %s86, 1
      %p760 = por %p758, %p759
      %p762 = scmp.ne.s32.totalorder %s747, %s761
      %p763 = scmp.eq.s32.totalorder %s86, 0
      %p764 = por %p762, %p763
      %s766 = sadd.s32 %s765, 1
      %p769 = scmp.eq.s32.totalorder %s80, 1
      %p770 = scmp.ne.s32.totalorder %s765, %s767
      %p771 = scmp.eq.s32.totalorder %s80, 0
      %p772 = por %p770, %p771
      %p773 = scmp.ne.s32.totalorder %s765, %s767
      %p774 = scmp.eq.s32.totalorder %s85, 1
      %p775 = por %p773, %p774
      %p776 = scmp.ne.s32.totalorder %s767, %s768
      %p777 = scmp.eq.s32.totalorder %s85, 0
      %p778 = por %p776, %p777
      %p779 = scmp.ne.s32.totalorder %s767, %s768
      %p780 = scmp.eq.s32.totalorder %s86, 1
      %p781 = por %p779, %p780
      %p783 = scmp.ne.s32.totalorder %s768, %s782
      %p784 = scmp.eq.s32.totalorder %s86, 0
      %p785 = por %p783, %p784
      %s787 = sadd.s32 %s786, 1
      %p790 = scmp.eq.s32.totalorder %s80, 1
      %p791 = scmp.ne.s32.totalorder %s786, %s788
      %p792 = scmp.eq.s32.totalorder %s80, 0
      %p793 = por %p791, %p792
      %p794 = scmp.ne.s32.totalorder %s786, %s788
      %p795 = scmp.eq.s32.totalorder %s85, 1
      %p796 = por %p794, %p795
      %p797 = scmp.ne.s32.totalorder %s788, %s789
      %p798 = scmp.eq.s32.totalorder %s85, 0
      %p799 = por %p797, %p798
      %p800 = scmp.ne.s32.totalorder %s788, %s789
      %p801 = scmp.eq.s32.totalorder %s86, 1
      %p802 = por %p800, %p801
      %p804 = scmp.ne.s32.totalorder %s789, %s803
      %p805 = scmp.eq.s32.totalorder %s86, 0
      %p806 = por %p804, %p805
      %s808 = sadd.s32 %s807, 1
      %p811 = scmp.eq.s32.totalorder %s80, 1
      %p812 = scmp.ne.s32.totalorder %s807, %s809
      %p813 = scmp.eq.s32.totalorder %s80, 0
      %p814 = por %p812, %p813
      %p815 = scmp.ne.s32.totalorder %s807, %s809
      %p816 = scmp.eq.s32.totalorder %s85, 1
      %p817 = por %p815, %p816
      %p818 = scmp.ne.s32.totalorder %s809, %s810
      %p819 = scmp.eq.s32.totalorder %s85, 0
      %p820 = por %p818, %p819
      %p821 = scmp.ne.s32.totalorder %s809, %s810
      %p822 = scmp.eq.s32.totalorder %s86, 1
      %p823 = por %p821, %p822
      %p825 = scmp.ne.s32.totalorder %s810, %s824
      %p826 = scmp.eq.s32.totalorder %s86, 0
      %p827 = por %p825, %p826
      %s828 = ssub.s32 %s80, %s87
      %p829 = scmp.eq.s32.totalorder %s828, 0
      %s831 = sadd.s32 %s830, 1
      %s832 = scalar_select %p829, %s830, %s831
      %p835 = pneg %p829
      %p836 = scmp.eq.s32.totalorder %s80, 1
      %p837 = por %p835, %p836
      %p838 = scmp.ne.s32.totalorder %s830, %s833
      %p839 = scmp.eq.s32.totalorder %s80, 0
      %p840 = por %p838, %p839
      %p841 = scmp.ne.s32.totalorder %s830, %s833
      %p842 = scmp.eq.s32.totalorder %s85, 1
      %p843 = por %p841, %p842
      %p844 = scmp.ne.s32.totalorder %s833, %s834
      %p845 = scmp.eq.s32.totalorder %s85, 0
      %p846 = por %p844, %p845
      %p847 = scmp.ne.s32.totalorder %s833, %s834
      %p848 = scmp.eq.s32.totalorder %s86, 1
      %p849 = por %p847, %p848
      %p851 = scmp.ne.s32.totalorder %s834, %s850
      %p852 = scmp.eq.s32.totalorder %s86, 0
      %p853 = por %p851, %p852
      %p854 = scmp.le.s32.totalorder 1, %s80
      %p855 = scmp.lt.s32.totalorder %s80, 3
      %p856 = pnand %p854, %p855
      %p857 = pneg %p856
      // Predicated region
      $region9: #{wav2vec_cls_forward.1} parent=5 // pred_check
        _
      $region10: #{wav2vec_cls_forward.1} parent=5 // pred_check_branch
        %859 = sbr.rel (%p856) target = $region12
      $region11: #{wav2vec_cls_forward.1} parent=5 // pred_region
        %s860 = ssub.s32 %s80, 1
        // Predicated region
        $region13: #{wav2vec_cls_forward.1} parent=11 // pred_check
          %p861 = pneg %p127
        $region14: #{wav2vec_cls_forward.1} parent=11 // pred_check_branch
          %863 = sbr.rel (%p861) target = $region16
        $region15: #{wav2vec_cls_forward.1} parent=11 // pred_region
          _
        $region16: #{wav2vec_cls_forward.1} parent=11 // pred_fallthru
          _
        // Predicated region
        $region17: #{wav2vec_cls_forward.1} parent=11 // pred_check
          %p864 = pneg %p148
        $region18: #{wav2vec_cls_forward.1} parent=11 // pred_check_branch
          %866 = sbr.rel (%p864) target = $region20
        $region19: #{wav2vec_cls_forward.1} parent=11 // pred_region
          _
        $region20: #{wav2vec_cls_forward.1} parent=11 // pred_fallthru
          _
        // Predicated region
        $region21: #{wav2vec_cls_forward.1} parent=11 // pred_check
          %p867 = pneg %p169
        $region22: #{wav2vec_cls_forward.1} parent=11 // pred_check_branch
          %869 = sbr.rel (%p867) target = $region24
        $region23: #{wav2vec_cls_forward.1} parent=11 // pred_region
          _
        $region24: #{wav2vec_cls_forward.1} parent=11 // pred_fallthru
          _
        // Predicated region
        $region25: #{wav2vec_cls_forward.1} parent=11 // pred_check
          %p870 = pneg %p190
        $region26: #{wav2vec_cls_forward.1} parent=11 // pred_check_branch
          %872 = sbr.rel (%p870) target = $region28
        $region27: #{wav2vec_cls_forward.1} parent=11 // pred_region
          _
        $region28: #{wav2vec_cls_forward.1} parent=11 // pred_fallthru
          _
        // Predicated region
        $region29: #{wav2vec_cls_forward.1} parent=11 // pred_check
          %p873 = pneg %p211
        $region30: #{wav2vec_cls_forward.1} parent=11 // pred_check_branch
          %875 = sbr.rel (%p873) target = $region32
        $region31: #{wav2vec_cls_forward.1} parent=11 // pred_region
          _
        $region32: #{wav2vec_cls_forward.1} parent=11 // pred_fallthru
          _
        // Predicated region
        $region33: #{wav2vec_cls_forward.1} parent=11 // pred_check
          %p876 = pneg %p232
        $region34: #{wav2vec_cls_forward.1} parent=11 // pred_check_branch
          %878 = sbr.rel (%p876) target = $region36
        $region35: #{wav2vec_cls_forward.1} parent=11 // pred_region
          _
        $region36: #{wav2vec_cls_forward.1} parent=11 // pred_fallthru
          _
        // Predicated region
        $region37: #{wav2vec_cls_forward.1} parent=11 // pred_check
          %p879 = pneg %p253
        $region38: #{wav2vec_cls_forward.1} parent=11 // pred_check_branch
          %881 = sbr.rel (%p879) target = $region40
        $region39: #{wav2vec_cls_forward.1} parent=11 // pred_region
          _
        $region40: #{wav2vec_cls_forward.1} parent=11 // pred_fallthru
          _
        // Predicated region
        $region41: #{wav2vec_cls_forward.1} parent=11 // pred_check
          %p882 = pneg %p274
        $region42: #{wav2vec_cls_forward.1} parent=11 // pred_check_branch
          %884 = sbr.rel (%p882) target = $region44
        $region43: #{wav2vec_cls_forward.1} parent=11 // pred_region
          _
        $region44: #{wav2vec_cls_forward.1} parent=11 // pred_fallthru
          _
        // Predicated region
        $region45: #{wav2vec_cls_forward.1} parent=11 // pred_check
          %p885 = pneg %p295
        $region46: #{wav2vec_cls_forward.1} parent=11 // pred_check_branch
          %887 = sbr.rel (%p885) target = $region48
        $region47: #{wav2vec_cls_forward.1} parent=11 // pred_region
          _
        $region48: #{wav2vec_cls_forward.1} parent=11 // pred_fallthru
          _
        // Predicated region
        $region49: #{wav2vec_cls_forward.1} parent=11 // pred_check
          %p888 = pneg %p316
        $region50: #{wav2vec_cls_forward.1} parent=11 // pred_check_branch
          %890 = sbr.rel (%p888) target = $region52
        $region51: #{wav2vec_cls_forward.1} parent=11 // pred_region
          _
        $region52: #{wav2vec_cls_forward.1} parent=11 // pred_fallthru
          _
        // Predicated region
        $region53: #{wav2vec_cls_forward.1} parent=11 // pred_check
          %p891 = pneg %p337
        $region54: #{wav2vec_cls_forward.1} parent=11 // pred_check_branch
          %893 = sbr.rel (%p891) target = $region56
        $region55: #{wav2vec_cls_forward.1} parent=11 // pred_region
          _
        $region56: #{wav2vec_cls_forward.1} parent=11 // pred_fallthru
          _
        // Predicated region
        $region57: #{wav2vec_cls_forward.1} parent=11 // pred_check
          %p894 = pneg %p358
        $region58: #{wav2vec_cls_forward.1} parent=11 // pred_check_branch
          %896 = sbr.rel (%p894) target = $region60
        $region59: #{wav2vec_cls_forward.1} parent=11 // pred_region
          _
        $region60: #{wav2vec_cls_forward.1} parent=11 // pred_fallthru
          _
        // Predicated region
        $region61: #{wav2vec_cls_forward.1} parent=11 // pred_check
          %p897 = pneg %p379
        $region62: #{wav2vec_cls_forward.1} parent=11 // pred_check_branch
          %899 = sbr.rel (%p897) target = $region64
        $region63: #{wav2vec_cls_forward.1} parent=11 // pred_region
          _
        $region64: #{wav2vec_cls_forward.1} parent=11 // pred_fallthru
          _
        // Predicated region
        $region65: #{wav2vec_cls_forward.1} parent=11 // pred_check
          %p900 = pneg %p400
        $region66: #{wav2vec_cls_forward.1} parent=11 // pred_check_branch
          %902 = sbr.rel (%p900) target = $region68
        $region67: #{wav2vec_cls_forward.1} parent=11 // pred_region
          _
        $region68: #{wav2vec_cls_forward.1} parent=11 // pred_fallthru
          _
        // Predicated region
        $region69: #{wav2vec_cls_forward.1} parent=11 // pred_check
          %p903 = pneg %p421
        $region70: #{wav2vec_cls_forward.1} parent=11 // pred_check_branch
          %905 = sbr.rel (%p903) target = $region72
        $region71: #{wav2vec_cls_forward.1} parent=11 // pred_region
          _
        $region72: #{wav2vec_cls_forward.1} parent=11 // pred_fallthru
          _
        // Predicated region
        $region73: #{wav2vec_cls_forward.1} parent=11 // pred_check
          %p906 = pneg %p442
        $region74: #{wav2vec_cls_forward.1} parent=11 // pred_check_branch
          %908 = sbr.rel (%p906) target = $region76
        $region75: #{wav2vec_cls_forward.1} parent=11 // pred_region
          _
        $region76: #{wav2vec_cls_forward.1} parent=11 // pred_fallthru
          _
        // Predicated region
        $region77: #{wav2vec_cls_forward.1} parent=11 // pred_check
          %p909 = pneg %p463
        $region78: #{wav2vec_cls_forward.1} parent=11 // pred_check_branch
          %911 = sbr.rel (%p909) target = $region80
        $region79: #{wav2vec_cls_forward.1} parent=11 // pred_region
          _
        $region80: #{wav2vec_cls_forward.1} parent=11 // pred_fallthru
          _
        // Predicated region
        $region81: #{wav2vec_cls_forward.1} parent=11 // pred_check
          %p912 = pneg %p484
        $region82: #{wav2vec_cls_forward.1} parent=11 // pred_check_branch
          %914 = sbr.rel (%p912) target = $region84
        $region83: #{wav2vec_cls_forward.1} parent=11 // pred_region
          _
        $region84: #{wav2vec_cls_forward.1} parent=11 // pred_fallthru
          _
        // Predicated region
        $region85: #{wav2vec_cls_forward.1} parent=11 // pred_check
          %p915 = pneg %p505
        $region86: #{wav2vec_cls_forward.1} parent=11 // pred_check_branch
          %917 = sbr.rel (%p915) target = $region88
        $region87: #{wav2vec_cls_forward.1} parent=11 // pred_region
          _
        $region88: #{wav2vec_cls_forward.1} parent=11 // pred_fallthru
          _
        // Predicated region
        $region89: #{wav2vec_cls_forward.1} parent=11 // pred_check
          %p918 = pneg %p526
        $region90: #{wav2vec_cls_forward.1} parent=11 // pred_check_branch
          %920 = sbr.rel (%p918) target = $region92
        $region91: #{wav2vec_cls_forward.1} parent=11 // pred_region
          _
        $region92: #{wav2vec_cls_forward.1} parent=11 // pred_fallthru
          _
        // Predicated region
        $region93: #{wav2vec_cls_forward.1} parent=11 // pred_check
          %p921 = pneg %p547
        $region94: #{wav2vec_cls_forward.1} parent=11 // pred_check_branch
          %923 = sbr.rel (%p921) target = $region96
        $region95: #{wav2vec_cls_forward.1} parent=11 // pred_region
          _
        $region96: #{wav2vec_cls_forward.1} parent=11 // pred_fallthru
          _
        // Predicated region
        $region97: #{wav2vec_cls_forward.1} parent=11 // pred_check
          %p924 = pneg %p568
        $region98: #{wav2vec_cls_forward.1} parent=11 // pred_check_branch
          %926 = sbr.rel (%p924) target = $region100
        $region99: #{wav2vec_cls_forward.1} parent=11 // pred_region
          _
        $region100: #{wav2vec_cls_forward.1} parent=11 // pred_fallthru
          _
        // Predicated region
        $region101: #{wav2vec_cls_forward.1} parent=11 // pred_check
          %p927 = pneg %p589
        $region102: #{wav2vec_cls_forward.1} parent=11 // pred_check_branch
          %929 = sbr.rel (%p927) target = $region104
        $region103: #{wav2vec_cls_forward.1} parent=11 // pred_region
          _
        $region104: #{wav2vec_cls_forward.1} parent=11 // pred_fallthru
          _
        // Predicated region
        $region105: #{wav2vec_cls_forward.1} parent=11 // pred_check
          %p930 = pneg %p610
        $region106: #{wav2vec_cls_forward.1} parent=11 // pred_check_branch
          %932 = sbr.rel (%p930) target = $region108
        $region107: #{wav2vec_cls_forward.1} parent=11 // pred_region
          _
        $region108: #{wav2vec_cls_forward.1} parent=11 // pred_fallthru
          _
        // Predicated region
        $region109: #{wav2vec_cls_forward.1} parent=11 // pred_check
          %p933 = pneg %p631
        $region110: #{wav2vec_cls_forward.1} parent=11 // pred_check_branch
          %935 = sbr.rel (%p933) target = $region112
        $region111: #{wav2vec_cls_forward.1} parent=11 // pred_region
          _
        $region112: #{wav2vec_cls_forward.1} parent=11 // pred_fallthru
          _
        // Predicated region
        $region113: #{wav2vec_cls_forward.1} parent=11 // pred_check
          %p936 = pneg %p652
        $region114: #{wav2vec_cls_forward.1} parent=11 // pred_check_branch
          %938 = sbr.rel (%p936) target = $region116
        $region115: #{wav2vec_cls_forward.1} parent=11 // pred_region
          _
        $region116: #{wav2vec_cls_forward.1} parent=11 // pred_fallthru
          _
        // Predicated region
        $region117: #{wav2vec_cls_forward.1} parent=11 // pred_check
          %p939 = pneg %p673
        $region118: #{wav2vec_cls_forward.1} parent=11 // pred_check_branch
          %941 = sbr.rel (%p939) target = $region120
        $region119: #{wav2vec_cls_forward.1} parent=11 // pred_region
          _
        $region120: #{wav2vec_cls_forward.1} parent=11 // pred_fallthru
          _
        // Predicated region
        $region121: #{wav2vec_cls_forward.1} parent=11 // pred_check
          %p942 = pneg %p694
        $region122: #{wav2vec_cls_forward.1} parent=11 // pred_check_branch
          %944 = sbr.rel (%p942) target = $region124
        $region123: #{wav2vec_cls_forward.1} parent=11 // pred_region
          _
        $region124: #{wav2vec_cls_forward.1} parent=11 // pred_fallthru
          _
        // Predicated region
        $region125: #{wav2vec_cls_forward.1} parent=11 // pred_check
          %p945 = pneg %p715
        $region126: #{wav2vec_cls_forward.1} parent=11 // pred_check_branch
          %947 = sbr.rel (%p945) target = $region128
        $region127: #{wav2vec_cls_forward.1} parent=11 // pred_region
          _
        $region128: #{wav2vec_cls_forward.1} parent=11 // pred_fallthru
          _
        // Predicated region
        $region129: #{wav2vec_cls_forward.1} parent=11 // pred_check
          %p948 = pneg %p736
        $region130: #{wav2vec_cls_forward.1} parent=11 // pred_check_branch
          %950 = sbr.rel (%p948) target = $region132
        $region131: #{wav2vec_cls_forward.1} parent=11 // pred_region
          _
        $region132: #{wav2vec_cls_forward.1} parent=11 // pred_fallthru
          _
        // Predicated region
        $region133: #{wav2vec_cls_forward.1} parent=11 // pred_check
          %p951 = pneg %p757
        $region134: #{wav2vec_cls_forward.1} parent=11 // pred_check_branch
          %953 = sbr.rel (%p951) target = $region136
        $region135: #{wav2vec_cls_forward.1} parent=11 // pred_region
          _
        $region136: #{wav2vec_cls_forward.1} parent=11 // pred_fallthru
          _
        // Predicated region
        $region137: #{wav2vec_cls_forward.1} parent=11 // pred_check
          %p954 = pneg %p778
        $region138: #{wav2vec_cls_forward.1} parent=11 // pred_check_branch
          %956 = sbr.rel (%p954) target = $region140
        $region139: #{wav2vec_cls_forward.1} parent=11 // pred_region
          _
        $region140: #{wav2vec_cls_forward.1} parent=11 // pred_fallthru
          _
        // Predicated region
        $region141: #{wav2vec_cls_forward.1} parent=11 // pred_check
          %p957 = pneg %p799
        $region142: #{wav2vec_cls_forward.1} parent=11 // pred_check_branch
          %959 = sbr.rel (%p957) target = $region144
        $region143: #{wav2vec_cls_forward.1} parent=11 // pred_region
          _
        $region144: #{wav2vec_cls_forward.1} parent=11 // pred_fallthru
          _
        // Predicated region
        $region145: #{wav2vec_cls_forward.1} parent=11 // pred_check
          %p960 = pneg %p820
        $region146: #{wav2vec_cls_forward.1} parent=11 // pred_check_branch
          %962 = sbr.rel (%p960) target = $region148
        $region147: #{wav2vec_cls_forward.1} parent=11 // pred_region
          _
        $region148: #{wav2vec_cls_forward.1} parent=11 // pred_fallthru
          _
      $region12: #{wav2vec_cls_forward.1} parent=5 // pred_fallthru
        _
      %p963 = scmp.lt.s32.totalorder %s80, 2
      // Predicated region
      $region149: #{wav2vec_cls_forward.1} parent=5 // pred_check
        %p964 = pneg %p963
      $region150: #{wav2vec_cls_forward.1} parent=5 // pred_check_branch
        %966 = sbr.rel (%p964) target = $region152
      $region151: #{wav2vec_cls_forward.1} parent=5 // pred_region
        // Predicated region
        $region153: #{wav2vec_cls_forward.1} parent=151 // pred_check
          %p967 = pneg %p100
        $region154: #{wav2vec_cls_forward.1} parent=151 // pred_check_branch
          %969 = sbr.rel (%p967) target = $region156
        $region155: #{wav2vec_cls_forward.1} parent=151 // pred_region
          %p970 = scmp.lt.s32.totalorder %s80, 1
          %s971 = scalar_select %p970, %s80, 1
          %s972 = smul.addr %s971, 8
          %s973 = smul.addr %s972, 8
          %s974 = scalar_lea.vmem %s1, %s973
        $region156: #{wav2vec_cls_forward.1} parent=151 // pred_fallthru
          _
      $region152: #{wav2vec_cls_forward.1} parent=5 // pred_fallthru
        _
      %p975 = scmp.le.s32.totalorder 1, %s80
      %p976 = scmp.lt.s32.totalorder %s80, 3
      %p977 = pnand %p975, %p976
      %p978 = pneg %p977
      // Predicated region
      $region157: #{wav2vec_cls_forward.1} parent=5 // pred_check
        _
      $region158: #{wav2vec_cls_forward.1} parent=5 // pred_check_branch
        %980 = sbr.rel (%p977) target = $region160
      $region159: #{wav2vec_cls_forward.1} parent=5 // pred_region
        %s981 = ssub.s32 %s80, 1
        %p982 = scmp.lt.s32.totalorder %s85, 1
        %s983 = scalar_select %p982, %s85, 1
        %s984 = smul.addr %s983, 8
        %s985 = smul.addr %s984, 8
        %s986 = scalar_lea.vmem %s1, %s985
        %p987 = pneg %p106
        %p988 = pneg %p103
        %p989 = pneg %p127
        %p990 = pneg %p124
        %p991 = pneg %p148
        %p992 = pneg %p145
        %p993 = pneg %p169
        %p994 = pneg %p166
        %p995 = pneg %p190
        %p996 = pneg %p187
        %p997 = pneg %p211
        %p998 = pneg %p208
        %p999 = pneg %p232
        %p1000 = pneg %p229
        %p1001 = pneg %p253
        %p1002 = pneg %p250
        %p1003 = pneg %p274
        %p1004 = pneg %p271
        %p1005 = pneg %p295
        %p1006 = pneg %p292
        %p1007 = pneg %p316
        %p1008 = pneg %p313
        %p1009 = pneg %p337
        %p1010 = pneg %p334
        %p1011 = pneg %p358
        %p1012 = pneg %p355
        %p1013 = pneg %p379
        %p1014 = pneg %p376
        %p1015 = pneg %p400
        %p1016 = pneg %p397
        %p1017 = pneg %p421
        %p1018 = pneg %p418
        %p1019 = pneg %p442
        %p1020 = pneg %p439
        %p1021 = pneg %p463
        %p1022 = pneg %p460
        %p1023 = pneg %p484
        %p1024 = pneg %p481
        %p1025 = pneg %p505
        %p1026 = pneg %p502
        %p1027 = pneg %p526
        %p1028 = pneg %p523
        %p1029 = pneg %p547
        %p1030 = pneg %p544
        %p1031 = pneg %p568
        %p1032 = pneg %p565
        %p1033 = pneg %p589
        %p1034 = pneg %p586
        %p1035 = pneg %p610
        %p1036 = pneg %p607
        %p1037 = pneg %p631
        %p1038 = pneg %p628
        %p1039 = pneg %p652
        %p1040 = pneg %p649
        %p1041 = pneg %p673
        %p1042 = pneg %p670
        %p1043 = pneg %p694
        %p1044 = pneg %p691
        %p1045 = pneg %p715
        %p1046 = pneg %p712
        %p1047 = pneg %p736
        %p1048 = pneg %p733
        %p1049 = pneg %p757
        %p1050 = pneg %p754
        %p1051 = pneg %p778
        %p1052 = pneg %p775
        %p1053 = pneg %p799
        %p1054 = pneg %p796
        %p1055 = pneg %p820
        %p1056 = pneg %p817
        %p1057 = pneg %p846
        %p1058 = pneg %p843
        %s1059 = sand.u32 %s833, 1
        %s1060 = scalar_lea.sflag [#allocation3], %s1059
        %s1061 = sand.u32 %s833, 1
        %s1062 = scalar_lea.vmem [#allocation2], %s1061
        %p1063 = scmp.lt.s32.totalorder %s85, 1
        %s1064 = scalar_select %p1063, %s85, 1
        %s1065 = smul.addr %s1064, 8
        %s1066 = smul.addr %s1065, 8
        %s1067 = scalar_lea.vmem %s1, %s1066
        %v1069 = vld [vmem:[%s1067] sm:$0xff]
        %v1070 = vld [vmem:[%s1067 + $0x8] sm:$0xff]
        %v1071 = vld [vmem:[%s1067 + $0x10] sm:$0xff]
        %v1072 = vld [vmem:[%s1067 + $0x18] sm:$0xff]
        %v1073 = vld [vmem:[%s1067 + $0x20] sm:$0xff]
        %v1074 = vld [vmem:[%s1067 + $0x28] sm:$0xff]
        %v1075 = vld [vmem:[%s1067 + $0x30] sm:$0xff]
        %v1076 = vld [vmem:[%s1067 + $0x38] sm:$0x7f]
        %v1077 = vpack.c.bf16 %v1070, %v1069
        %v1078 = vpack.c.bf16 %v1072, %v1071
        %v1079 = vpack.c.bf16 %v1074, %v1073
        %v1080 = vpack.c.bf16 %v1076, %v1075
        %v1081 = vld [vmem:[%s3] sm:$0xf]
        %v1082 = vld [vmem:[%s3 + $0x4] sm:$0x1]
        %v1083 = vld [vmem:[%s5] sm:$0x1]
        %v1085 = vlaneseq
        %v1086 = vshrl.u32 %v1085, 7
        %v1087 = vsub.s32 0, %v1086
        %v1088 = vrot.slane %v1083, %v1087
        %v1092 = vunpack.c.l.b16 %v1081
        %v1093 = vunpack.c.l.b16 %v1082
        %v1094 = vpack.c.b16 %v1093, %v1092
        %vm1095 = vcmask 80896
        %v1097 = vsel %vm1095, %v1077, 0
        %v1100 = vsel %vm1095, %v1078, 0
        %v1103 = vsel %vm1095, %v1079, 0
        %v1106 = vsel %vm1095, %v1080, 0
        %vm1108 = vcmask 1044480
        %v1110 = vsel %vm1108, %v1094, 0
        %1112 = vmatprep.subr.bf16.mxu0 0
        %1113 = vmatpush1.bf16.msra.mxu0 %v1110
        %1114 = vmatprep.subr.bf16.mxu0 0
        %1115 = vmatpush1.bf16.msra.mxu0 0
        %1116 = vmatprep.subr.bf16.mxu0 0
        %1117 = vmatpush1.bf16.msra.mxu0 0
        %1118 = vmatprep.subr.bf16.mxu0 0
        %1119 = vmatpush1.bf16.msra.mxu0 0
        %1120 = vmatprep.subr.bf16.mxu0 0
        %1121 = vmatpush1.bf16.msra.mxu0 0
        %1122 = vmatprep.subr.bf16.mxu0 0
        %1123 = vmatpush1.bf16.msra.mxu0 0
        %1124 = vmatprep.subr.bf16.mxu0 0
        %1125 = vmatpush1.bf16.msra.mxu0 0
        %1126 = vmatprep.subr.bf16.mxu0 0
        %1127 = vmatpush1.bf16.msra.mxu0 0
        %1128 = vmatprep.subr.bf16.mxu0 0
        %1129 = vmatpush1.bf16.msra.mxu0 0
        %1130 = vmatprep.subr.bf16.mxu0 0
        %1131 = vmatpush1.bf16.msra.mxu0 0
        %1132 = vmatprep.subr.bf16.mxu0 0
        %1133 = vmatpush1.bf16.msra.mxu0 0
        %1134 = vmatprep.subr.bf16.mxu0 0
        %1135 = vmatpush1.bf16.msra.mxu0 0
        %1136 = vmatprep.subr.bf16.mxu0 0
        %1137 = vmatpush1.bf16.msra.mxu0 0
        %1138 = vmatprep.subr.bf16.mxu0 0
        %1139 = vmatpush1.bf16.msra.mxu0 0
        %1140 = vmatprep.subr.bf16.mxu0 0
        %1141 = vmatpush1.bf16.msra.mxu0 0
        %1142 = vmatprep.subr.bf16.mxu0 0
        %1143 = vmatpush1.bf16.msra.mxu0 0
        %1144 = vmatprep.mubr.bf16.mxu0 0
        %1145 = vmatmul.mubr.bf16.gmra.mrb[0].mxu0 %v1097
        %v1146 = vpop.f32.mrb[0].mxu0
        %v1147 = vadd.f32 %v1088, %v1146
        %v1148 = vpop.f32.mrb[0].mxu0
        %v1149 = vpop.f32.mrb[0].mxu0
        %v1150 = vadd.f32 %v1088, %v1149
        %v1151 = vpop.f32.mrb[0].mxu0
        %1152 = vmatprep.mubr.bf16.mxu0 0
        %1153 = vmatmul.mubr.bf16.gmra.mrb[0].mxu0 %v1100
        %v1154 = vpop.f32.mrb[0].mxu0
        %v1155 = vadd.f32 %v1088, %v1154
        %v1156 = vpop.f32.mrb[0].mxu0
        %v1157 = vpop.f32.mrb[0].mxu0
        %v1158 = vadd.f32 %v1088, %v1157
        %v1159 = vpop.f32.mrb[0].mxu0
        %1160 = vmatprep.mubr.bf16.mxu0 0
        %1161 = vmatmul.mubr.bf16.gmra.mrb[0].mxu0 %v1103
        %v1162 = vpop.f32.mrb[0].mxu0
        %v1163 = vadd.f32 %v1088, %v1162
        %v1164 = vpop.f32.mrb[0].mxu0
        %v1165 = vpop.f32.mrb[0].mxu0
        %v1166 = vadd.f32 %v1088, %v1165
        %v1167 = vpop.f32.mrb[0].mxu0
        %1168 = vmatprep.mubr.bf16.mxu0 0
        %1169 = vmatmul.mubr.bf16.gmra.mrb[0].mxu0 %v1106
        %v1170 = vpop.f32.mrb[0].mxu0
        %v1171 = vadd.f32 %v1088, %v1170
        %v1172 = vpop.f32.mrb[0].mxu0
        %v1173 = vpop.f32.mrb[0].mxu0
        %v1174 = vadd.f32 %v1088, %v1173
        %v1175 = vpop.f32.mrb[0].mxu0
        %1176 = vdwg.mxu0
        %v1177 = vld [vmem:[%s7] sm:$0x1]
        %v1178 = vld [vmem:[%s9] sm:$0x1]
        %vm1179 = vcmask 261120
        %v1180 = vsel %vm1179, %v1147, 0.0
        %1181 = vadd.xlane.f32.xlu0 %v1180
        %v1182 = vpop.xlane.xlu0 %1181
        %v1183 = vsel %vm1179, %v1150, 0.0
        %1184 = vadd.xlane.f32.xlu0 %v1183
        %v1185 = vpop.xlane.xlu0 %1184
        %v1186 = vsel %vm1179, %v1155, 0.0
        %1187 = vadd.xlane.f32.xlu0 %v1186
        %v1188 = vpop.xlane.xlu0 %1187
        %v1189 = vsel %vm1179, %v1158, 0.0
        %1190 = vadd.xlane.f32.xlu0 %v1189
        %v1191 = vpop.xlane.xlu0 %1190
        %v1192 = vsel %vm1179, %v1163, 0.0
        %1193 = vadd.xlane.f32.xlu0 %v1192
        %v1194 = vpop.xlane.xlu0 %1193
        %v1195 = vsel %vm1179, %v1166, 0.0
        %1196 = vadd.xlane.f32.xlu0 %v1195
        %v1197 = vpop.xlane.xlu0 %1196
        %v1198 = vsel %vm1179, %v1171, 0.0
        %1199 = vadd.xlane.f32.xlu0 %v1198
        %v1200 = vpop.xlane.xlu0 %1199
        %vm1201 = vcmask 260096
        %v1202 = vsel %vm1201, %v1174, 0.0
        %1203 = vadd.xlane.f32.xlu0 %v1202
        %v1204 = vpop.xlane.xlu0 %1203
        %v1205 = vrcp.pop 32.0
        %v1206 = vmul.f32 %v1182, %v1205
        %v1207 = vmul.f32 %v1185, %v1205
        %v1208 = vmul.f32 %v1188, %v1205
        %v1209 = vmul.f32 %v1191, %v1205
        %v1210 = vmul.f32 %v1194, %v1205
        %v1211 = vmul.f32 %v1197, %v1205
        %v1212 = vmul.f32 %v1200, %v1205
        %v1213 = vmul.f32 %v1204, %v1205
        %v1214 = vsub.f32 %v1147, %v1206
        %v1215 = vsub.f32 %v1150, %v1207
        %v1216 = vsub.f32 %v1155, %v1208
        %v1217 = vsub.f32 %v1158, %v1209
        %v1218 = vsub.f32 %v1163, %v1210
        %v1219 = vsub.f32 %v1166, %v1211
        %v1220 = vsub.f32 %v1171, %v1212
        %v1221 = vsub.f32 %v1174, %v1213
        %v1222 = vmul.f32 %v1214, %v1214
        %v1223 = vmul.f32 %v1215, %v1215
        %v1224 = vmul.f32 %v1216, %v1216
        %v1225 = vmul.f32 %v1217, %v1217
        %v1226 = vmul.f32 %v1218, %v1218
        %v1227 = vmul.f32 %v1219, %v1219
        %v1228 = vmul.f32 %v1220, %v1220
        %v1229 = vmul.f32 %v1221, %v1221
        %v1230 = vsel %vm1179, %v1222, 0.0
        %1231 = vadd.xlane.f32.xlu0 %v1230
        %v1232 = vpop.xlane.xlu0 %1231
        %v1233 = vsel %vm1179, %v1223, 0.0
        %1234 = vadd.xlane.f32.xlu0 %v1233
        %v1235 = vpop.xlane.xlu0 %1234
        %v1236 = vsel %vm1179, %v1224, 0.0
        %1237 = vadd.xlane.f32.xlu0 %v1236
        %v1238 = vpop.xlane.xlu0 %1237
        %v1239 = vsel %vm1179, %v1225, 0.0
        %1240 = vadd.xlane.f32.xlu0 %v1239
        %v1241 = vpop.xlane.xlu0 %1240
        %v1242 = vsel %vm1179, %v1226, 0.0
        %1243 = vadd.xlane.f32.xlu0 %v1242
        %v1244 = vpop.xlane.xlu0 %1243
        %v1245 = vsel %vm1179, %v1227, 0.0
        %1246 = vadd.xlane.f32.xlu0 %v1245
        %v1247 = vpop.xlane.xlu0 %1246
        %v1248 = vsel %vm1179, %v1228, 0.0
        %1249 = vadd.xlane.f32.xlu0 %v1248
        %v1250 = vpop.xlane.xlu0 %1249
        %v1251 = vsel %vm1201, %v1229, 0.0
        %1252 = vadd.xlane.f32.xlu0 %v1251
        %v1253 = vpop.xlane.xlu0 %1252
        %v1254 = vmul.f32 %v1232, %v1205
        %v1255 = vmul.f32 %v1235, %v1205
        %v1256 = vmul.f32 %v1238, %v1205
        %v1257 = vmul.f32 %v1241, %v1205
        %v1258 = vmul.f32 %v1244, %v1205
        %v1259 = vmul.f32 %v1247, %v1205
        %v1260 = vmul.f32 %v1250, %v1205
        %v1261 = vmul.f32 %v1253, %v1205
        %v1262 = vadd.f32 %v1254, 1e-05
        %v1263 = vadd.f32 %v1255, 1e-05
        %v1264 = vadd.f32 %v1256, 1e-05
        %v1265 = vadd.f32 %v1257, 1e-05
        %v1266 = vadd.f32 %v1258, 1e-05
        %v1267 = vadd.f32 %v1259, 1e-05
        %v1268 = vadd.f32 %v1260, 1e-05
        %v1269 = vadd.f32 %v1261, 1e-05
        %v1270 = vrsqrt.pop %v1262
        %v1271 = vrsqrt.pop %v1263
        %v1272 = vrsqrt.pop %v1264
        %v1273 = vrsqrt.pop %v1265
        %v1274 = vrsqrt.pop %v1266
        %v1275 = vrsqrt.pop %v1267
        %v1276 = vrsqrt.pop %v1268
        %v1277 = vrsqrt.pop %v1269
        %v1278 = vmul.f32 %v1214, %v1270
        %v1279 = vmul.f32 %v1215, %v1271
        %v1280 = vmul.f32 %v1216, %v1272
        %v1281 = vmul.f32 %v1217, %v1273
        %v1282 = vmul.f32 %v1218, %v1274
        %v1283 = vmul.f32 %v1219, %v1275
        %v1284 = vmul.f32 %v1220, %v1276
        %v1285 = vmul.f32 %v1221, %v1277
        %v1287 = vlaneseq
        %v1288 = vshrl.u32 %v1287, 7
        %v1289 = vsub.s32 0, %v1288
        %v1290 = vrot.slane %v1177, %v1289
        %v1292 = vmul.f32 %v1278, %v1290
        %v1293 = vmul.f32 %v1279, %v1290
        %v1294 = vmul.f32 %v1280, %v1290
        %v1295 = vmul.f32 %v1281, %v1290
        %v1296 = vmul.f32 %v1282, %v1290
        %v1297 = vmul.f32 %v1283, %v1290
        %v1298 = vmul.f32 %v1284, %v1290
        %v1299 = vmul.f32 %v1285, %v1290
        %v1301 = vlaneseq
        %v1302 = vshrl.u32 %v1301, 7
        %v1303 = vsub.s32 0, %v1302
        %v1304 = vrot.slane %v1178, %v1303
        %v1306 = vadd.f32 %v1292, %v1304
        %v1307 = vadd.f32 %v1293, %v1304
        %v1308 = vadd.f32 %v1294, %v1304
        %v1309 = vadd.f32 %v1295, %v1304
        %v1310 = vadd.f32 %v1296, %v1304
        %v1311 = vadd.f32 %v1297, %v1304
        %v1312 = vadd.f32 %v1298, %v1304
        %v1313 = vadd.f32 %v1299, %v1304
        %v1314 = vmul.f32 %v1306, 0.5
        %v1315 = vmul.f32 %v1307, 0.5
        %v1316 = vmul.f32 %v1308, 0.5
        %v1317 = vmul.f32 %v1309, 0.5
        %v1318 = vmul.f32 %v1310, 0.5
        %v1319 = vmul.f32 %v1311, 0.5
        %v1320 = vmul.f32 %v1312, 0.5
        %v1321 = vmul.f32 %v1313, 0.5
        %v1322 = vmul.f32 %v1306, 0.044715
        %v1323 = vmul.f32 %v1307, 0.044715
        %v1324 = vmul.f32 %v1308, 0.044715
        %v1325 = vmul.f32 %v1309, 0.044715
        %v1326 = vmul.f32 %v1310, 0.044715
        %v1327 = vmul.f32 %v1311, 0.044715
        %v1328 = vmul.f32 %v1312, 0.044715
        %v1329 = vmul.f32 %v1313, 0.044715
        %v1330 = vmul.f32 %v1322, %v1306
        %v1331 = vmul.f32 %v1323, %v1307
        %v1332 = vmul.f32 %v1324, %v1308
        %v1333 = vmul.f32 %v1325, %v1309
        %v1334 = vmul.f32 %v1326, %v1310
        %v1335 = vmul.f32 %v1327, %v1311
        %v1336 = vmul.f32 %v1328, %v1312
        %v1337 = vmul.f32 %v1329, %v1313
        %v1338 = vmul.f32 %v1330, %v1306
        %v1339 = vmul.f32 %v1331, %v1307
        %v1340 = vmul.f32 %v1332, %v1308
        %v1341 = vmul.f32 %v1333, %v1309
        %v1342 = vmul.f32 %v1334, %v1310
        %v1343 = vmul.f32 %v1335, %v1311
        %v1344 = vmul.f32 %v1336, %v1312
        %v1345 = vmul.f32 %v1337, %v1313
        %v1346 = vadd.f32 %v1306, %v1338
        %v1347 = vadd.f32 %v1307, %v1339
        %v1348 = vadd.f32 %v1308, %v1340
        %v1349 = vadd.f32 %v1309, %v1341
        %v1350 = vadd.f32 %v1310, %v1342
        %v1351 = vadd.f32 %v1311, %v1343
        %v1352 = vadd.f32 %v1312, %v1344
        %v1353 = vadd.f32 %v1313, %v1345
        %v1354 = vmul.f32 %v1346, 0.7978846
        %v1355 = vmul.f32 %v1347, 0.7978846
        %v1356 = vmul.f32 %v1348, 0.7978846
        %v1357 = vmul.f32 %v1349, 0.7978846
        %v1358 = vmul.f32 %v1350, 0.7978846
        %v1359 = vmul.f32 %v1351, 0.7978846
        %v1360 = vmul.f32 %v1352, 0.7978846
        %v1361 = vmul.f32 %v1353, 0.7978846
        %v1362 = vtanh.pop %v1354
        %v1363 = vtanh.pop %v1355
        %v1364 = vtanh.pop %v1356
        %v1365 = vtanh.pop %v1357
        %v1366 = vtanh.pop %v1358
        %v1367 = vtanh.pop %v1359
        %v1368 = vtanh.pop %v1360
        %v1369 = vtanh.pop %v1361
        %v1370 = vadd.f32 %v1362, 1.0
        %v1371 = vadd.f32 %v1363, 1.0
        %v1372 = vadd.f32 %v1364, 1.0
        %v1373 = vadd.f32 %v1365, 1.0
        %v1374 = vadd.f32 %v1366, 1.0
        %v1375 = vadd.f32 %v1367, 1.0
        %v1376 = vadd.f32 %v1368, 1.0
        %v1377 = vadd.f32 %v1369, 1.0
        %v1378 = vmul.f32 %v1314, %v1370
        %v1379 = vmul.f32 %v1315, %v1371
        %v1380 = vmul.f32 %v1316, %v1372
        %v1381 = vmul.f32 %v1317, %v1373
        %v1382 = vmul.f32 %v1318, %v1374
        %v1383 = vmul.f32 %v1319, %v1375
        %v1384 = vmul.f32 %v1320, %v1376
        %v1385 = vmul.f32 %v1321, %v1377
        %vm1394 = vcmask 1046528
        %v1395 = vrot.slane %v1378, 1
        %v1396 = vrot.slane %v1379, 1
        %v1397 = vsel %vm1394, %v1395, %v1396
        %v1398 = vrot.slane %v1380, 1
        %v1399 = vsel %vm1394, %v1396, %v1398
        %v1400 = vrot.slane %v1381, 1
        %v1401 = vsel %vm1394, %v1398, %v1400
        %v1402 = vrot.slane %v1382, 1
        %v1403 = vsel %vm1394, %v1400, %v1402
        %v1404 = vrot.slane %v1383, 1
        %v1405 = vsel %vm1394, %v1402, %v1404
        %v1406 = vrot.slane %v1384, 1
        %v1407 = vsel %vm1394, %v1404, %v1406
        %v1408 = vrot.slane %v1385, 1
        %v1409 = vsel %vm1394, %v1406, %v1408
        %1410 = vrot.lane.b32.xlu0 %v1397, 32
        %v1411 = vpop.permute.xlu0 %1410
        %1412 = vrot.lane.b32.xlu0 %v1399, 32
        %v1413 = vpop.permute.xlu0 %1412
        %1414 = vrot.lane.b32.xlu0 %v1401, 32
        %v1415 = vpop.permute.xlu0 %1414
        %1416 = vrot.lane.b32.xlu0 %v1403, 32
        %v1417 = vpop.permute.xlu0 %1416
        %1418 = vrot.lane.b32.xlu0 %v1405, 32
        %v1419 = vpop.permute.xlu0 %1418
        %1420 = vrot.lane.b32.xlu0 %v1407, 32
        %v1421 = vpop.permute.xlu0 %1420
        %1422 = vrot.lane.b32.xlu0 %v1409, 32
        %v1423 = vpop.permute.xlu0 %1422
        %1424 = vrot.lane.b32.xlu0 %v1408, 32
        %v1425 = vpop.permute.xlu0 %1424
        %vm1434 = vcmask 1045504
        %v1435 = vrot.slane %v1378, 2
        %v1436 = vrot.slane %v1379, 2
        %v1437 = vsel %vm1434, %v1435, %v1436
        %v1438 = vrot.slane %v1380, 2
        %v1439 = vsel %vm1434, %v1436, %v1438
        %v1440 = vrot.slane %v1381, 2
        %v1441 = vsel %vm1434, %v1438, %v1440
        %v1442 = vrot.slane %v1382, 2
        %v1443 = vsel %vm1434, %v1440, %v1442
        %v1444 = vrot.slane %v1383, 2
        %v1445 = vsel %vm1434, %v1442, %v1444
        %v1446 = vrot.slane %v1384, 2
        %v1447 = vsel %vm1434, %v1444, %v1446
        %v1448 = vrot.slane %v1385, 2
        %v1449 = vsel %vm1434, %v1446, %v1448
        %1450 = vrot.lane.b32.xlu0 %v1437, 64
        %v1451 = vpop.permute.xlu0 %1450
        %1452 = vrot.lane.b32.xlu0 %v1439, 64
        %v1453 = vpop.permute.xlu0 %1452
        %1454 = vrot.lane.b32.xlu0 %v1441, 64
        %v1455 = vpop.permute.xlu0 %1454
        %1456 = vrot.lane.b32.xlu0 %v1443, 64
        %v1457 = vpop.permute.xlu0 %1456
        %1458 = vrot.lane.b32.xlu0 %v1445, 64
        %v1459 = vpop.permute.xlu0 %1458
        %1460 = vrot.lane.b32.xlu0 %v1447, 64
        %v1461 = vpop.permute.xlu0 %1460
        %1462 = vrot.lane.b32.xlu0 %v1449, 64
        %v1463 = vpop.permute.xlu0 %1462
        %1464 = vrot.lane.b32.xlu0 %v1448, 64
        %v1465 = vpop.permute.xlu0 %1464
        %v1474 = vsel %vm1179, %v1378, %v1411
        %v1475 = vsel %vm1179, %v1379, %v1413
        %v1476 = vsel %vm1179, %v1380, %v1415
        %v1477 = vsel %vm1179, %v1381, %v1417
        %v1478 = vsel %vm1179, %v1382, %v1419
        %v1479 = vsel %vm1179, %v1383, %v1421
        %v1480 = vsel %vm1179, %v1384, %v1423
        %v1481 = vsel %vm1179, %v1385, %v1425
        %vm1482 = vcmask 523264
        %v1483 = vsel %vm1482, %v1474, %v1451
        %v1484 = vsel %vm1482, %v1475, %v1453
        %v1485 = vsel %vm1482, %v1476, %v1455
        %v1486 = vsel %vm1482, %v1477, %v1457
        %v1487 = vsel %vm1482, %v1478, %v1459
        %v1488 = vsel %vm1482, %v1479, %v1461
        %v1489 = vsel %vm1482, %v1480, %v1463
        %v1490 = vsel %vm1482, %v1481, %v1465
        %v1491 = vpack.c.bf16 %v1484, %v1483
        %v1492 = vpack.c.bf16 %v1486, %v1485
        %v1493 = vpack.c.bf16 %v1488, %v1487
        %v1494 = vpack.c.bf16 %v1490, %v1489
        %v1495 = vld [vmem:[%s11] sm:$0xf]
        %v1496 = vld [vmem:[%s11 + $0x4] sm:$0xf]
        %v1497 = vld [vmem:[%s11 + $0x8] sm:$0xf]
        %v1498 = vld [vmem:[%s11 + $0xc] sm:$0xf]
        %v1499 = vld [vmem:[%s11 + $0x10] sm:$0xf]
        %v1500 = vld [vmem:[%s11 + $0x14] sm:$0xf]
        %v1501 = vld [vmem:[%s11 + $0x18] sm:$0xf]
        %v1502 = vld [vmem:[%s11 + $0x1c] sm:$0xf]
        %v1503 = vld [vmem:[%s11 + $0x20] sm:$0xf]
        %v1504 = vld [vmem:[%s11 + $0x24] sm:$0xf]
        %v1505 = vld [vmem:[%s11 + $0x28] sm:$0xf]
        %v1506 = vld [vmem:[%s11 + $0x2c] sm:$0xf]
        %v1507 = vld [vmem:[%s13] sm:$0x1]
        %v1509 = vlaneseq
        %v1510 = vshrl.u32 %v1509, 7
        %v1511 = vsub.s32 0, %v1510
        %v1512 = vrot.slane %v1507, %v1511
        %v1526 = vunpack.c.l.b16 %v1495
        %v1527 = vunpack.c.l.b16 %v1496
        %v1528 = vunpack.c.l.b16 %v1497
        %v1529 = vunpack.c.l.b16 %v1498
        %v1530 = vunpack.c.l.b16 %v1499
        %v1531 = vunpack.c.l.b16 %v1500
        %v1532 = vunpack.c.l.b16 %v1501
        %v1533 = vunpack.c.l.b16 %v1502
        %v1534 = vunpack.c.l.b16 %v1503
        %v1535 = vunpack.c.l.b16 %v1504
        %v1536 = vunpack.c.l.b16 %v1505
        %v1537 = vunpack.c.l.b16 %v1506
        %v1538 = vpack.c.b16 %v1527, %v1526
        %v1539 = vpack.c.b16 %v1529, %v1528
        %v1540 = vpack.c.b16 %v1531, %v1530
        %v1541 = vpack.c.b16 %v1533, %v1532
        %v1542 = vpack.c.b16 %v1535, %v1534
        %v1543 = vpack.c.b16 %v1537, %v1536
        %vm1550 = vcmask 785408
        %v1552 = vsel %vm1550, %v1491, 0
        %v1555 = vsel %vm1550, %v1492, 0
        %v1558 = vsel %vm1550, %v1493, 0
        %v1561 = vsel %vm1550, %v1494, 0
        %1563 = vmatprep.subr.bf16.mxu0 0
        %1564 = vmatpush1.bf16.msra.mxu0 %v1538
        %1565 = vmatprep.subr.bf16.mxu0 0
        %1566 = vmatpush1.bf16.msra.mxu0 %v1539
        %1567 = vmatprep.subr.bf16.mxu0 0
        %1568 = vmatpush1.bf16.msra.mxu0 %v1540
        %1569 = vmatprep.subr.bf16.mxu0 0
        %1570 = vmatpush1.bf16.msra.mxu0 %v1541
        %1571 = vmatprep.subr.bf16.mxu0 0
        %1572 = vmatpush1.bf16.msra.mxu0 %v1542
        %1573 = vmatprep.subr.bf16.mxu0 0
        %1574 = vmatpush1.bf16.msra.mxu0 %v1543
        %1575 = vmatprep.subr.bf16.mxu0 0
        %1576 = vmatpush1.bf16.msra.mxu0 0
        %1577 = vmatprep.subr.bf16.mxu0 0
        %1578 = vmatpush1.bf16.msra.mxu0 0
        %1579 = vmatprep.subr.bf16.mxu0 0
        %1580 = vmatpush1.bf16.msra.mxu0 0
        %1581 = vmatprep.subr.bf16.mxu0 0
        %1582 = vmatpush1.bf16.msra.mxu0 0
        %1583 = vmatprep.subr.bf16.mxu0 0
        %1584 = vmatpush1.bf16.msra.mxu0 0
        %1585 = vmatprep.subr.bf16.mxu0 0
        %1586 = vmatpush1.bf16.msra.mxu0 0
        %1587 = vmatprep.subr.bf16.mxu0 0
        %1588 = vmatpush1.bf16.msra.mxu0 0
        %1589 = vmatprep.subr.bf16.mxu0 0
        %1590 = vmatpush1.bf16.msra.mxu0 0
        %1591 = vmatprep.subr.bf16.mxu0 0
        %1592 = vmatpush1.bf16.msra.mxu0 0
        %1593 = vmatprep.subr.bf16.mxu0 0
        %1594 = vmatpush1.bf16.msra.mxu0 0
        %1595 = vmatprep.mubr.bf16.mxu0 0
        %1596 = vmatmul.mubr.bf16.gmra.mrb[0].mxu0 %v1552
        %v1597 = vpop.f32.mrb[0].mxu0
        %v1598 = vadd.f32 %v1512, %v1597
        %v1599 = vpop.f32.mrb[0].mxu0
        %v1600 = vpop.f32.mrb[0].mxu0
        %v1601 = vadd.f32 %v1512, %v1600
        %v1602 = vpop.f32.mrb[0].mxu0
        %1603 = vmatprep.mubr.bf16.mxu0 0
        %1604 = vmatmul.mubr.bf16.gmra.mrb[0].mxu0 %v1555
        %v1605 = vpop.f32.mrb[0].mxu0
        %v1606 = vadd.f32 %v1512, %v1605
        %v1607 = vpop.f32.mrb[0].mxu0
        %v1608 = vpop.f32.mrb[0].mxu0
        %v1609 = vadd.f32 %v1512, %v1608
        %v1610 = vpop.f32.mrb[0].mxu0
        %1611 = vmatprep.mubr.bf16.mxu0 0
        %1612 = vmatmul.mubr.bf16.gmra.mrb[0].mxu0 %v1558
        %v1613 = vpop.f32.mrb[0].mxu0
        %v1614 = vadd.f32 %v1512, %v1613
        %v1615 = vpop.f32.mrb[0].mxu0
        %v1616 = vpop.f32.mrb[0].mxu0
        %v1617 = vadd.f32 %v1512, %v1616
        %v1618 = vpop.f32.mrb[0].mxu0
        %1619 = vmatprep.mubr.bf16.mxu0 0
        %1620 = vmatmul.mubr.bf16.gmra.mrb[0].mxu0 %v1561
        %v1621 = vpop.f32.mrb[0].mxu0
        %v1622 = vadd.f32 %v1512, %v1621
        %v1623 = vpop.f32.mrb[0].mxu0
        %v1624 = vpop.f32.mrb[0].mxu0
        %v1625 = vadd.f32 %v1512, %v1624
        %v1626 = vpop.f32.mrb[0].mxu0
        %1627 = vdwg.mxu0
        %v1628 = vlaneseq
        %v1629 = vshrl.u32 %v1628, 7
        %v1630 = vadd.s32 %v1629, 8
        %v1631 = vadd.s32 %v1629, 16
        %v1632 = vadd.s32 %v1629, 24
        %v1633 = vlaneseq
        %v1634 = vand.u32 %v1633, 127
        %v1635 = vmul.u32 %v1629, 2
        %v1636 = vmul.u32 %v1630, 2
        %v1637 = vmul.u32 %v1631, 2
        %v1638 = vmul.u32 %v1632, 2
        %vm1639 = vcmp.eq.s32.totalorder %v1634, %v1635
        %vm1640 = vcmp.eq.s32.totalorder %v1634, %v1636
        %vm1641 = vcmp.eq.s32.totalorder %v1634, %v1637
        %vm1642 = vcmp.eq.s32.totalorder %v1634, %v1638
        %v1643 = vsel %vm1639, 1, 0
        %v1644 = vsel %vm1640, 1, 0
        %v1645 = vsel %vm1641, 1, 0
        %v1646 = vsel %vm1642, 1, 0
        %v1647 = vcvt.s32.f32 %v1643
        %v1648 = vcvt.s32.f32 %v1644
        %v1649 = vcvt.s32.f32 %v1645
        %v1650 = vcvt.s32.f32 %v1646
        %vm1651 = vcmask 498688
        %v1653 = vsel %vm1651, %v1647, 0
        %v1656 = vsel %vm1651, %v1648, 0
        %v1659 = vsel %vm1651, %v1649, 0
        %v1662 = vsel %vm1651, %v1650, 0
        %v1665 = vsel %vm1108, %v1625, 0
        %1667 = vmatprep.subr.mxu0 0.0
        %1668 = vmatpush1.msra.mxu0 %v1598
        %1669 = vmatprep.subr.mxu0 0.0
        %1670 = vmatpush1.msra.mxu0 %v1601
        %1671 = vmatprep.subr.mxu0 0.0
        %1672 = vmatpush1.msra.mxu0 %v1606
        %1673 = vmatprep.subr.mxu0 0.0
        %1674 = vmatpush1.msra.mxu0 %v1609
        %1675 = vmatprep.subr.mxu0 0.0
        %1676 = vmatpush1.msra.mxu0 %v1614
        %1677 = vmatprep.subr.mxu0 0.0
        %1678 = vmatpush1.msra.mxu0 %v1617
        %1679 = vmatprep.subr.mxu0 0.0
        %1680 = vmatpush1.msra.mxu0 %v1622
        %1681 = vmatprep.subr.mxu0 0.0
        %1682 = vmatpush1.msra.mxu0 %v1665
        %1683 = vmatprep.subr.mxu0 0.0
        %1684 = vmatpush1.msra.mxu0 0.0
        %1685 = vmatprep.subr.mxu0 0.0
        %1686 = vmatpush1.msra.mxu0 0.0
        %1687 = vmatprep.subr.mxu0 0.0
        %1688 = vmatpush1.msra.mxu0 0.0
        %1689 = vmatprep.subr.mxu0 0.0
        %1690 = vmatpush1.msra.mxu0 0.0
        %1691 = vmatprep.subr.mxu0 0.0
        %1692 = vmatpush1.msra.mxu0 0.0
        %1693 = vmatprep.subr.mxu0 0.0
        %1694 = vmatpush1.msra.mxu0 0.0
        %1695 = vmatprep.subr.mxu0 0.0
        %1696 = vmatpush1.msra.mxu0 0.0
        %1697 = vmatprep.subr.mxu0 0.0
        %1698 = vmatpush1.msra.mxu0 0.0
        %1699 = vmatprep.subr.mxu0 0.0
        %1700 = vmatpush1.msra.mxu0 0.0
        %1701 = vmatprep.subr.mxu0 0.0
        %1702 = vmatpush1.msra.mxu0 0.0
        %1703 = vmatprep.subr.mxu0 0.0
        %1704 = vmatpush1.msra.mxu0 0.0
        %1705 = vmatprep.subr.mxu0 0.0
        %1706 = vmatpush1.msra.mxu0 0.0
        %1707 = vmatprep.subr.mxu0 0.0
        %1708 = vmatpush1.msra.mxu0 0.0
        %1709 = vmatprep.subr.mxu0 0.0
        %1710 = vmatpush1.msra.mxu0 0.0
        %1711 = vmatprep.subr.mxu0 0.0
        %1712 = vmatpush1.msra.mxu0 0.0
        %1713 = vmatprep.subr.mxu0 0.0
        %1714 = vmatpush1.msra.mxu0 0.0
        %1715 = vmatprep.subr.mxu0 0.0
        %1716 = vmatpush1.msra.mxu0 0.0
        %1717 = vmatprep.subr.mxu0 0.0
        %1718 = vmatpush1.msra.mxu0 0.0
        %1719 = vmatprep.subr.mxu0 0.0
        %1720 = vmatpush1.msra.mxu0 0.0
        %1721 = vmatprep.subr.mxu0 0.0
        %1722 = vmatpush1.msra.mxu0 0.0
        %1723 = vmatprep.subr.mxu0 0.0
        %1724 = vmatpush1.msra.mxu0 0.0
        %1725 = vmatprep.subr.mxu0 0.0
        %1726 = vmatpush1.msra.mxu0 0.0
        %1727 = vmatprep.subr.mxu0 0.0
        %1728 = vmatpush1.msra.mxu0 0.0
        %1729 = vmatprep.subr.mxu0 0.0
        %1730 = vmatpush1.msra.mxu0 0.0
        %1731 = vmatprep.mubr.f32.mxu0 0.0
        %1732 = vmatmul.mubr.f32.gmra.mrb[0].mxu0 %v1653
        %v1733 = vpop.f32.mrb[0].mxu0
        %v1734 = vadd.f32 0.0, %v1733
        %v1735 = vpop.f32.mrb[0].mxu0
        %1736 = vmatprep.mubr.f32.mxu0 0.0
        %1737 = vmatmul.mubr.f32.gmra.mrb[0].mxu0 %v1656
        %v1738 = vpop.f32.mrb[0].mxu0
        %v1739 = vadd.f32 0.0, %v1738
        %v1740 = vpop.f32.mrb[0].mxu0
        %1741 = vmatprep.mubr.f32.mxu0 0.0
        %1742 = vmatmul.mubr.f32.gmra.mrb[0].mxu0 %v1659
        %v1743 = vpop.f32.mrb[0].mxu0
        %v1744 = vadd.f32 0.0, %v1743
        %v1745 = vpop.f32.mrb[0].mxu0
        %1746 = vmatprep.mubr.f32.mxu0 0.0
        %1747 = vmatmul.mubr.f32.gmra.mrb[0].mxu0 %v1662
        %v1748 = vpop.f32.mrb[0].mxu0
        %v1749 = vadd.f32 0.0, %v1748
        %v1750 = vpop.f32.mrb[0].mxu0
        %1751 = vdwg.mxu0
        %v1752 = vld [vmem:[%s15] sm:$0x1]
        %v1753 = vld [vmem:[%s17] sm:$0x1]
        %v1754 = vsel %vm1179, %v1734, 0.0
        %1755 = vadd.xlane.f32.xlu0 %v1754
        %v1756 = vpop.xlane.xlu0 %1755
        %v1757 = vsel %vm1179, %v1739, 0.0
        %1758 = vadd.xlane.f32.xlu0 %v1757
        %v1759 = vpop.xlane.xlu0 %1758
        %v1760 = vsel %vm1179, %v1744, 0.0
        %1761 = vadd.xlane.f32.xlu0 %v1760
        %v1762 = vpop.xlane.xlu0 %1761
        %v1763 = vsel %vm1201, %v1749, 0.0
        %1764 = vadd.xlane.f32.xlu0 %v1763
        %v1765 = vpop.xlane.xlu0 %1764
        %v1766 = vmul.f32 %v1756, %v1205
        %v1767 = vmul.f32 %v1759, %v1205
        %v1768 = vmul.f32 %v1762, %v1205
        %v1769 = vmul.f32 %v1765, %v1205
        %v1770 = vsub.f32 %v1734, %v1766
        %v1771 = vsub.f32 %v1739, %v1767
        %v1772 = vsub.f32 %v1744, %v1768
        %v1773 = vsub.f32 %v1749, %v1769
        %v1774 = vmul.f32 %v1770, %v1770
        %v1775 = vmul.f32 %v1771, %v1771
        %v1776 = vmul.f32 %v1772, %v1772
        %v1777 = vmul.f32 %v1773, %v1773
        %v1778 = vsel %vm1179, %v1774, 0.0
        %1779 = vadd.xlane.f32.xlu0 %v1778
        %v1780 = vpop.xlane.xlu0 %1779
        %v1781 = vsel %vm1179, %v1775, 0.0
        %1782 = vadd.xlane.f32.xlu0 %v1781
        %v1783 = vpop.xlane.xlu0 %1782
        %v1784 = vsel %vm1179, %v1776, 0.0
        %1785 = vadd.xlane.f32.xlu0 %v1784
        %v1786 = vpop.xlane.xlu0 %1785
        %v1787 = vsel %vm1201, %v1777, 0.0
        %1788 = vadd.xlane.f32.xlu0 %v1787
        %v1789 = vpop.xlane.xlu0 %1788
        %v1790 = vmul.f32 %v1780, %v1205
        %v1791 = vmul.f32 %v1783, %v1205
        %v1792 = vmul.f32 %v1786, %v1205
        %v1793 = vmul.f32 %v1789, %v1205
        %v1794 = vadd.f32 %v1790, 1e-05
        %v1795 = vadd.f32 %v1791, 1e-05
        %v1796 = vadd.f32 %v1792, 1e-05
        %v1797 = vadd.f32 %v1793, 1e-05
        %v1798 = vrsqrt.pop %v1794
        %v1799 = vrsqrt.pop %v1795
        %v1800 = vrsqrt.pop %v1796
        %v1801 = vrsqrt.pop %v1797
        %v1802 = vmul.f32 %v1770, %v1798
        %v1803 = vmul.f32 %v1771, %v1799
        %v1804 = vmul.f32 %v1772, %v1800
        %v1805 = vmul.f32 %v1773, %v1801
        %v1807 = vlaneseq
        %v1808 = vshrl.u32 %v1807, 7
        %v1809 = vsub.s32 0, %v1808
        %v1810 = vrot.slane %v1752, %v1809
        %v1812 = vmul.f32 %v1802, %v1810
        %v1813 = vmul.f32 %v1803, %v1810
        %v1814 = vmul.f32 %v1804, %v1810
        %v1815 = vmul.f32 %v1805, %v1810
        %v1817 = vlaneseq
        %v1818 = vshrl.u32 %v1817, 7
        %v1819 = vsub.s32 0, %v1818
        %v1820 = vrot.slane %v1753, %v1819
        %v1822 = vadd.f32 %v1812, %v1820
        %v1823 = vadd.f32 %v1813, %v1820
        %v1824 = vadd.f32 %v1814, %v1820
        %v1825 = vadd.f32 %v1815, %v1820
        %v1826 = vmul.f32 %v1822, 0.5
        %v1827 = vmul.f32 %v1823, 0.5
        %v1828 = vmul.f32 %v1824, 0.5
        %v1829 = vmul.f32 %v1825, 0.5
        %v1830 = vmul.f32 %v1822, 0.044715
        %v1831 = vmul.f32 %v1823, 0.044715
        %v1832 = vmul.f32 %v1824, 0.044715
        %v1833 = vmul.f32 %v1825, 0.044715
        %v1834 = vmul.f32 %v1830, %v1822
        %v1835 = vmul.f32 %v1831, %v1823
        %v1836 = vmul.f32 %v1832, %v1824
        %v1837 = vmul.f32 %v1833, %v1825
        %v1838 = vmul.f32 %v1834, %v1822
        %v1839 = vmul.f32 %v1835, %v1823
        %v1840 = vmul.f32 %v1836, %v1824
        %v1841 = vmul.f32 %v1837, %v1825
        %v1842 = vadd.f32 %v1822, %v1838
        %v1843 = vadd.f32 %v1823, %v1839
        %v1844 = vadd.f32 %v1824, %v1840
        %v1845 = vadd.f32 %v1825, %v1841
        %v1846 = vmul.f32 %v1842, 0.7978846
        %v1847 = vmul.f32 %v1843, 0.7978846
        %v1848 = vmul.f32 %v1844, 0.7978846
        %v1849 = vmul.f32 %v1845, 0.7978846
        %v1850 = vtanh.pop %v1846
        %v1851 = vtanh.pop %v1847
        %v1852 = vtanh.pop %v1848
        %v1853 = vtanh.pop %v1849
        %v1854 = vadd.f32 %v1850, 1.0
        %v1855 = vadd.f32 %v1851, 1.0
        %v1856 = vadd.f32 %v1852, 1.0
        %v1857 = vadd.f32 %v1853, 1.0
        %v1858 = vmul.f32 %v1826, %v1854
        %v1859 = vmul.f32 %v1827, %v1855
        %v1860 = vmul.f32 %v1828, %v1856
        %v1861 = vmul.f32 %v1829, %v1857
        %v1866 = vrot.slane %v1858, 1
        %v1867 = vrot.slane %v1859, 1
        %v1868 = vsel %vm1394, %v1866, %v1867
        %v1869 = vrot.slane %v1860, 1
        %v1870 = vsel %vm1394, %v1867, %v1869
        %v1871 = vrot.slane %v1861, 1
        %v1872 = vsel %vm1394, %v1869, %v1871
        %1873 = vrot.lane.b32.xlu0 %v1868, 32
        %v1874 = vpop.permute.xlu0 %1873
        %1875 = vrot.lane.b32.xlu0 %v1870, 32
        %v1876 = vpop.permute.xlu0 %1875
        %1877 = vrot.lane.b32.xlu0 %v1872, 32
        %v1878 = vpop.permute.xlu0 %1877
        %1879 = vrot.lane.b32.xlu0 %v1871, 32
        %v1880 = vpop.permute.xlu0 %1879
        %v1885 = vrot.slane %v1858, 2
        %v1886 = vrot.slane %v1859, 2
        %v1887 = vsel %vm1434, %v1885, %v1886
        %v1888 = vrot.slane %v1860, 2
        %v1889 = vsel %vm1434, %v1886, %v1888
        %v1890 = vrot.slane %v1861, 2
        %v1891 = vsel %vm1434, %v1888, %v1890
        %1892 = vrot.lane.b32.xlu0 %v1887, 64
        %v1893 = vpop.permute.xlu0 %1892
        %1894 = vrot.lane.b32.xlu0 %v1889, 64
        %v1895 = vpop.permute.xlu0 %1894
        %1896 = vrot.lane.b32.xlu0 %v1891, 64
        %v1897 = vpop.permute.xlu0 %1896
        %1898 = vrot.lane.b32.xlu0 %v1890, 64
        %v1899 = vpop.permute.xlu0 %1898
        %v1904 = vsel %vm1179, %v1858, %v1874
        %v1905 = vsel %vm1179, %v1859, %v1876
        %v1906 = vsel %vm1179, %v1860, %v1878
        %v1907 = vsel %vm1179, %v1861, %v1880
        %v1908 = vsel %vm1482, %v1904, %v1893
        %v1909 = vsel %vm1482, %v1905, %v1895
        %v1910 = vsel %vm1482, %v1906, %v1897
        %v1911 = vsel %vm1482, %v1907, %v1899
        %v1912 = vpack.c.bf16 %v1909, %v1908
        %v1913 = vpack.c.bf16 %v1911, %v1910
        %v1914 = vld [vmem:[%s19] sm:$0xf]
        %v1915 = vld [vmem:[%s19 + $0x4] sm:$0xf]
        %v1916 = vld [vmem:[%s19 + $0x8] sm:$0xf]
        %v1917 = vld [vmem:[%s19 + $0xc] sm:$0xf]
        %v1918 = vld [vmem:[%s19 + $0x10] sm:$0xf]
        %v1919 = vld [vmem:[%s19 + $0x14] sm:$0xf]
        %v1920 = vld [vmem:[%s19 + $0x18] sm:$0xf]
        %v1921 = vld [vmem:[%s19 + $0x1c] sm:$0xf]
        %v1922 = vld [vmem:[%s19 + $0x20] sm:$0xf]
        %v1923 = vld [vmem:[%s19 + $0x24] sm:$0xf]
        %v1924 = vld [vmem:[%s19 + $0x28] sm:$0xf]
        %v1925 = vld [vmem:[%s19 + $0x2c] sm:$0xf]
        %v1926 = vld [vmem:[%s21] sm:$0x1]
        %v1928 = vlaneseq
        %v1929 = vshrl.u32 %v1928, 7
        %v1930 = vsub.s32 0, %v1929
        %v1931 = vrot.slane %v1926, %v1930
        %v1945 = vunpack.c.l.b16 %v1914
        %v1946 = vunpack.c.l.b16 %v1915
        %v1947 = vunpack.c.l.b16 %v1916
        %v1948 = vunpack.c.l.b16 %v1917
        %v1949 = vunpack.c.l.b16 %v1918
        %v1950 = vunpack.c.l.b16 %v1919
        %v1951 = vunpack.c.l.b16 %v1920
        %v1952 = vunpack.c.l.b16 %v1921
        %v1953 = vunpack.c.l.b16 %v1922
        %v1954 = vunpack.c.l.b16 %v1923
        %v1955 = vunpack.c.l.b16 %v1924
        %v1956 = vunpack.c.l.b16 %v1925
        %v1957 = vpack.c.b16 %v1946, %v1945
        %v1958 = vpack.c.b16 %v1948, %v1947
        %v1959 = vpack.c.b16 %v1950, %v1949
        %v1960 = vpack.c.b16 %v1952, %v1951
        %v1961 = vpack.c.b16 %v1954, %v1953
        %v1962 = vpack.c.b16 %v1956, %v1955
        %v1970 = vsel %vm1550, %v1912, 0
        %v1973 = vsel %vm1550, %v1913, 0
        %1975 = vmatprep.subr.bf16.mxu0 0
        %1976 = vmatpush1.bf16.msra.mxu0 %v1957
        %1977 = vmatprep.subr.bf16.mxu0 0
        %1978 = vmatpush1.bf16.msra.mxu0 %v1958
        %1979 = vmatprep.subr.bf16.mxu0 0
        %1980 = vmatpush1.bf16.msra.mxu0 %v1959
        %1981 = vmatprep.subr.bf16.mxu0 0
        %1982 = vmatpush1.bf16.msra.mxu0 %v1960
        %1983 = vmatprep.subr.bf16.mxu0 0
        %1984 = vmatpush1.bf16.msra.mxu0 %v1961
        %1985 = vmatprep.subr.bf16.mxu0 0
        %1986 = vmatpush1.bf16.msra.mxu0 %v1962
        %1987 = vmatprep.subr.bf16.mxu0 0
        %1988 = vmatpush1.bf16.msra.mxu0 0
        %1989 = vmatprep.subr.bf16.mxu0 0
        %1990 = vmatpush1.bf16.msra.mxu0 0
        %1991 = vmatprep.subr.bf16.mxu0 0
        %1992 = vmatpush1.bf16.msra.mxu0 0
        %1993 = vmatprep.subr.bf16.mxu0 0
        %1994 = vmatpush1.bf16.msra.mxu0 0
        %1995 = vmatprep.subr.bf16.mxu0 0
        %1996 = vmatpush1.bf16.msra.mxu0 0
        %1997 = vmatprep.subr.bf16.mxu0 0
        %1998 = vmatpush1.bf16.msra.mxu0 0
        %1999 = vmatprep.subr.bf16.mxu0 0
        %2000 = vmatpush1.bf16.msra.mxu0 0
        %2001 = vmatprep.subr.bf16.mxu0 0
        %2002 = vmatpush1.bf16.msra.mxu0 0
        %2003 = vmatprep.subr.bf16.mxu0 0
        %2004 = vmatpush1.bf16.msra.mxu0 0
        %2005 = vmatprep.subr.bf16.mxu0 0
        %2006 = vmatpush1.bf16.msra.mxu0 0
        %2007 = vmatprep.mubr.bf16.mxu0 0
        %2008 = vmatmul.mubr.bf16.gmra.mrb[0].mxu0 %v1970
        %v2009 = vpop.f32.mrb[0].mxu0
        %v2010 = vadd.f32 %v1931, %v2009
        %v2011 = vpop.f32.mrb[0].mxu0
        %v2012 = vpop.f32.mrb[0].mxu0
        %v2013 = vadd.f32 %v1931, %v2012
        %v2014 = vpop.f32.mrb[0].mxu0
        %2015 = vmatprep.mubr.bf16.mxu0 0
        %2016 = vmatmul.mubr.bf16.gmra.mrb[0].mxu0 %v1973
        %v2017 = vpop.f32.mrb[0].mxu0
        %v2018 = vadd.f32 %v1931, %v2017
        %v2019 = vpop.f32.mrb[0].mxu0
        %v2020 = vpop.f32.mrb[0].mxu0
        %v2021 = vadd.f32 %v1931, %v2020
        %v2022 = vpop.f32.mrb[0].mxu0
        %2023 = vdwg.mxu0
        %vm2024 = vcmask 236544
        %v2025 = vsel %vm2024, %v1647, 0
        %v2027 = vsel %vm2024, %v1648, 0
        %v2030 = vsel %vm1108, %v2021, 0
        %2032 = vmatprep.subr.mxu0 0.0
        %2033 = vmatpush1.msra.mxu0 %v2010
        %2034 = vmatprep.subr.mxu0 0.0
        %2035 = vmatpush1.msra.mxu0 %v2013
        %2036 = vmatprep.subr.mxu0 0.0
        %2037 = vmatpush1.msra.mxu0 %v2018
        %2038 = vmatprep.subr.mxu0 0.0
        %2039 = vmatpush1.msra.mxu0 %v2030
        %2040 = vmatprep.subr.mxu0 0.0
        %2041 = vmatpush1.msra.mxu0 0.0
        %2042 = vmatprep.subr.mxu0 0.0
        %2043 = vmatpush1.msra.mxu0 0.0
        %2044 = vmatprep.subr.mxu0 0.0
        %2045 = vmatpush1.msra.mxu0 0.0
        %2046 = vmatprep.subr.mxu0 0.0
        %2047 = vmatpush1.msra.mxu0 0.0
        %2048 = vmatprep.subr.mxu0 0.0
        %2049 = vmatpush1.msra.mxu0 0.0
        %2050 = vmatprep.subr.mxu0 0.0
        %2051 = vmatpush1.msra.mxu0 0.0
        %2052 = vmatprep.subr.mxu0 0.0
        %2053 = vmatpush1.msra.mxu0 0.0
        %2054 = vmatprep.subr.mxu0 0.0
        %2055 = vmatpush1.msra.mxu0 0.0
        %2056 = vmatprep.subr.mxu0 0.0
        %2057 = vmatpush1.msra.mxu0 0.0
        %2058 = vmatprep.subr.mxu0 0.0
        %2059 = vmatpush1.msra.mxu0 0.0
        %2060 = vmatprep.subr.mxu0 0.0
        %2061 = vmatpush1.msra.mxu0 0.0
        %2062 = vmatprep.subr.mxu0 0.0
        %2063 = vmatpush1.msra.mxu0 0.0
        %2064 = vmatprep.subr.mxu0 0.0
        %2065 = vmatpush1.msra.mxu0 0.0
        %2066 = vmatprep.subr.mxu0 0.0
        %2067 = vmatpush1.msra.mxu0 0.0
        %2068 = vmatprep.subr.mxu0 0.0
        %2069 = vmatpush1.msra.mxu0 0.0
        %2070 = vmatprep.subr.mxu0 0.0
        %2071 = vmatpush1.msra.mxu0 0.0
        %2072 = vmatprep.subr.mxu0 0.0
        %2073 = vmatpush1.msra.mxu0 0.0
        %2074 = vmatprep.subr.mxu0 0.0
        %2075 = vmatpush1.msra.mxu0 0.0
        %2076 = vmatprep.subr.mxu0 0.0
        %2077 = vmatpush1.msra.mxu0 0.0
        %2078 = vmatprep.subr.mxu0 0.0
        %2079 = vmatpush1.msra.mxu0 0.0
        %2080 = vmatprep.subr.mxu0 0.0
        %2081 = vmatpush1.msra.mxu0 0.0
        %2082 = vmatprep.subr.mxu0 0.0
        %2083 = vmatpush1.msra.mxu0 0.0
        %2084 = vmatprep.subr.mxu0 0.0
        %2085 = vmatpush1.msra.mxu0 0.0
        %2086 = vmatprep.subr.mxu0 0.0
        %2087 = vmatpush1.msra.mxu0 0.0
        %2088 = vmatprep.subr.mxu0 0.0
        %2089 = vmatpush1.msra.mxu0 0.0
        %2090 = vmatprep.subr.mxu0 0.0
        %2091 = vmatpush1.msra.mxu0 0.0
        %2092 = vmatprep.subr.mxu0 0.0
        %2093 = vmatpush1.msra.mxu0 0.0
        %2094 = vmatprep.subr.mxu0 0.0
        %2095 = vmatpush1.msra.mxu0 0.0
        %2096 = vmatprep.mubr.f32.mxu0 0.0
        %2097 = vmatmul.mubr.f32.gmra.mrb[0].mxu0 %v2025
        %v2098 = vpop.f32.mrb[0].mxu0
        %v2099 = vadd.f32 0.0, %v2098
        %v2100 = vpop.f32.mrb[0].mxu0
        %2101 = vmatprep.mubr.f32.mxu0 0.0
        %2102 = vmatmul.mubr.f32.gmra.mrb[0].mxu0 %v2027
        %v2103 = vpop.f32.mrb[0].mxu0
        %v2104 = vadd.f32 0.0, %v2103
        %v2105 = vpop.f32.mrb[0].mxu0
        %2106 = vdwg.mxu0
        %v2107 = vld [vmem:[%s23] sm:$0x1]
        %v2108 = vld [vmem:[%s25] sm:$0x1]
        %v2109 = vsel %vm1179, %v2099, 0.0
        %2110 = vadd.xlane.f32.xlu0 %v2109
        %v2111 = vpop.xlane.xlu0 %2110
        %v2112 = vsel %vm1201, %v2104, 0.0
        %2113 = vadd.xlane.f32.xlu0 %v2112
        %v2114 = vpop.xlane.xlu0 %2113
        %v2115 = vmul.f32 %v2111, %v1205
        %v2116 = vmul.f32 %v2114, %v1205
        %v2117 = vsub.f32 %v2099, %v2115
        %v2118 = vsub.f32 %v2104, %v2116
        %v2119 = vmul.f32 %v2117, %v2117
        %v2120 = vmul.f32 %v2118, %v2118
        %v2121 = vsel %vm1179, %v2119, 0.0
        %2122 = vadd.xlane.f32.xlu0 %v2121
        %v2123 = vpop.xlane.xlu0 %2122
        %v2124 = vsel %vm1201, %v2120, 0.0
        %2125 = vadd.xlane.f32.xlu0 %v2124
        %v2126 = vpop.xlane.xlu0 %2125
        %v2127 = vmul.f32 %v2123, %v1205
        %v2128 = vmul.f32 %v2126, %v1205
        %v2129 = vadd.f32 %v2127, 1e-05
        %v2130 = vadd.f32 %v2128, 1e-05
        %v2131 = vrsqrt.pop %v2129
        %v2132 = vrsqrt.pop %v2130
        %v2133 = vmul.f32 %v2117, %v2131
        %v2134 = vmul.f32 %v2118, %v2132
        %v2136 = vlaneseq
        %v2137 = vshrl.u32 %v2136, 7
        %v2138 = vsub.s32 0, %v2137
        %v2139 = vrot.slane %v2107, %v2138
        %v2141 = vmul.f32 %v2133, %v2139
        %v2142 = vmul.f32 %v2134, %v2139
        %v2144 = vlaneseq
        %v2145 = vshrl.u32 %v2144, 7
        %v2146 = vsub.s32 0, %v2145
        %v2147 = vrot.slane %v2108, %v2146
        %v2149 = vadd.f32 %v2141, %v2147
        %v2150 = vadd.f32 %v2142, %v2147
        %v2151 = vmul.f32 %v2149, 0.5
        %v2152 = vmul.f32 %v2150, 0.5
        %v2153 = vmul.f32 %v2149, 0.044715
        %v2154 = vmul.f32 %v2150, 0.044715
        %v2155 = vmul.f32 %v2153, %v2149
        %v2156 = vmul.f32 %v2154, %v2150
        %v2157 = vmul.f32 %v2155, %v2149
        %v2158 = vmul.f32 %v2156, %v2150
        %v2159 = vadd.f32 %v2149, %v2157
        %v2160 = vadd.f32 %v2150, %v2158
        %v2161 = vmul.f32 %v2159, 0.7978846
        %v2162 = vmul.f32 %v2160, 0.7978846
        %v2163 = vtanh.pop %v2161
        %v2164 = vtanh.pop %v2162
        %v2165 = vadd.f32 %v2163, 1.0
        %v2166 = vadd.f32 %v2164, 1.0
        %v2167 = vmul.f32 %v2151, %v2165
        %v2168 = vmul.f32 %v2152, %v2166
        %v2169 = vld [vmem:[%s27] sm:$0x1]
        %v2170 = vld [vmem:[%s29] sm:$0x1]
        %v2171 = vsel %vm1179, %v2167, 0.0
        %2172 = vadd.xlane.f32.xlu0 %v2171
        %v2173 = vpop.xlane.xlu0 %2172
        %v2174 = vsel %vm1201, %v2168, 0.0
        %2175 = vadd.xlane.f32.xlu0 %v2174
        %v2176 = vpop.xlane.xlu0 %2175
        %v2177 = vmul.f32 %v2173, %v1205
        %v2178 = vmul.f32 %v2176, %v1205
        %v2179 = vsub.f32 %v2167, %v2177
        %v2180 = vsub.f32 %v2168, %v2178
        %v2181 = vmul.f32 %v2179, %v2179
        %v2182 = vmul.f32 %v2180, %v2180
        %v2183 = vsel %vm1179, %v2181, 0.0
        %2184 = vadd.xlane.f32.xlu0 %v2183
        %v2185 = vpop.xlane.xlu0 %2184
        %v2186 = vsel %vm1201, %v2182, 0.0
        %2187 = vadd.xlane.f32.xlu0 %v2186
        %v2188 = vpop.xlane.xlu0 %2187
        %v2189 = vmul.f32 %v2185, %v1205
        %v2190 = vmul.f32 %v2188, %v1205
        %v2191 = vadd.f32 %v2189, 1e-05
        %v2192 = vadd.f32 %v2190, 1e-05
        %v2193 = vrsqrt.pop %v2191
        %v2194 = vrsqrt.pop %v2192
        %v2195 = vmul.f32 %v2179, %v2193
        %v2196 = vmul.f32 %v2180, %v2194
        %v2198 = vlaneseq
        %v2199 = vshrl.u32 %v2198, 7
        %v2200 = vsub.s32 0, %v2199
        %v2201 = vrot.slane %v2169, %v2200
        %v2203 = vmul.f32 %v2195, %v2201
        %v2204 = vmul.f32 %v2196, %v2201
        %v2206 = vlaneseq
        %v2207 = vshrl.u32 %v2206, 7
        %v2208 = vsub.s32 0, %v2207
        %v2209 = vrot.slane %v2170, %v2208
        %v2211 = vadd.f32 %v2203, %v2209
        %v2212 = vadd.f32 %v2204, %v2209
        %v2213 = vpack.c.bf16 %v2212, %v2211
        %v2214 = vld [vmem:[%s31] sm:$0xf]
        %v2215 = vld [vmem:[%s31 + $0x4] sm:$0xf]
        %v2216 = vld [vmem:[%s31 + $0x8] sm:$0xf]
        %v2217 = vld [vmem:[%s31 + $0xc] sm:$0xf]
        %v2218 = vld [vmem:[%s33] sm:$0x1]
        %v2220 = vlaneseq
        %v2221 = vshrl.u32 %v2220, 7
        %v2222 = vsub.s32 0, %v2221
        %v2223 = vrot.slane %v2218, %v2222
        %v2229 = vunpack.c.l.b16 %v2214
        %v2230 = vunpack.c.l.b16 %v2215
        %v2231 = vunpack.c.l.b16 %v2216
        %v2232 = vunpack.c.l.b16 %v2217
        %v2233 = vpack.c.b16 %v2230, %v2229
        %v2234 = vpack.c.b16 %v2232, %v2231
        %v2238 = vsel %vm1179, %v2213, 0
        %2240 = vmatprep.subr.bf16.mxu0 0
        %2241 = vmatpush1.bf16.msra.mxu0 %v2233
        %2242 = vmatprep.subr.bf16.mxu0 0
        %2243 = vmatpush1.bf16.msra.mxu0 %v2234
        %2244 = vmatprep.subr.bf16.mxu0 0
        %2245 = vmatpush1.bf16.msra.mxu0 0
        %2246 = vmatprep.subr.bf16.mxu0 0
        %2247 = vmatpush1.bf16.msra.mxu0 0
        %2248 = vmatprep.subr.bf16.mxu0 0
        %2249 = vmatpush1.bf16.msra.mxu0 0
        %2250 = vmatprep.subr.bf16.mxu0 0
        %2251 = vmatpush1.bf16.msra.mxu0 0
        %2252 = vmatprep.subr.bf16.mxu0 0
        %2253 = vmatpush1.bf16.msra.mxu0 0
        %2254 = vmatprep.subr.bf16.mxu0 0
        %2255 = vmatpush1.bf16.msra.mxu0 0
        %2256 = vmatprep.subr.bf16.mxu0 0
        %2257 = vmatpush1.bf16.msra.mxu0 0
        %2258 = vmatprep.subr.bf16.mxu0 0
        %2259 = vmatpush1.bf16.msra.mxu0 0
        %2260 = vmatprep.subr.bf16.mxu0 0
        %2261 = vmatpush1.bf16.msra.mxu0 0
        %2262 = vmatprep.subr.bf16.mxu0 0
        %2263 = vmatpush1.bf16.msra.mxu0 0
        %2264 = vmatprep.subr.bf16.mxu0 0
        %2265 = vmatpush1.bf16.msra.mxu0 0
        %2266 = vmatprep.subr.bf16.mxu0 0
        %2267 = vmatpush1.bf16.msra.mxu0 0
        %2268 = vmatprep.subr.bf16.mxu0 0
        %2269 = vmatpush1.bf16.msra.mxu0 0
        %2270 = vmatprep.subr.bf16.mxu0 0
        %2271 = vmatpush1.bf16.msra.mxu0 0
        %2272 = vmatprep.mubr.bf16.mxu0 0
        %2273 = vmatmul.mubr.bf16.gmra.mrb[0].mxu0 %v2238
        %v2274 = vpop.f32.mrb[0].mxu0
        %v2275 = vadd.f32 %v2223, %v2274
        %v2276 = vpop.f32.mrb[0].mxu0
        %v2277 = vpop.f32.mrb[0].mxu0
        %v2278 = vadd.f32 %v2223, %v2277
        %v2279 = vpop.f32.mrb[0].mxu0
        %2280 = vdwg.mxu0
        %v2281 = vld [vmem:[%s35] sm:$0x1]
        %v2282 = vld [vmem:[%s37] sm:$0x1]
        %v2283 = vsel %vm1179, %v2275, 0.0
        %2284 = vadd.xlane.f32.xlu0 %v2283
        %v2285 = vpop.xlane.xlu0 %2284
        %v2286 = vsel %vm1201, %v2278, 0.0
        %2287 = vadd.xlane.f32.xlu0 %v2286
        %v2288 = vpop.xlane.xlu0 %2287
        %v2289 = vmul.f32 %v2285, %v1205
        %v2290 = vmul.f32 %v2288, %v1205
        %v2291 = vsub.f32 %v2275, %v2289
        %v2292 = vsub.f32 %v2278, %v2290
        %v2293 = vmul.f32 %v2291, %v2291
        %v2294 = vmul.f32 %v2292, %v2292
        %v2295 = vsel %vm1179, %v2293, 0.0
        %2296 = vadd.xlane.f32.xlu0 %v2295
        %v2297 = vpop.xlane.xlu0 %2296
        %v2298 = vsel %vm1201, %v2294, 0.0
        %2299 = vadd.xlane.f32.xlu0 %v2298
        %v2300 = vpop.xlane.xlu0 %2299
        %v2301 = vmul.f32 %v2297, %v1205
        %v2302 = vmul.f32 %v2300, %v1205
        %v2303 = vadd.f32 %v2301, 1e-05
        %v2304 = vadd.f32 %v2302, 1e-05
        %v2305 = vrsqrt.pop %v2303
        %v2306 = vrsqrt.pop %v2304
        %v2307 = vmul.f32 %v2291, %v2305
        %v2308 = vmul.f32 %v2292, %v2306
        %v2310 = vlaneseq
        %v2311 = vshrl.u32 %v2310, 7
        %v2312 = vsub.s32 0, %v2311
        %v2313 = vrot.slane %v2281, %v2312
        %v2315 = vmul.f32 %v2307, %v2313
        %v2316 = vmul.f32 %v2308, %v2313
        %v2318 = vlaneseq
        %v2319 = vshrl.u32 %v2318, 7
        %v2320 = vsub.s32 0, %v2319
        %v2321 = vrot.slane %v2282, %v2320
        %v2323 = vadd.f32 %v2315, %v2321
        %v2324 = vadd.f32 %v2316, %v2321
        %v2325 = vpack.c.bf16 %v2324, %v2323
        %v2326 = vld [vmem:[%s39] sm:$0xf]
        %v2327 = vld [vmem:[%s39 + $0x4] sm:$0xf]
        %v2328 = vld [vmem:[%s39 + $0x8] sm:$0xf]
        %v2329 = vld [vmem:[%s39 + $0xc] sm:$0xf]
        %v2330 = vld [vmem:[%s41] sm:$0x1]
        %v2332 = vlaneseq
        %v2333 = vshrl.u32 %v2332, 7
        %v2334 = vsub.s32 0, %v2333
        %v2335 = vrot.slane %v2330, %v2334
        %v2341 = vunpack.c.l.b16 %v2326
        %v2342 = vunpack.c.l.b16 %v2327
        %v2343 = vunpack.c.l.b16 %v2328
        %v2344 = vunpack.c.l.b16 %v2329
        %v2345 = vpack.c.b16 %v2342, %v2341
        %v2346 = vpack.c.b16 %v2344, %v2343
        %v2350 = vsel %vm1179, %v2325, 0
        %2352 = vmatprep.subr.bf16.mxu0 0
        %2353 = vmatpush1.bf16.msra.mxu0 %v2345
        %2354 = vmatprep.subr.bf16.mxu0 0
        %2355 = vmatpush1.bf16.msra.mxu0 %v2346
        %2356 = vmatprep.subr.bf16.mxu0 0
        %2357 = vmatpush1.bf16.msra.mxu0 0
        %2358 = vmatprep.subr.bf16.mxu0 0
        %2359 = vmatpush1.bf16.msra.mxu0 0
        %2360 = vmatprep.subr.bf16.mxu0 0
        %2361 = vmatpush1.bf16.msra.mxu0 0
        %2362 = vmatprep.subr.bf16.mxu0 0
        %2363 = vmatpush1.bf16.msra.mxu0 0
        %2364 = vmatprep.subr.bf16.mxu0 0
        %2365 = vmatpush1.bf16.msra.mxu0 0
        %2366 = vmatprep.subr.bf16.mxu0 0
        %2367 = vmatpush1.bf16.msra.mxu0 0
        %2368 = vmatprep.subr.bf16.mxu0 0
        %2369 = vmatpush1.bf16.msra.mxu0 0
        %2370 = vmatprep.subr.bf16.mxu0 0
        %2371 = vmatpush1.bf16.msra.mxu0 0
        %2372 = vmatprep.subr.bf16.mxu0 0
        %2373 = vmatpush1.bf16.msra.mxu0 0
        %2374 = vmatprep.subr.bf16.mxu0 0
        %2375 = vmatpush1.bf16.msra.mxu0 0
        %2376 = vmatprep.subr.bf16.mxu0 0
        %2377 = vmatpush1.bf16.msra.mxu0 0
        %2378 = vmatprep.subr.bf16.mxu0 0
        %2379 = vmatpush1.bf16.msra.mxu0 0
        %2380 = vmatprep.subr.bf16.mxu0 0
        %2381 = vmatpush1.bf16.msra.mxu0 0
        %2382 = vmatprep.subr.bf16.mxu0 0
        %2383 = vmatpush1.bf16.msra.mxu0 0
        %2384 = vmatprep.mubr.bf16.mxu0 0
        %2385 = vmatmul.mubr.bf16.gmra.mrb[0].mxu0 %v2350
        %v2386 = vpop.f32.mrb[0].mxu0
        %v2387 = vadd.f32 %v2335, %v2386
        %v2388 = vpop.f32.mrb[0].mxu0
        %v2389 = vpop.f32.mrb[0].mxu0
        %v2390 = vadd.f32 %v2335, %v2389
        %v2391 = vpop.f32.mrb[0].mxu0
        %2392 = vdwg.mxu0
        %v2393 = vld [vmem:[%s43] sm:$0xf]
        %v2394 = vld [vmem:[%s43 + $0x4] sm:$0xf]
        %v2395 = vld [vmem:[%s43 + $0x8] sm:$0xf]
        %v2396 = vld [vmem:[%s43 + $0xc] sm:$0xf]
        %v2397 = vld [vmem:[%s45] sm:$0x1]
        %v2399 = vlaneseq
        %v2400 = vshrl.u32 %v2399, 7
        %v2401 = vsub.s32 0, %v2400
        %v2402 = vrot.slane %v2397, %v2401
        %v2404 = vadd.f32 %v2275, %v2402
        %v2405 = vadd.f32 %v2278, %v2402
        %v2406 = vpack.c.bf16 %v2390, %v2387
        %2408 = vrot.lane.b32.xlu0 %v2406, 96
        %v2409 = vpop.permute.xlu0 %2408
        %vm2410 = vcmask 64512
        %v2412 = vsel %vm2410, %v2406, 0
        %v2415 = vsel %vm2410, %v2409, 0
        %2417 = vmatprep.subr.bf16.mxu0 0
        %2418 = vmatpush1.bf16.xpose.msra.mxu0 %v2415
        %2419 = vmatprep.subr.bf16.mxu0 0
        %2420 = vmatpush1.bf16.xpose.msra.mxu0 0
        %2421 = vmatprep.subr.bf16.mxu0 0
        %2422 = vmatpush1.bf16.xpose.msra.mxu0 0
        %2423 = vmatprep.subr.bf16.mxu0 0
        %2424 = vmatpush1.bf16.xpose.msra.mxu0 0
        %2425 = vmatprep.subr.bf16.mxu0 0
        %2426 = vmatpush1.bf16.xpose.msra.mxu0 0
        %2427 = vmatprep.subr.bf16.mxu0 0
        %2428 = vmatpush1.bf16.xpose.msra.mxu0 0
        %2429 = vmatprep.subr.bf16.mxu0 0
        %2430 = vmatpush1.bf16.xpose.msra.mxu0 0
        %2431 = vmatprep.subr.bf16.mxu0 0
        %2432 = vmatpush1.bf16.xpose.msra.mxu0 0
        %2433 = vmatprep.subr.bf16.mxu0 0
        %2434 = vmatpush1.bf16.xpose.msra.mxu0 0
        %2435 = vmatprep.subr.bf16.mxu0 0
        %2436 = vmatpush1.bf16.xpose.msra.mxu0 0
        %2437 = vmatprep.subr.bf16.mxu0 0
        %2438 = vmatpush1.bf16.xpose.msra.mxu0 0
        %2439 = vmatprep.subr.bf16.mxu0 0
        %2440 = vmatpush1.bf16.xpose.msra.mxu0 0
        %2441 = vmatprep.subr.bf16.mxu0 0
        %2442 = vmatpush1.bf16.xpose.msra.mxu0 0
        %2443 = vmatprep.subr.bf16.mxu0 0
        %2444 = vmatpush1.bf16.xpose.msra.mxu0 0
        %2445 = vmatprep.subr.bf16.mxu0 0
        %2446 = vmatpush1.bf16.xpose.msra.mxu0 0
        %2447 = vmatprep.subr.bf16.mxu0 0
        %2448 = vmatpush1.bf16.xpose.msra.mxu0 0
        %2449 = vmatprep.mubr.bf16.mxu0 0
        %2450 = vmatmul.mubr.bf16.gmra.mrb[0].mxu0 %v2412
        %v2451 = vpop.f32.mrb[0].mxu0
        %v2452 = vadd.f32 0.0, %v2451
        %v2453 = vpop.f32.mrb[0].mxu0
        %v2454 = vpop.f32.mrb[0].mxu0
        %v2455 = vadd.f32 0.0, %v2454
        %v2456 = vpop.f32.mrb[0].mxu0
        %2457 = vdwg.mxu0
        %vm2458 = vcmask 121856
        %v2459 = vsel %vm2458, %v2452, -inf
        %2460 = vmax.xlane.f32.xlu0 %v2459
        %v2461 = vpop.xlane.xlu0 %2460
        %vm2462 = vcmask 120832
        %v2463 = vsel %vm2462, %v2455, -inf
        %2464 = vmax.xlane.f32.xlu0 %v2463
        %v2465 = vpop.xlane.xlu0 %2464
        %v2466 = vsub.f32 %v2452, %v2461
        %v2467 = vsub.f32 %v2455, %v2465
        %v2468 = vmul.f32 %v2466, 1.442695
        %v2469 = vpow.pop %v2468
        %v2470 = vmul.f32 %v2467, 1.442695
        %v2471 = vpow.pop %v2470
        %v2472 = vsel %vm2458, %v2469, 0.0
        %2473 = vadd.xlane.f32.xlu0 %v2472
        %v2474 = vpop.xlane.xlu0 %2473
        %v2475 = vsel %vm2462, %v2471, 0.0
        %2476 = vadd.xlane.f32.xlu0 %v2475
        %v2477 = vpop.xlane.xlu0 %2476
        %v2478 = vrcp.pop %v2474
        %v2479 = vrcp.pop %v2477
        %v2480 = vmul.f32 %v2469, %v2478
        %v2481 = vmul.f32 %v2471, %v2479
        %v2482 = vpack.c.bf16 %v2481, %v2480
        %2483 = vrot.lane.b32.xlu0 %v2406, 64
        %v2484 = vpop.permute.xlu0 %2483
        %v2486 = vsel %vm2458, %v2482, 0
        %vm2488 = vcmask 1047552
        %v2489 = vsel %vm1394, 4294967295, 65535
        %v2490 = vsel %vm2488, %v2489, 0
        %v2492 = vand.u32 %v2484, %v2490
        %2494 = vmatprep.subr.bf16.mxu0 0
        %2495 = vmatpush1.bf16.msra.mxu0 %v2492
        %2496 = vmatprep.subr.bf16.mxu0 0
        %2497 = vmatpush1.bf16.msra.mxu0 0
        %2498 = vmatprep.subr.bf16.mxu0 0
        %2499 = vmatpush1.bf16.msra.mxu0 0
        %2500 = vmatprep.subr.bf16.mxu0 0
        %2501 = vmatpush1.bf16.msra.mxu0 0
        %2502 = vmatprep.subr.bf16.mxu0 0
        %2503 = vmatpush1.bf16.msra.mxu0 0
        %2504 = vmatprep.subr.bf16.mxu0 0
        %2505 = vmatpush1.bf16.msra.mxu0 0
        %2506 = vmatprep.subr.bf16.mxu0 0
        %2507 = vmatpush1.bf16.msra.mxu0 0
        %2508 = vmatprep.subr.bf16.mxu0 0
        %2509 = vmatpush1.bf16.msra.mxu0 0
        %2510 = vmatprep.subr.bf16.mxu0 0
        %2511 = vmatpush1.bf16.msra.mxu0 0
        %2512 = vmatprep.subr.bf16.mxu0 0
        %2513 = vmatpush1.bf16.msra.mxu0 0
        %2514 = vmatprep.subr.bf16.mxu0 0
        %2515 = vmatpush1.bf16.msra.mxu0 0
        %2516 = vmatprep.subr.bf16.mxu0 0
        %2517 = vmatpush1.bf16.msra.mxu0 0
        %2518 = vmatprep.subr.bf16.mxu0 0
        %2519 = vmatpush1.bf16.msra.mxu0 0
        %2520 = vmatprep.subr.bf16.mxu0 0
        %2521 = vmatpush1.bf16.msra.mxu0 0
        %2522 = vmatprep.subr.bf16.mxu0 0
        %2523 = vmatpush1.bf16.msra.mxu0 0
        %2524 = vmatprep.subr.bf16.mxu0 0
        %2525 = vmatpush1.bf16.msra.mxu0 0
        %2526 = vmatprep.mubr.bf16.mxu0 0
        %2527 = vmatmul.mubr.bf16.gmra.mrb[0].mxu0 %v2486
        %v2528 = vpop.f32.mrb[0].mxu0
        %v2529 = vadd.f32 0.0, %v2528
        %v2530 = vpop.f32.mrb[0].mxu0
        %v2531 = vpop.f32.mrb[0].mxu0
        %v2532 = vadd.f32 0.0, %v2531
        %v2533 = vpop.f32.mrb[0].mxu0
        %2534 = vdwg.mxu0
        %v2535 = vpack.c.bf16 %v2532, %v2529
        %v2537 = vsel %vm2410, %v2535, 0
        %vm2539 = vcmask 1043456
        %v2541 = vsel %vm2539, %v2393, 0
        %2543 = vmatprep.subr.bf16.mxu0 0
        %2544 = vmatpush1.bf16.msra.mxu0 %v2541
        %2545 = vmatprep.subr.bf16.mxu0 0
        %2546 = vmatpush1.bf16.msra.mxu0 0
        %2547 = vmatprep.subr.bf16.mxu0 0
        %2548 = vmatpush1.bf16.msra.mxu0 0
        %2549 = vmatprep.subr.bf16.mxu0 0
        %2550 = vmatpush1.bf16.msra.mxu0 0
        %2551 = vmatprep.subr.bf16.mxu0 0
        %2552 = vmatpush1.bf16.msra.mxu0 0
        %2553 = vmatprep.subr.bf16.mxu0 0
        %2554 = vmatpush1.bf16.msra.mxu0 0
        %2555 = vmatprep.subr.bf16.mxu0 0
        %2556 = vmatpush1.bf16.msra.mxu0 0
        %2557 = vmatprep.subr.bf16.mxu0 0
        %2558 = vmatpush1.bf16.msra.mxu0 0
        %2559 = vmatprep.subr.bf16.mxu0 0
        %2560 = vmatpush1.bf16.msra.mxu0 0
        %2561 = vmatprep.subr.bf16.mxu0 0
        %2562 = vmatpush1.bf16.msra.mxu0 0
        %2563 = vmatprep.subr.bf16.mxu0 0
        %2564 = vmatpush1.bf16.msra.mxu0 0
        %2565 = vmatprep.subr.bf16.mxu0 0
        %2566 = vmatpush1.bf16.msra.mxu0 0
        %2567 = vmatprep.subr.bf16.mxu0 0
        %2568 = vmatpush1.bf16.msra.mxu0 0
        %2569 = vmatprep.subr.bf16.mxu0 0
        %2570 = vmatpush1.bf16.msra.mxu0 0
        %2571 = vmatprep.subr.bf16.mxu0 0
        %2572 = vmatpush1.bf16.msra.mxu0 0
        %2573 = vmatprep.subr.bf16.mxu0 0
        %2574 = vmatpush1.bf16.msra.mxu0 0
        %2575 = vmatprep.mubr.bf16.mxu0 0
        %2576 = vmatmul.mubr.bf16.gmra.mrb[0].mxu0 %v2537
        %v2577 = vpop.f32.mrb[0].mxu0
        %v2578 = vadd.f32 0.0, %v2577
        %v2579 = vpop.f32.mrb[0].mxu0
        %v2580 = vpop.f32.mrb[0].mxu0
        %v2581 = vadd.f32 0.0, %v2580
        %v2582 = vpop.f32.mrb[0].mxu0
        %2583 = vdwg.mxu0
        %v2584 = vadd.f32 %v2404, %v2578
        %v2585 = vadd.f32 %v2405, %v2581
        %2586 = vrot.lane.b32.xlu0 %v2406, 120
        %v2587 = vpop.permute.xlu0 %2586
        %2588 = vrot.lane.b32.xlu0 %v2406, 88
        %v2589 = vpop.permute.xlu0 %2588
        %v2591 = vsel %vm2410, %v2587, 0
        %v2594 = vsel %vm2410, %v2589, 0
        %2596 = vmatprep.subr.bf16.mxu0 0
        %2597 = vmatpush1.bf16.xpose.msra.mxu0 %v2594
        %2598 = vmatprep.subr.bf16.mxu0 0
        %2599 = vmatpush1.bf16.xpose.msra.mxu0 0
        %2600 = vmatprep.subr.bf16.mxu0 0
        %2601 = vmatpush1.bf16.xpose.msra.mxu0 0
        %2602 = vmatprep.subr.bf16.mxu0 0
        %2603 = vmatpush1.bf16.xpose.msra.mxu0 0
        %2604 = vmatprep.subr.bf16.mxu0 0
        %2605 = vmatpush1.bf16.xpose.msra.mxu0 0
        %2606 = vmatprep.subr.bf16.mxu0 0
        %2607 = vmatpush1.bf16.xpose.msra.mxu0 0
        %2608 = vmatprep.subr.bf16.mxu0 0
        %2609 = vmatpush1.bf16.xpose.msra.mxu0 0
        %2610 = vmatprep.subr.bf16.mxu0 0
        %2611 = vmatpush1.bf16.xpose.msra.mxu0 0
        %2612 = vmatprep.subr.bf16.mxu0 0
        %2613 = vmatpush1.bf16.xpose.msra.mxu0 0
        %2614 = vmatprep.subr.bf16.mxu0 0
        %2615 = vmatpush1.bf16.xpose.msra.mxu0 0
        %2616 = vmatprep.subr.bf16.mxu0 0
        %2617 = vmatpush1.bf16.xpose.msra.mxu0 0
        %2618 = vmatprep.subr.bf16.mxu0 0
        %2619 = vmatpush1.bf16.xpose.msra.mxu0 0
        %2620 = vmatprep.subr.bf16.mxu0 0
        %2621 = vmatpush1.bf16.xpose.msra.mxu0 0
        %2622 = vmatprep.subr.bf16.mxu0 0
        %2623 = vmatpush1.bf16.xpose.msra.mxu0 0
        %2624 = vmatprep.subr.bf16.mxu0 0
        %2625 = vmatpush1.bf16.xpose.msra.mxu0 0
        %2626 = vmatprep.subr.bf16.mxu0 0
        %2627 = vmatpush1.bf16.xpose.msra.mxu0 0
        %2628 = vmatprep.mubr.bf16.mxu0 0
        %2629 = vmatmul.mubr.bf16.gmra.mrb[0].mxu0 %v2591
        %v2630 = vpop.f32.mrb[0].mxu0
        %v2631 = vadd.f32 0.0, %v2630
        %v2632 = vpop.f32.mrb[0].mxu0
        %v2633 = vpop.f32.mrb[0].mxu0
        %v2634 = vadd.f32 0.0, %v2633
        %v2635 = vpop.f32.mrb[0].mxu0
        %2636 = vdwg.mxu0
        %v2637 = vsel %vm2458, %v2631, -inf
        %2638 = vmax.xlane.f32.xlu0 %v2637
        %v2639 = vpop.xlane.xlu0 %2638
        %v2640 = vsel %vm2462, %v2634, -inf
        %2641 = vmax.xlane.f32.xlu0 %v2640
        %v2642 = vpop.xlane.xlu0 %2641
        %v2643 = vsub.f32 %v2631, %v2639
        %v2644 = vsub.f32 %v2634, %v2642
        %v2645 = vmul.f32 %v2643, 1.442695
        %v2646 = vpow.pop %v2645
        %v2647 = vmul.f32 %v2644, 1.442695
        %v2648 = vpow.pop %v2647
        %v2649 = vsel %vm2458, %v2646, 0.0
        %2650 = vadd.xlane.f32.xlu0 %v2649
        %v2651 = vpop.xlane.xlu0 %2650
        %v2652 = vsel %vm2462, %v2648, 0.0
        %2653 = vadd.xlane.f32.xlu0 %v2652
        %v2654 = vpop.xlane.xlu0 %2653
        %v2655 = vrcp.pop %v2651
        %v2656 = vrcp.pop %v2654
        %v2657 = vmul.f32 %v2646, %v2655
        %v2658 = vmul.f32 %v2648, %v2656
        %v2659 = vpack.c.bf16 %v2658, %v2657
        %2660 = vrot.lane.b32.xlu0 %v2406, 56
        %v2661 = vpop.permute.xlu0 %2660
        %v2663 = vsel %vm2458, %v2659, 0
        %v2666 = vand.u32 %v2661, %v2490
        %2668 = vmatprep.subr.bf16.mxu0 0
        %2669 = vmatpush1.bf16.msra.mxu0 %v2666
        %2670 = vmatprep.subr.bf16.mxu0 0
        %2671 = vmatpush1.bf16.msra.mxu0 0
        %2672 = vmatprep.subr.bf16.mxu0 0
        %2673 = vmatpush1.bf16.msra.mxu0 0
        %2674 = vmatprep.subr.bf16.mxu0 0
        %2675 = vmatpush1.bf16.msra.mxu0 0
        %2676 = vmatprep.subr.bf16.mxu0 0
        %2677 = vmatpush1.bf16.msra.mxu0 0
        %2678 = vmatprep.subr.bf16.mxu0 0
        %2679 = vmatpush1.bf16.msra.mxu0 0
        %2680 = vmatprep.subr.bf16.mxu0 0
        %2681 = vmatpush1.bf16.msra.mxu0 0
        %2682 = vmatprep.subr.bf16.mxu0 0
        %2683 = vmatpush1.bf16.msra.mxu0 0
        %2684 = vmatprep.subr.bf16.mxu0 0
        %2685 = vmatpush1.bf16.msra.mxu0 0
        %2686 = vmatprep.subr.bf16.mxu0 0
        %2687 = vmatpush1.bf16.msra.mxu0 0
        %2688 = vmatprep.subr.bf16.mxu0 0
        %2689 = vmatpush1.bf16.msra.mxu0 0
        %2690 = vmatprep.subr.bf16.mxu0 0
        %2691 = vmatpush1.bf16.msra.mxu0 0
        %2692 = vmatprep.subr.bf16.mxu0 0
        %2693 = vmatpush1.bf16.msra.mxu0 0
        %2694 = vmatprep.subr.bf16.mxu0 0
        %2695 = vmatpush1.bf16.msra.mxu0 0
        %2696 = vmatprep.subr.bf16.mxu0 0
        %2697 = vmatpush1.bf16.msra.mxu0 0
        %2698 = vmatprep.subr.bf16.mxu0 0
        %2699 = vmatpush1.bf16.msra.mxu0 0
        %2700 = vmatprep.mubr.bf16.mxu0 0
        %2701 = vmatmul.mubr.bf16.gmra.mrb[0].mxu0 %v2663
        %v2702 = vpop.f32.mrb[0].mxu0
        %v2703 = vadd.f32 0.0, %v2702
        %v2704 = vpop.f32.mrb[0].mxu0
        %v2705 = vpop.f32.mrb[0].mxu0
        %v2706 = vadd.f32 0.0, %v2705
        %v2707 = vpop.f32.mrb[0].mxu0
        %2708 = vdwg.mxu0
        %v2709 = vpack.c.bf16 %v2706, %v2703
        %v2711 = vsel %vm2410, %v2709, 0
        %v2714 = vsel %vm2539, %v2394, 0
        %2716 = vmatprep.subr.bf16.mxu0 0
        %2717 = vmatpush1.bf16.msra.mxu0 %v2714
        %2718 = vmatprep.subr.bf16.mxu0 0
        %2719 = vmatpush1.bf16.msra.mxu0 0
        %2720 = vmatprep.subr.bf16.mxu0 0
        %2721 = vmatpush1.bf16.msra.mxu0 0
        %2722 = vmatprep.subr.bf16.mxu0 0
        %2723 = vmatpush1.bf16.msra.mxu0 0
        %2724 = vmatprep.subr.bf16.mxu0 0
        %2725 = vmatpush1.bf16.msra.mxu0 0
        %2726 = vmatprep.subr.bf16.mxu0 0
        %2727 = vmatpush1.bf16.msra.mxu0 0
        %2728 = vmatprep.subr.bf16.mxu0 0
        %2729 = vmatpush1.bf16.msra.mxu0 0
        %2730 = vmatprep.subr.bf16.mxu0 0
        %2731 = vmatpush1.bf16.msra.mxu0 0
        %2732 = vmatprep.subr.bf16.mxu0 0
        %2733 = vmatpush1.bf16.msra.mxu0 0
        %2734 = vmatprep.subr.bf16.mxu0 0
        %2735 = vmatpush1.bf16.msra.mxu0 0
        %2736 = vmatprep.subr.bf16.mxu0 0
        %2737 = vmatpush1.bf16.msra.mxu0 0
        %2738 = vmatprep.subr.bf16.mxu0 0
        %2739 = vmatpush1.bf16.msra.mxu0 0
        %2740 = vmatprep.subr.bf16.mxu0 0
        %2741 = vmatpush1.bf16.msra.mxu0 0
        %2742 = vmatprep.subr.bf16.mxu0 0
        %2743 = vmatpush1.bf16.msra.mxu0 0
        %2744 = vmatprep.subr.bf16.mxu0 0
        %2745 = vmatpush1.bf16.msra.mxu0 0
        %2746 = vmatprep.subr.bf16.mxu0 0
        %2747 = vmatpush1.bf16.msra.mxu0 0
        %2748 = vmatprep.mubr.bf16.mxu0 0
        %2749 = vmatmul.mubr.bf16.gmra.mrb[0].mxu0 %v2711
        %v2750 = vpop.f32.mrb[0].mxu0
        %v2751 = vadd.f32 0.0, %v2750
        %v2752 = vpop.f32.mrb[0].mxu0
        %v2753 = vpop.f32.mrb[0].mxu0
        %v2754 = vadd.f32 0.0, %v2753
        %v2755 = vpop.f32.mrb[0].mxu0
        %2756 = vdwg.mxu0
        %v2757 = vadd.f32 %v2584, %v2751
        %v2758 = vadd.f32 %v2585, %v2754
        %2759 = vrot.lane.b32.xlu0 %v2406, 112
        %v2760 = vpop.permute.xlu0 %2759
        %2761 = vrot.lane.b32.xlu0 %v2406, 80
        %v2762 = vpop.permute.xlu0 %2761
        %v2764 = vsel %vm2410, %v2760, 0
        %v2767 = vsel %vm2410, %v2762, 0
        %2769 = vmatprep.subr.bf16.mxu0 0
        %2770 = vmatpush1.bf16.xpose.msra.mxu0 %v2767
        %2771 = vmatprep.subr.bf16.mxu0 0
        %2772 = vmatpush1.bf16.xpose.msra.mxu0 0
        %2773 = vmatprep.subr.bf16.mxu0 0
        %2774 = vmatpush1.bf16.xpose.msra.mxu0 0
        %2775 = vmatprep.subr.bf16.mxu0 0
        %2776 = vmatpush1.bf16.xpose.msra.mxu0 0
        %2777 = vmatprep.subr.bf16.mxu0 0
        %2778 = vmatpush1.bf16.xpose.msra.mxu0 0
        %2779 = vmatprep.subr.bf16.mxu0 0
        %2780 = vmatpush1.bf16.xpose.msra.mxu0 0
        %2781 = vmatprep.subr.bf16.mxu0 0
        %2782 = vmatpush1.bf16.xpose.msra.mxu0 0
        %2783 = vmatprep.subr.bf16.mxu0 0
        %2784 = vmatpush1.bf16.xpose.msra.mxu0 0
        %2785 = vmatprep.subr.bf16.mxu0 0
        %2786 = vmatpush1.bf16.xpose.msra.mxu0 0
        %2787 = vmatprep.subr.bf16.mxu0 0
        %2788 = vmatpush1.bf16.xpose.msra.mxu0 0
        %2789 = vmatprep.subr.bf16.mxu0 0
        %2790 = vmatpush1.bf16.xpose.msra.mxu0 0
        %2791 = vmatprep.subr.bf16.mxu0 0
        %2792 = vmatpush1.bf16.xpose.msra.mxu0 0
        %2793 = vmatprep.subr.bf16.mxu0 0
        %2794 = vmatpush1.bf16.xpose.msra.mxu0 0
        %2795 = vmatprep.subr.bf16.mxu0 0
        %2796 = vmatpush1.bf16.xpose.msra.mxu0 0
        %2797 = vmatprep.subr.bf16.mxu0 0
        %2798 = vmatpush1.bf16.xpose.msra.mxu0 0
        %2799 = vmatprep.subr.bf16.mxu0 0
        %2800 = vmatpush1.bf16.xpose.msra.mxu0 0
        %2801 = vmatprep.mubr.bf16.mxu0 0
        %2802 = vmatmul.mubr.bf16.gmra.mrb[0].mxu0 %v2764
        %v2803 = vpop.f32.mrb[0].mxu0
        %v2804 = vadd.f32 0.0, %v2803
        %v2805 = vpop.f32.mrb[0].mxu0
        %v2806 = vpop.f32.mrb[0].mxu0
        %v2807 = vadd.f32 0.0, %v2806
        %v2808 = vpop.f32.mrb[0].mxu0
        %2809 = vdwg.mxu0
        %v2810 = vsel %vm2458, %v2804, -inf
        %2811 = vmax.xlane.f32.xlu0 %v2810
        %v2812 = vpop.xlane.xlu0 %2811
        %v2813 = vsel %vm2462, %v2807, -inf
        %2814 = vmax.xlane.f32.xlu0 %v2813
        %v2815 = vpop.xlane.xlu0 %2814
        %v2816 = vsub.f32 %v2804, %v2812
        %v2817 = vsub.f32 %v2807, %v2815
        %v2818 = vmul.f32 %v2816, 1.442695
        %v2819 = vpow.pop %v2818
        %v2820 = vmul.f32 %v2817, 1.442695
        %v2821 = vpow.pop %v2820
        %v2822 = vsel %vm2458, %v2819, 0.0
        %2823 = vadd.xlane.f32.xlu0 %v2822
        %v2824 = vpop.xlane.xlu0 %2823
        %v2825 = vsel %vm2462, %v2821, 0.0
        %2826 = vadd.xlane.f32.xlu0 %v2825
        %v2827 = vpop.xlane.xlu0 %2826
        %v2828 = vrcp.pop %v2824
        %v2829 = vrcp.pop %v2827
        %v2830 = vmul.f32 %v2819, %v2828
        %v2831 = vmul.f32 %v2821, %v2829
        %v2832 = vpack.c.bf16 %v2831, %v2830
        %2833 = vrot.lane.b32.xlu0 %v2406, 48
        %v2834 = vpop.permute.xlu0 %2833
        %v2836 = vsel %vm2458, %v2832, 0
        %v2839 = vand.u32 %v2834, %v2490
        %2841 = vmatprep.subr.bf16.mxu0 0
        %2842 = vmatpush1.bf16.msra.mxu0 %v2839
        %2843 = vmatprep.subr.bf16.mxu0 0
        %2844 = vmatpush1.bf16.msra.mxu0 0
        %2845 = vmatprep.subr.bf16.mxu0 0
        %2846 = vmatpush1.bf16.msra.mxu0 0
        %2847 = vmatprep.subr.bf16.mxu0 0
        %2848 = vmatpush1.bf16.msra.mxu0 0
        %2849 = vmatprep.subr.bf16.mxu0 0
        %2850 = vmatpush1.bf16.msra.mxu0 0
        %2851 = vmatprep.subr.bf16.mxu0 0
        %2852 = vmatpush1.bf16.msra.mxu0 0
        %2853 = vmatprep.subr.bf16.mxu0 0
        %2854 = vmatpush1.bf16.msra.mxu0 0
        %2855 = vmatprep.subr.bf16.mxu0 0
        %2856 = vmatpush1.bf16.msra.mxu0 0
        %2857 = vmatprep.subr.bf16.mxu0 0
        %2858 = vmatpush1.bf16.msra.mxu0 0
        %2859 = vmatprep.subr.bf16.mxu0 0
        %2860 = vmatpush1.bf16.msra.mxu0 0
        %2861 = vmatprep.subr.bf16.mxu0 0
        %2862 = vmatpush1.bf16.msra.mxu0 0
        %2863 = vmatprep.subr.bf16.mxu0 0
        %2864 = vmatpush1.bf16.msra.mxu0 0
        %2865 = vmatprep.subr.bf16.mxu0 0
        %2866 = vmatpush1.bf16.msra.mxu0 0
        %2867 = vmatprep.subr.bf16.mxu0 0
        %2868 = vmatpush1.bf16.msra.mxu0 0
        %2869 = vmatprep.subr.bf16.mxu0 0
        %2870 = vmatpush1.bf16.msra.mxu0 0
        %2871 = vmatprep.subr.bf16.mxu0 0
        %2872 = vmatpush1.bf16.msra.mxu0 0
        %2873 = vmatprep.mubr.bf16.mxu0 0
        %2874 = vmatmul.mubr.bf16.gmra.mrb[0].mxu0 %v2836
        %v2875 = vpop.f32.mrb[0].mxu0
        %v2876 = vadd.f32 0.0, %v2875
        %v2877 = vpop.f32.mrb[0].mxu0
        %v2878 = vpop.f32.mrb[0].mxu0
        %v2879 = vadd.f32 0.0, %v2878
        %v2880 = vpop.f32.mrb[0].mxu0
        %2881 = vdwg.mxu0
        %v2882 = vpack.c.bf16 %v2879, %v2876
        %v2884 = vsel %vm2410, %v2882, 0
        %v2887 = vsel %vm2539, %v2395, 0
        %2889 = vmatprep.subr.bf16.mxu0 0
        %2890 = vmatpush1.bf16.msra.mxu0 %v2887
        %2891 = vmatprep.subr.bf16.mxu0 0
        %2892 = vmatpush1.bf16.msra.mxu0 0
        %2893 = vmatprep.subr.bf16.mxu0 0
        %2894 = vmatpush1.bf16.msra.mxu0 0
        %2895 = vmatprep.subr.bf16.mxu0 0
        %2896 = vmatpush1.bf16.msra.mxu0 0
        %2897 = vmatprep.subr.bf16.mxu0 0
        %2898 = vmatpush1.bf16.msra.mxu0 0
        %2899 = vmatprep.subr.bf16.mxu0 0
        %2900 = vmatpush1.bf16.msra.mxu0 0
        %2901 = vmatprep.subr.bf16.mxu0 0
        %2902 = vmatpush1.bf16.msra.mxu0 0
        %2903 = vmatprep.subr.bf16.mxu0 0
        %2904 = vmatpush1.bf16.msra.mxu0 0
        %2905 = vmatprep.subr.bf16.mxu0 0
        %2906 = vmatpush1.bf16.msra.mxu0 0
        %2907 = vmatprep.subr.bf16.mxu0 0
        %2908 = vmatpush1.bf16.msra.mxu0 0
        %2909 = vmatprep.subr.bf16.mxu0 0
        %2910 = vmatpush1.bf16.msra.mxu0 0
        %2911 = vmatprep.subr.bf16.mxu0 0
        %2912 = vmatpush1.bf16.msra.mxu0 0
        %2913 = vmatprep.subr.bf16.mxu0 0
        %2914 = vmatpush1.bf16.msra.mxu0 0
        %2915 = vmatprep.subr.bf16.mxu0 0
        %2916 = vmatpush1.bf16.msra.mxu0 0
        %2917 = vmatprep.subr.bf16.mxu0 0
        %2918 = vmatpush1.bf16.msra.mxu0 0
        %2919 = vmatprep.subr.bf16.mxu0 0
        %2920 = vmatpush1.bf16.msra.mxu0 0
        %2921 = vmatprep.mubr.bf16.mxu0 0
        %2922 = vmatmul.mubr.bf16.gmra.mrb[0].mxu0 %v2884
        %v2923 = vpop.f32.mrb[0].mxu0
        %v2924 = vadd.f32 0.0, %v2923
        %v2925 = vpop.f32.mrb[0].mxu0
        %v2926 = vpop.f32.mrb[0].mxu0
        %v2927 = vadd.f32 0.0, %v2926
        %v2928 = vpop.f32.mrb[0].mxu0
        %2929 = vdwg.mxu0
        %v2930 = vadd.f32 %v2757, %v2924
        %v2931 = vadd.f32 %v2758, %v2927
        %2932 = vrot.lane.b32.xlu0 %v2406, 104
        %v2933 = vpop.permute.xlu0 %2932
        %2934 = vrot.lane.b32.xlu0 %v2406, 72
        %v2935 = vpop.permute.xlu0 %2934
        %v2937 = vsel %vm2410, %v2933, 0
        %v2940 = vsel %vm2410, %v2935, 0
        %2942 = vmatprep.subr.bf16.mxu0 0
        %2943 = vmatpush1.bf16.xpose.msra.mxu0 %v2940
        %2944 = vmatprep.subr.bf16.mxu0 0
        %2945 = vmatpush1.bf16.xpose.msra.mxu0 0
        %2946 = vmatprep.subr.bf16.mxu0 0
        %2947 = vmatpush1.bf16.xpose.msra.mxu0 0
        %2948 = vmatprep.subr.bf16.mxu0 0
        %2949 = vmatpush1.bf16.xpose.msra.mxu0 0
        %2950 = vmatprep.subr.bf16.mxu0 0
        %2951 = vmatpush1.bf16.xpose.msra.mxu0 0
        %2952 = vmatprep.subr.bf16.mxu0 0
        %2953 = vmatpush1.bf16.xpose.msra.mxu0 0
        %2954 = vmatprep.subr.bf16.mxu0 0
        %2955 = vmatpush1.bf16.xpose.msra.mxu0 0
        %2956 = vmatprep.subr.bf16.mxu0 0
        %2957 = vmatpush1.bf16.xpose.msra.mxu0 0
        %2958 = vmatprep.subr.bf16.mxu0 0
        %2959 = vmatpush1.bf16.xpose.msra.mxu0 0
        %2960 = vmatprep.subr.bf16.mxu0 0
        %2961 = vmatpush1.bf16.xpose.msra.mxu0 0
        %2962 = vmatprep.subr.bf16.mxu0 0
        %2963 = vmatpush1.bf16.xpose.msra.mxu0 0
        %2964 = vmatprep.subr.bf16.mxu0 0
        %2965 = vmatpush1.bf16.xpose.msra.mxu0 0
        %2966 = vmatprep.subr.bf16.mxu0 0
        %2967 = vmatpush1.bf16.xpose.msra.mxu0 0
        %2968 = vmatprep.subr.bf16.mxu0 0
        %2969 = vmatpush1.bf16.xpose.msra.mxu0 0
        %2970 = vmatprep.subr.bf16.mxu0 0
        %2971 = vmatpush1.bf16.xpose.msra.mxu0 0
        %2972 = vmatprep.subr.bf16.mxu0 0
        %2973 = vmatpush1.bf16.xpose.msra.mxu0 0
        %2974 = vmatprep.mubr.bf16.mxu0 0
        %2975 = vmatmul.mubr.bf16.gmra.mrb[0].mxu0 %v2937
        %v2976 = vpop.f32.mrb[0].mxu0
        %v2977 = vadd.f32 0.0, %v2976
        %v2978 = vpop.f32.mrb[0].mxu0
        %v2979 = vpop.f32.mrb[0].mxu0
        %v2980 = vadd.f32 0.0, %v2979
        %v2981 = vpop.f32.mrb[0].mxu0
        %2982 = vdwg.mxu0
        %v2983 = vsel %vm2458, %v2977, -inf
        %2984 = vmax.xlane.f32.xlu0 %v2983
        %v2985 = vpop.xlane.xlu0 %2984
        %v2986 = vsel %vm2462, %v2980, -inf
        %2987 = vmax.xlane.f32.xlu0 %v2986
        %v2988 = vpop.xlane.xlu0 %2987
        %v2989 = vsub.f32 %v2977, %v2985
        %v2990 = vsub.f32 %v2980, %v2988
        %v2991 = vmul.f32 %v2989, 1.442695
        %v2992 = vpow.pop %v2991
        %v2993 = vmul.f32 %v2990, 1.442695
        %v2994 = vpow.pop %v2993
        %v2995 = vsel %vm2458, %v2992, 0.0
        %2996 = vadd.xlane.f32.xlu0 %v2995
        %v2997 = vpop.xlane.xlu0 %2996
        %v2998 = vsel %vm2462, %v2994, 0.0
        %2999 = vadd.xlane.f32.xlu0 %v2998
        %v3000 = vpop.xlane.xlu0 %2999
        %v3001 = vrcp.pop %v2997
        %v3002 = vrcp.pop %v3000
        %v3003 = vmul.f32 %v2992, %v3001
        %v3004 = vmul.f32 %v2994, %v3002
        %v3005 = vpack.c.bf16 %v3004, %v3003
        %3006 = vrot.lane.b32.xlu0 %v2406, 40
        %v3007 = vpop.permute.xlu0 %3006
        %v3009 = vsel %vm2458, %v3005, 0
        %v3012 = vand.u32 %v3007, %v2490
        %3014 = vmatprep.subr.bf16.mxu0 0
        %3015 = vmatpush1.bf16.msra.mxu0 %v3012
        %3016 = vmatprep.subr.bf16.mxu0 0
        %3017 = vmatpush1.bf16.msra.mxu0 0
        %3018 = vmatprep.subr.bf16.mxu0 0
        %3019 = vmatpush1.bf16.msra.mxu0 0
        %3020 = vmatprep.subr.bf16.mxu0 0
        %3021 = vmatpush1.bf16.msra.mxu0 0
        %3022 = vmatprep.subr.bf16.mxu0 0
        %3023 = vmatpush1.bf16.msra.mxu0 0
        %3024 = vmatprep.subr.bf16.mxu0 0
        %3025 = vmatpush1.bf16.msra.mxu0 0
        %3026 = vmatprep.subr.bf16.mxu0 0
        %3027 = vmatpush1.bf16.msra.mxu0 0
        %3028 = vmatprep.subr.bf16.mxu0 0
        %3029 = vmatpush1.bf16.msra.mxu0 0
        %3030 = vmatprep.subr.bf16.mxu0 0
        %3031 = vmatpush1.bf16.msra.mxu0 0
        %3032 = vmatprep.subr.bf16.mxu0 0
        %3033 = vmatpush1.bf16.msra.mxu0 0
        %3034 = vmatprep.subr.bf16.mxu0 0
        %3035 = vmatpush1.bf16.msra.mxu0 0
        %3036 = vmatprep.subr.bf16.mxu0 0
        %3037 = vmatpush1.bf16.msra.mxu0 0
        %3038 = vmatprep.subr.bf16.mxu0 0
        %3039 = vmatpush1.bf16.msra.mxu0 0
        %3040 = vmatprep.subr.bf16.mxu0 0
        %3041 = vmatpush1.bf16.msra.mxu0 0
        %3042 = vmatprep.subr.bf16.mxu0 0
        %3043 = vmatpush1.bf16.msra.mxu0 0
        %3044 = vmatprep.subr.bf16.mxu0 0
        %3045 = vmatpush1.bf16.msra.mxu0 0
        %3046 = vmatprep.mubr.bf16.mxu0 0
        %3047 = vmatmul.mubr.bf16.gmra.mrb[0].mxu0 %v3009
        %v3048 = vpop.f32.mrb[0].mxu0
        %v3049 = vadd.f32 0.0, %v3048
        %v3050 = vpop.f32.mrb[0].mxu0
        %v3051 = vpop.f32.mrb[0].mxu0
        %v3052 = vadd.f32 0.0, %v3051
        %v3053 = vpop.f32.mrb[0].mxu0
        %3054 = vdwg.mxu0
        %v3055 = vpack.c.bf16 %v3052, %v3049
        %v3057 = vsel %vm2410, %v3055, 0
        %v3060 = vsel %vm2539, %v2396, 0
        %3062 = vmatprep.subr.bf16.mxu0 0
        %3063 = vmatpush1.bf16.msra.mxu0 %v3060
        %3064 = vmatprep.subr.bf16.mxu0 0
        %3065 = vmatpush1.bf16.msra.mxu0 0
        %3066 = vmatprep.subr.bf16.mxu0 0
        %3067 = vmatpush1.bf16.msra.mxu0 0
        %3068 = vmatprep.subr.bf16.mxu0 0
        %3069 = vmatpush1.bf16.msra.mxu0 0
        %3070 = vmatprep.subr.bf16.mxu0 0
        %3071 = vmatpush1.bf16.msra.mxu0 0
        %3072 = vmatprep.subr.bf16.mxu0 0
        %3073 = vmatpush1.bf16.msra.mxu0 0
        %3074 = vmatprep.subr.bf16.mxu0 0
        %3075 = vmatpush1.bf16.msra.mxu0 0
        %3076 = vmatprep.subr.bf16.mxu0 0
        %3077 = vmatpush1.bf16.msra.mxu0 0
        %3078 = vmatprep.subr.bf16.mxu0 0
        %3079 = vmatpush1.bf16.msra.mxu0 0
        %3080 = vmatprep.subr.bf16.mxu0 0
        %3081 = vmatpush1.bf16.msra.mxu0 0
        %3082 = vmatprep.subr.bf16.mxu0 0
        %3083 = vmatpush1.bf16.msra.mxu0 0
        %3084 = vmatprep.subr.bf16.mxu0 0
        %3085 = vmatpush1.bf16.msra.mxu0 0
        %3086 = vmatprep.subr.bf16.mxu0 0
        %3087 = vmatpush1.bf16.msra.mxu0 0
        %3088 = vmatprep.subr.bf16.mxu0 0
        %3089 = vmatpush1.bf16.msra.mxu0 0
        %3090 = vmatprep.subr.bf16.mxu0 0
        %3091 = vmatpush1.bf16.msra.mxu0 0
        %3092 = vmatprep.subr.bf16.mxu0 0
        %3093 = vmatpush1.bf16.msra.mxu0 0
        %3094 = vmatprep.mubr.bf16.mxu0 0
        %3095 = vmatmul.mubr.bf16.gmra.mrb[0].mxu0 %v3057
        %v3096 = vpop.f32.mrb[0].mxu0
        %v3097 = vadd.f32 0.0, %v3096
        %v3098 = vpop.f32.mrb[0].mxu0
        %v3099 = vpop.f32.mrb[0].mxu0
        %v3100 = vadd.f32 0.0, %v3099
        %v3101 = vpop.f32.mrb[0].mxu0
        %3102 = vdwg.mxu0
        %v3103 = vadd.f32 %v2930, %v3097
        %v3104 = vadd.f32 %v2931, %v3100
        %v3105 = vld [vmem:[%s47] sm:$0x1]
        %v3106 = vld [vmem:[%s49] sm:$0x1]
        %v3107 = vsel %vm1179, %v3103, 0.0
        %3108 = vadd.xlane.f32.xlu0 %v3107
        %v3109 = vpop.xlane.xlu0 %3108
        %v3110 = vsel %vm1201, %v3104, 0.0
        %3111 = vadd.xlane.f32.xlu0 %v3110
        %v3112 = vpop.xlane.xlu0 %3111
        %v3113 = vmul.f32 %v3109, %v1205
        %v3114 = vmul.f32 %v3112, %v1205
        %v3115 = vsub.f32 %v3103, %v3113
        %v3116 = vsub.f32 %v3104, %v3114
        %v3117 = vmul.f32 %v3115, %v3115
        %v3118 = vmul.f32 %v3116, %v3116
        %v3119 = vsel %vm1179, %v3117, 0.0
        %3120 = vadd.xlane.f32.xlu0 %v3119
        %v3121 = vpop.xlane.xlu0 %3120
        %v3122 = vsel %vm1201, %v3118, 0.0
        %3123 = vadd.xlane.f32.xlu0 %v3122
        %v3124 = vpop.xlane.xlu0 %3123
        %v3125 = vmul.f32 %v3121, %v1205
        %v3126 = vmul.f32 %v3124, %v1205
        %v3127 = vadd.f32 %v3125, 1e-05
        %v3128 = vadd.f32 %v3126, 1e-05
        %v3129 = vrsqrt.pop %v3127
        %v3130 = vrsqrt.pop %v3128
        %v3131 = vmul.f32 %v3115, %v3129
        %v3132 = vmul.f32 %v3116, %v3130
        %v3134 = vlaneseq
        %v3135 = vshrl.u32 %v3134, 7
        %v3136 = vsub.s32 0, %v3135
        %v3137 = vrot.slane %v3105, %v3136
        %v3139 = vmul.f32 %v3131, %v3137
        %v3140 = vmul.f32 %v3132, %v3137
        %v3142 = vlaneseq
        %v3143 = vshrl.u32 %v3142, 7
        %v3144 = vsub.s32 0, %v3143
        %v3145 = vrot.slane %v3106, %v3144
        %v3147 = vadd.f32 %v3139, %v3145
        %v3148 = vadd.f32 %v3140, %v3145
        %v3149 = vpack.c.bf16 %v3148, %v3147
        %v3150 = vld [vmem:[%s51] sm:$0xf]
        %v3151 = vld [vmem:[%s51 + $0x4] sm:$0xf]
        %v3152 = vld [vmem:[%s51 + $0x8] sm:$0xf]
        %v3153 = vld [vmem:[%s51 + $0xc] sm:$0xf]
        %v3154 = vld [vmem:[%s53] sm:$0x1]
        %v3156 = vlaneseq
        %v3157 = vshrl.u32 %v3156, 7
        %v3158 = vsub.s32 0, %v3157
        %v3159 = vrot.slane %v3154, %v3158
        %v3165 = vunpack.c.l.b16 %v3150
        %v3166 = vunpack.c.l.b16 %v3151
        %v3167 = vunpack.c.l.b16 %v3152
        %v3168 = vunpack.c.l.b16 %v3153
        %v3169 = vpack.c.b16 %v3166, %v3165
        %v3170 = vpack.c.b16 %v3168, %v3167
        %v3174 = vsel %vm1179, %v3149, 0
        %3176 = vmatprep.subr.bf16.mxu0 0
        %3177 = vmatpush1.bf16.msra.mxu0 %v3169
        %3178 = vmatprep.subr.bf16.mxu0 0
        %3179 = vmatpush1.bf16.msra.mxu0 %v3170
        %3180 = vmatprep.subr.bf16.mxu0 0
        %3181 = vmatpush1.bf16.msra.mxu0 0
        %3182 = vmatprep.subr.bf16.mxu0 0
        %3183 = vmatpush1.bf16.msra.mxu0 0
        %3184 = vmatprep.subr.bf16.mxu0 0
        %3185 = vmatpush1.bf16.msra.mxu0 0
        %3186 = vmatprep.subr.bf16.mxu0 0
        %3187 = vmatpush1.bf16.msra.mxu0 0
        %3188 = vmatprep.subr.bf16.mxu0 0
        %3189 = vmatpush1.bf16.msra.mxu0 0
        %3190 = vmatprep.subr.bf16.mxu0 0
        %3191 = vmatpush1.bf16.msra.mxu0 0
        %3192 = vmatprep.subr.bf16.mxu0 0
        %3193 = vmatpush1.bf16.msra.mxu0 0
        %3194 = vmatprep.subr.bf16.mxu0 0
        %3195 = vmatpush1.bf16.msra.mxu0 0
        %3196 = vmatprep.subr.bf16.mxu0 0
        %3197 = vmatpush1.bf16.msra.mxu0 0
        %3198 = vmatprep.subr.bf16.mxu0 0
        %3199 = vmatpush1.bf16.msra.mxu0 0
        %3200 = vmatprep.subr.bf16.mxu0 0
        %3201 = vmatpush1.bf16.msra.mxu0 0
        %3202 = vmatprep.subr.bf16.mxu0 0
        %3203 = vmatpush1.bf16.msra.mxu0 0
        %3204 = vmatprep.subr.bf16.mxu0 0
        %3205 = vmatpush1.bf16.msra.mxu0 0
        %3206 = vmatprep.subr.bf16.mxu0 0
        %3207 = vmatpush1.bf16.msra.mxu0 0
        %3208 = vmatprep.mubr.bf16.mxu0 0
        %3209 = vmatmul.mubr.bf16.gmra.mrb[0].mxu0 %v3174
        %v3210 = vpop.f32.mrb[0].mxu0
        %v3211 = vadd.f32 %v3159, %v3210
        %v3212 = vpop.f32.mrb[0].mxu0
        %v3213 = vpop.f32.mrb[0].mxu0
        %v3214 = vadd.f32 %v3159, %v3213
        %v3215 = vpop.f32.mrb[0].mxu0
        %3216 = vdwg.mxu0
        %v3217 = vmul.f32 %v3211, 0.5
        %v3218 = vmul.f32 %v3214, 0.5
        %v3219 = vmul.f32 %v3211, 0.044715
        %v3220 = vmul.f32 %v3214, 0.044715
        %v3221 = vmul.f32 %v3219, %v3211
        %v3222 = vmul.f32 %v3220, %v3214
        %v3223 = vmul.f32 %v3221, %v3211
        %v3224 = vmul.f32 %v3222, %v3214
        %v3225 = vadd.f32 %v3211, %v3223
        %v3226 = vadd.f32 %v3214, %v3224
        %v3227 = vmul.f32 %v3225, 0.7978846
        %v3228 = vmul.f32 %v3226, 0.7978846
        %v3229 = vtanh.pop %v3227
        %v3230 = vtanh.pop %v3228
        %v3231 = vadd.f32 %v3229, 1.0
        %v3232 = vadd.f32 %v3230, 1.0
        %v3233 = vmul.f32 %v3217, %v3231
        %v3234 = vmul.f32 %v3218, %v3232
        %v3235 = vpack.c.bf16 %v3234, %v3233
        %v3236 = vld [vmem:[%s55] sm:$0xf]
        %v3237 = vld [vmem:[%s55 + $0x4] sm:$0xf]
        %v3238 = vld [vmem:[%s55 + $0x8] sm:$0xf]
        %v3239 = vld [vmem:[%s55 + $0xc] sm:$0xf]
        %v3240 = vld [vmem:[%s55 + $0x10] sm:$0xf]
        %v3241 = vld [vmem:[%s55 + $0x14] sm:$0xf]
        %v3242 = vld [vmem:[%s55 + $0x18] sm:$0xf]
        %v3243 = vld [vmem:[%s55 + $0x1c] sm:$0xf]
        %v3244 = vld [vmem:[%s57] sm:$0x1]
        %v3246 = vlaneseq
        %v3247 = vshrl.u32 %v3246, 7
        %v3248 = vsub.s32 0, %v3247
        %v3249 = vrot.slane %v3244, %v3248
        %v3259 = vunpack.c.l.b16 %v3236
        %v3260 = vunpack.c.l.b16 %v3237
        %v3261 = vunpack.c.l.b16 %v3238
        %v3262 = vunpack.c.l.b16 %v3239
        %v3263 = vunpack.c.l.b16 %v3240
        %v3264 = vunpack.c.l.b16 %v3241
        %v3265 = vunpack.c.l.b16 %v3242
        %v3266 = vunpack.c.l.b16 %v3243
        %v3267 = vpack.c.b16 %v3260, %v3259
        %v3268 = vpack.c.b16 %v3262, %v3261
        %v3269 = vpack.c.b16 %v3264, %v3263
        %v3270 = vpack.c.b16 %v3266, %v3265
        %v3276 = vsel %vm1482, %v3235, 0
        %3278 = vmatprep.subr.bf16.mxu0 0
        %3279 = vmatpush1.bf16.msra.mxu0 %v3267
        %3280 = vmatprep.subr.bf16.mxu0 0
        %3281 = vmatpush1.bf16.msra.mxu0 %v3268
        %3282 = vmatprep.subr.bf16.mxu0 0
        %3283 = vmatpush1.bf16.msra.mxu0 %v3269
        %3284 = vmatprep.subr.bf16.mxu0 0
        %3285 = vmatpush1.bf16.msra.mxu0 %v3270
        %3286 = vmatprep.subr.bf16.mxu0 0
        %3287 = vmatpush1.bf16.msra.mxu0 0
        %3288 = vmatprep.subr.bf16.mxu0 0
        %3289 = vmatpush1.bf16.msra.mxu0 0
        %3290 = vmatprep.subr.bf16.mxu0 0
        %3291 = vmatpush1.bf16.msra.mxu0 0
        %3292 = vmatprep.subr.bf16.mxu0 0
        %3293 = vmatpush1.bf16.msra.mxu0 0
        %3294 = vmatprep.subr.bf16.mxu0 0
        %3295 = vmatpush1.bf16.msra.mxu0 0
        %3296 = vmatprep.subr.bf16.mxu0 0
        %3297 = vmatpush1.bf16.msra.mxu0 0
        %3298 = vmatprep.subr.bf16.mxu0 0
        %3299 = vmatpush1.bf16.msra.mxu0 0
        %3300 = vmatprep.subr.bf16.mxu0 0
        %3301 = vmatpush1.bf16.msra.mxu0 0
        %3302 = vmatprep.subr.bf16.mxu0 0
        %3303 = vmatpush1.bf16.msra.mxu0 0
        %3304 = vmatprep.subr.bf16.mxu0 0
        %3305 = vmatpush1.bf16.msra.mxu0 0
        %3306 = vmatprep.subr.bf16.mxu0 0
        %3307 = vmatpush1.bf16.msra.mxu0 0
        %3308 = vmatprep.subr.bf16.mxu0 0
        %3309 = vmatpush1.bf16.msra.mxu0 0
        %3310 = vmatprep.mubr.bf16.mxu0 0
        %3311 = vmatmul.mubr.bf16.gmra.mrb[0].mxu0 %v3276
        %v3312 = vpop.f32.mrb[0].mxu0
        %v3313 = vadd.f32 %v3249, %v3312
        %v3314 = vpop.f32.mrb[0].mxu0
        %v3315 = vpop.f32.mrb[0].mxu0
        %v3316 = vadd.f32 %v3249, %v3315
        %v3317 = vpop.f32.mrb[0].mxu0
        %3318 = vdwg.mxu0
        %v3319 = vadd.f32 %v3103, %v3313
        %v3320 = vadd.f32 %v3104, %v3316
        %s3321 = scalar_lea.vmem %s35, 1
        %v3322 = vld [vmem:[%s3321] sm:$0x1]
        %s3323 = scalar_lea.vmem %s37, 1
        %v3324 = vld [vmem:[%s3323] sm:$0x1]
        %v3325 = vsel %vm1179, %v3319, 0.0
        %3326 = vadd.xlane.f32.xlu0 %v3325
        %v3327 = vpop.xlane.xlu0 %3326
        %v3328 = vsel %vm1201, %v3320, 0.0
        %3329 = vadd.xlane.f32.xlu0 %v3328
        %v3330 = vpop.xlane.xlu0 %3329
        %v3331 = vmul.f32 %v3327, %v1205
        %v3332 = vmul.f32 %v3330, %v1205
        %v3333 = vsub.f32 %v3319, %v3331
        %v3334 = vsub.f32 %v3320, %v3332
        %v3335 = vmul.f32 %v3333, %v3333
        %v3336 = vmul.f32 %v3334, %v3334
        %v3337 = vsel %vm1179, %v3335, 0.0
        %3338 = vadd.xlane.f32.xlu0 %v3337
        %v3339 = vpop.xlane.xlu0 %3338
        %v3340 = vsel %vm1201, %v3336, 0.0
        %3341 = vadd.xlane.f32.xlu0 %v3340
        %v3342 = vpop.xlane.xlu0 %3341
        %v3343 = vmul.f32 %v3339, %v1205
        %v3344 = vmul.f32 %v3342, %v1205
        %v3345 = vadd.f32 %v3343, 1e-05
        %v3346 = vadd.f32 %v3344, 1e-05
        %v3347 = vrsqrt.pop %v3345
        %v3348 = vrsqrt.pop %v3346
        %v3349 = vmul.f32 %v3333, %v3347
        %v3350 = vmul.f32 %v3334, %v3348
        %v3352 = vlaneseq
        %v3353 = vshrl.u32 %v3352, 7
        %v3354 = vsub.s32 0, %v3353
        %v3355 = vrot.slane %v3322, %v3354
        %v3357 = vmul.f32 %v3349, %v3355
        %v3358 = vmul.f32 %v3350, %v3355
        %v3360 = vlaneseq
        %v3361 = vshrl.u32 %v3360, 7
        %v3362 = vsub.s32 0, %v3361
        %v3363 = vrot.slane %v3324, %v3362
        %v3365 = vadd.f32 %v3357, %v3363
        %v3366 = vadd.f32 %v3358, %v3363
        %v3367 = vpack.c.bf16 %v3366, %v3365
        %s3368 = scalar_lea.vmem %s39, 16
        %v3369 = vld [vmem:[%s3368] sm:$0xf]
        %v3370 = vld [vmem:[%s3368 + $0x4] sm:$0xf]
        %v3371 = vld [vmem:[%s3368 + $0x8] sm:$0xf]
        %v3372 = vld [vmem:[%s3368 + $0xc] sm:$0xf]
        %s3373 = scalar_lea.vmem %s41, 1
        %v3374 = vld [vmem:[%s3373] sm:$0x1]
        %v3376 = vlaneseq
        %v3377 = vshrl.u32 %v3376, 7
        %v3378 = vsub.s32 0, %v3377
        %v3379 = vrot.slane %v3374, %v3378
        %v3385 = vunpack.c.l.b16 %v3369
        %v3386 = vunpack.c.l.b16 %v3370
        %v3387 = vunpack.c.l.b16 %v3371
        %v3388 = vunpack.c.l.b16 %v3372
        %v3389 = vpack.c.b16 %v3386, %v3385
        %v3390 = vpack.c.b16 %v3388, %v3387
        %v3394 = vsel %vm1179, %v3367, 0
        %3396 = vmatprep.subr.bf16.mxu0 0
        %3397 = vmatpush1.bf16.msra.mxu0 %v3389
        %3398 = vmatprep.subr.bf16.mxu0 0
        %3399 = vmatpush1.bf16.msra.mxu0 %v3390
        %3400 = vmatprep.subr.bf16.mxu0 0
        %3401 = vmatpush1.bf16.msra.mxu0 0
        %3402 = vmatprep.subr.bf16.mxu0 0
        %3403 = vmatpush1.bf16.msra.mxu0 0
        %3404 = vmatprep.subr.bf16.mxu0 0
        %3405 = vmatpush1.bf16.msra.mxu0 0
        %3406 = vmatprep.subr.bf16.mxu0 0
        %3407 = vmatpush1.bf16.msra.mxu0 0
        %3408 = vmatprep.subr.bf16.mxu0 0
        %3409 = vmatpush1.bf16.msra.mxu0 0
        %3410 = vmatprep.subr.bf16.mxu0 0
        %3411 = vmatpush1.bf16.msra.mxu0 0
        %3412 = vmatprep.subr.bf16.mxu0 0
        %3413 = vmatpush1.bf16.msra.mxu0 0
        %3414 = vmatprep.subr.bf16.mxu0 0
        %3415 = vmatpush1.bf16.msra.mxu0 0
        %3416 = vmatprep.subr.bf16.mxu0 0
        %3417 = vmatpush1.bf16.msra.mxu0 0
        %3418 = vmatprep.subr.bf16.mxu0 0
        %3419 = vmatpush1.bf16.msra.mxu0 0
        %3420 = vmatprep.subr.bf16.mxu0 0
        %3421 = vmatpush1.bf16.msra.mxu0 0
        %3422 = vmatprep.subr.bf16.mxu0 0
        %3423 = vmatpush1.bf16.msra.mxu0 0
        %3424 = vmatprep.subr.bf16.mxu0 0
        %3425 = vmatpush1.bf16.msra.mxu0 0
        %3426 = vmatprep.subr.bf16.mxu0 0
        %3427 = vmatpush1.bf16.msra.mxu0 0
        %3428 = vmatprep.mubr.bf16.mxu0 0
        %3429 = vmatmul.mubr.bf16.gmra.mrb[0].mxu0 %v3394
        %v3430 = vpop.f32.mrb[0].mxu0
        %v3431 = vadd.f32 %v3379, %v3430
        %v3432 = vpop.f32.mrb[0].mxu0
        %v3433 = vpop.f32.mrb[0].mxu0
        %v3434 = vadd.f32 %v3379, %v3433
        %v3435 = vpop.f32.mrb[0].mxu0
        %3436 = vdwg.mxu0
        %s3437 = scalar_lea.vmem %s43, 16
        %v3438 = vld [vmem:[%s3437] sm:$0xf]
        %v3439 = vld [vmem:[%s3437 + $0x4] sm:$0xf]
        %v3440 = vld [vmem:[%s3437 + $0x8] sm:$0xf]
        %v3441 = vld [vmem:[%s3437 + $0xc] sm:$0xf]
        %s3442 = scalar_lea.vmem %s45, 1
        %v3443 = vld [vmem:[%s3442] sm:$0x1]
        %v3445 = vlaneseq
        %v3446 = vshrl.u32 %v3445, 7
        %v3447 = vsub.s32 0, %v3446
        %v3448 = vrot.slane %v3443, %v3447
        %v3450 = vadd.f32 %v3319, %v3448
        %v3451 = vadd.f32 %v3320, %v3448
        %v3452 = vpack.c.bf16 %v3434, %v3431
        %3454 = vrot.lane.b32.xlu0 %v3452, 96
        %v3455 = vpop.permute.xlu0 %3454
        %v3457 = vsel %vm2410, %v3452, 0
        %v3460 = vsel %vm2410, %v3455, 0
        %3462 = vmatprep.subr.bf16.mxu0 0
        %3463 = vmatpush1.bf16.xpose.msra.mxu0 %v3460
        %3464 = vmatprep.subr.bf16.mxu0 0
        %3465 = vmatpush1.bf16.xpose.msra.mxu0 0
        %3466 = vmatprep.subr.bf16.mxu0 0
        %3467 = vmatpush1.bf16.xpose.msra.mxu0 0
        %3468 = vmatprep.subr.bf16.mxu0 0
        %3469 = vmatpush1.bf16.xpose.msra.mxu0 0
        %3470 = vmatprep.subr.bf16.mxu0 0
        %3471 = vmatpush1.bf16.xpose.msra.mxu0 0
        %3472 = vmatprep.subr.bf16.mxu0 0
        %3473 = vmatpush1.bf16.xpose.msra.mxu0 0
        %3474 = vmatprep.subr.bf16.mxu0 0
        %3475 = vmatpush1.bf16.xpose.msra.mxu0 0
        %3476 = vmatprep.subr.bf16.mxu0 0
        %3477 = vmatpush1.bf16.xpose.msra.mxu0 0
        %3478 = vmatprep.subr.bf16.mxu0 0
        %3479 = vmatpush1.bf16.xpose.msra.mxu0 0
        %3480 = vmatprep.subr.bf16.mxu0 0
        %3481 = vmatpush1.bf16.xpose.msra.mxu0 0
        %3482 = vmatprep.subr.bf16.mxu0 0
        %3483 = vmatpush1.bf16.xpose.msra.mxu0 0
        %3484 = vmatprep.subr.bf16.mxu0 0
        %3485 = vmatpush1.bf16.xpose.msra.mxu0 0
        %3486 = vmatprep.subr.bf16.mxu0 0
        %3487 = vmatpush1.bf16.xpose.msra.mxu0 0
        %3488 = vmatprep.subr.bf16.mxu0 0
        %3489 = vmatpush1.bf16.xpose.msra.mxu0 0
        %3490 = vmatprep.subr.bf16.mxu0 0
        %3491 = vmatpush1.bf16.xpose.msra.mxu0 0
        %3492 = vmatprep.subr.bf16.mxu0 0
        %3493 = vmatpush1.bf16.xpose.msra.mxu0 0
        %3494 = vmatprep.mubr.bf16.mxu0 0
        %3495 = vmatmul.mubr.bf16.gmra.mrb[0].mxu0 %v3457
        %v3496 = vpop.f32.mrb[0].mxu0
        %v3497 = vadd.f32 0.0, %v3496
        %v3498 = vpop.f32.mrb[0].mxu0
        %v3499 = vpop.f32.mrb[0].mxu0
        %v3500 = vadd.f32 0.0, %v3499
        %v3501 = vpop.f32.mrb[0].mxu0
        %3502 = vdwg.mxu0
        %v3503 = vsel %vm2458, %v3497, -inf
        %3504 = vmax.xlane.f32.xlu0 %v3503
        %v3505 = vpop.xlane.xlu0 %3504
        %v3506 = vsel %vm2462, %v3500, -inf
        %3507 = vmax.xlane.f32.xlu0 %v3506
        %v3508 = vpop.xlane.xlu0 %3507
        %v3509 = vsub.f32 %v3497, %v3505
        %v3510 = vsub.f32 %v3500, %v3508
        %v3511 = vmul.f32 %v3509, 1.442695
        %v3512 = vpow.pop %v3511
        %v3513 = vmul.f32 %v3510, 1.442695
        %v3514 = vpow.pop %v3513
        %v3515 = vsel %vm2458, %v3512, 0.0
        %3516 = vadd.xlane.f32.xlu0 %v3515
        %v3517 = vpop.xlane.xlu0 %3516
        %v3518 = vsel %vm2462, %v3514, 0.0
        %3519 = vadd.xlane.f32.xlu0 %v3518
        %v3520 = vpop.xlane.xlu0 %3519
        %v3521 = vrcp.pop %v3517
        %v3522 = vrcp.pop %v3520
        %v3523 = vmul.f32 %v3512, %v3521
        %v3524 = vmul.f32 %v3514, %v3522
        %v3525 = vpack.c.bf16 %v3524, %v3523
        %3526 = vrot.lane.b32.xlu0 %v3452, 64
        %v3527 = vpop.permute.xlu0 %3526
        %v3529 = vsel %vm2458, %v3525, 0
        %v3532 = vand.u32 %v3527, %v2490
        %3534 = vmatprep.subr.bf16.mxu0 0
        %3535 = vmatpush1.bf16.msra.mxu0 %v3532
        %3536 = vmatprep.subr.bf16.mxu0 0
        %3537 = vmatpush1.bf16.msra.mxu0 0
        %3538 = vmatprep.subr.bf16.mxu0 0
        %3539 = vmatpush1.bf16.msra.mxu0 0
        %3540 = vmatprep.subr.bf16.mxu0 0
        %3541 = vmatpush1.bf16.msra.mxu0 0
        %3542 = vmatprep.subr.bf16.mxu0 0
        %3543 = vmatpush1.bf16.msra.mxu0 0
        %3544 = vmatprep.subr.bf16.mxu0 0
        %3545 = vmatpush1.bf16.msra.mxu0 0
        %3546 = vmatprep.subr.bf16.mxu0 0
        %3547 = vmatpush1.bf16.msra.mxu0 0
        %3548 = vmatprep.subr.bf16.mxu0 0
        %3549 = vmatpush1.bf16.msra.mxu0 0
        %3550 = vmatprep.subr.bf16.mxu0 0
        %3551 = vmatpush1.bf16.msra.mxu0 0
        %3552 = vmatprep.subr.bf16.mxu0 0
        %3553 = vmatpush1.bf16.msra.mxu0 0
        %3554 = vmatprep.subr.bf16.mxu0 0
        %3555 = vmatpush1.bf16.msra.mxu0 0
        %3556 = vmatprep.subr.bf16.mxu0 0
        %3557 = vmatpush1.bf16.msra.mxu0 0
        %3558 = vmatprep.subr.bf16.mxu0 0
        %3559 = vmatpush1.bf16.msra.mxu0 0
        %3560 = vmatprep.subr.bf16.mxu0 0
        %3561 = vmatpush1.bf16.msra.mxu0 0
        %3562 = vmatprep.subr.bf16.mxu0 0
        %3563 = vmatpush1.bf16.msra.mxu0 0
        %3564 = vmatprep.subr.bf16.mxu0 0
        %3565 = vmatpush1.bf16.msra.mxu0 0
        %3566 = vmatprep.mubr.bf16.mxu0 0
        %3567 = vmatmul.mubr.bf16.gmra.mrb[0].mxu0 %v3529
        %v3568 = vpop.f32.mrb[0].mxu0
        %v3569 = vadd.f32 0.0, %v3568
        %v3570 = vpop.f32.mrb[0].mxu0
        %v3571 = vpop.f32.mrb[0].mxu0
        %v3572 = vadd.f32 0.0, %v3571
        %v3573 = vpop.f32.mrb[0].mxu0
        %3574 = vdwg.mxu0
        %v3575 = vpack.c.bf16 %v3572, %v3569
        %v3577 = vsel %vm2410, %v3575, 0
        %v3580 = vsel %vm2539, %v3438, 0
        %3582 = vmatprep.subr.bf16.mxu0 0
        %3583 = vmatpush1.bf16.msra.mxu0 %v3580
        %3584 = vmatprep.subr.bf16.mxu0 0
        %3585 = vmatpush1.bf16.msra.mxu0 0
        %3586 = vmatprep.subr.bf16.mxu0 0
        %3587 = vmatpush1.bf16.msra.mxu0 0
        %3588 = vmatprep.subr.bf16.mxu0 0
        %3589 = vmatpush1.bf16.msra.mxu0 0
        %3590 = vmatprep.subr.bf16.mxu0 0
        %3591 = vmatpush1.bf16.msra.mxu0 0
        %3592 = vmatprep.subr.bf16.mxu0 0
        %3593 = vmatpush1.bf16.msra.mxu0 0
        %3594 = vmatprep.subr.bf16.mxu0 0
        %3595 = vmatpush1.bf16.msra.mxu0 0
        %3596 = vmatprep.subr.bf16.mxu0 0
        %3597 = vmatpush1.bf16.msra.mxu0 0
        %3598 = vmatprep.subr.bf16.mxu0 0
        %3599 = vmatpush1.bf16.msra.mxu0 0
        %3600 = vmatprep.subr.bf16.mxu0 0
        %3601 = vmatpush1.bf16.msra.mxu0 0
        %3602 = vmatprep.subr.bf16.mxu0 0
        %3603 = vmatpush1.bf16.msra.mxu0 0
        %3604 = vmatprep.subr.bf16.mxu0 0
        %3605 = vmatpush1.bf16.msra.mxu0 0
        %3606 = vmatprep.subr.bf16.mxu0 0
        %3607 = vmatpush1.bf16.msra.mxu0 0
        %3608 = vmatprep.subr.bf16.mxu0 0
        %3609 = vmatpush1.bf16.msra.mxu0 0
        %3610 = vmatprep.subr.bf16.mxu0 0
        %3611 = vmatpush1.bf16.msra.mxu0 0
        %3612 = vmatprep.subr.bf16.mxu0 0
        %3613 = vmatpush1.bf16.msra.mxu0 0
        %3614 = vmatprep.mubr.bf16.mxu0 0
        %3615 = vmatmul.mubr.bf16.gmra.mrb[0].mxu0 %v3577
        %v3616 = vpop.f32.mrb[0].mxu0
        %v3617 = vadd.f32 0.0, %v3616
        %v3618 = vpop.f32.mrb[0].mxu0
        %v3619 = vpop.f32.mrb[0].mxu0
        %v3620 = vadd.f32 0.0, %v3619
        %v3621 = vpop.f32.mrb[0].mxu0
        %3622 = vdwg.mxu0
        %v3623 = vadd.f32 %v3450, %v3617
        %v3624 = vadd.f32 %v3451, %v3620
        %3625 = vrot.lane.b32.xlu0 %v3452, 120
        %v3626 = vpop.permute.xlu0 %3625
        %3627 = vrot.lane.b32.xlu0 %v3452, 88
        %v3628 = vpop.permute.xlu0 %3627
        %v3630 = vsel %vm2410, %v3626, 0
        %v3633 = vsel %vm2410, %v3628, 0
        %3635 = vmatprep.subr.bf16.mxu0 0
        %3636 = vmatpush1.bf16.xpose.msra.mxu0 %v3633
        %3637 = vmatprep.subr.bf16.mxu0 0
        %3638 = vmatpush1.bf16.xpose.msra.mxu0 0
        %3639 = vmatprep.subr.bf16.mxu0 0
        %3640 = vmatpush1.bf16.xpose.msra.mxu0 0
        %3641 = vmatprep.subr.bf16.mxu0 0
        %3642 = vmatpush1.bf16.xpose.msra.mxu0 0
        %3643 = vmatprep.subr.bf16.mxu0 0
        %3644 = vmatpush1.bf16.xpose.msra.mxu0 0
        %3645 = vmatprep.subr.bf16.mxu0 0
        %3646 = vmatpush1.bf16.xpose.msra.mxu0 0
        %3647 = vmatprep.subr.bf16.mxu0 0
        %3648 = vmatpush1.bf16.xpose.msra.mxu0 0
        %3649 = vmatprep.subr.bf16.mxu0 0
        %3650 = vmatpush1.bf16.xpose.msra.mxu0 0
        %3651 = vmatprep.subr.bf16.mxu0 0
        %3652 = vmatpush1.bf16.xpose.msra.mxu0 0
        %3653 = vmatprep.subr.bf16.mxu0 0
        %3654 = vmatpush1.bf16.xpose.msra.mxu0 0
        %3655 = vmatprep.subr.bf16.mxu0 0
        %3656 = vmatpush1.bf16.xpose.msra.mxu0 0
        %3657 = vmatprep.subr.bf16.mxu0 0
        %3658 = vmatpush1.bf16.xpose.msra.mxu0 0
        %3659 = vmatprep.subr.bf16.mxu0 0
        %3660 = vmatpush1.bf16.xpose.msra.mxu0 0
        %3661 = vmatprep.subr.bf16.mxu0 0
        %3662 = vmatpush1.bf16.xpose.msra.mxu0 0
        %3663 = vmatprep.subr.bf16.mxu0 0
        %3664 = vmatpush1.bf16.xpose.msra.mxu0 0
        %3665 = vmatprep.subr.bf16.mxu0 0
        %3666 = vmatpush1.bf16.xpose.msra.mxu0 0
        %3667 = vmatprep.mubr.bf16.mxu0 0
        %3668 = vmatmul.mubr.bf16.gmra.mrb[0].mxu0 %v3630
        %v3669 = vpop.f32.mrb[0].mxu0
        %v3670 = vadd.f32 0.0, %v3669
        %v3671 = vpop.f32.mrb[0].mxu0
        %v3672 = vpop.f32.mrb[0].mxu0
        %v3673 = vadd.f32 0.0, %v3672
        %v3674 = vpop.f32.mrb[0].mxu0
        %3675 = vdwg.mxu0
        %v3676 = vsel %vm2458, %v3670, -inf
        %3677 = vmax.xlane.f32.xlu0 %v3676
        %v3678 = vpop.xlane.xlu0 %3677
        %v3679 = vsel %vm2462, %v3673, -inf
        %3680 = vmax.xlane.f32.xlu0 %v3679
        %v3681 = vpop.xlane.xlu0 %3680
        %v3682 = vsub.f32 %v3670, %v3678
        %v3683 = vsub.f32 %v3673, %v3681
        %v3684 = vmul.f32 %v3682, 1.442695
        %v3685 = vpow.pop %v3684
        %v3686 = vmul.f32 %v3683, 1.442695
        %v3687 = vpow.pop %v3686
        %v3688 = vsel %vm2458, %v3685, 0.0
        %3689 = vadd.xlane.f32.xlu0 %v3688
        %v3690 = vpop.xlane.xlu0 %3689
        %v3691 = vsel %vm2462, %v3687, 0.0
        %3692 = vadd.xlane.f32.xlu0 %v3691
        %v3693 = vpop.xlane.xlu0 %3692
        %v3694 = vrcp.pop %v3690
        %v3695 = vrcp.pop %v3693
        %v3696 = vmul.f32 %v3685, %v3694
        %v3697 = vmul.f32 %v3687, %v3695
        %v3698 = vpack.c.bf16 %v3697, %v3696
        %3699 = vrot.lane.b32.xlu0 %v3452, 56
        %v3700 = vpop.permute.xlu0 %3699
        %v3702 = vsel %vm2458, %v3698, 0
        %v3705 = vand.u32 %v3700, %v2490
        %3707 = vmatprep.subr.bf16.mxu0 0
        %3708 = vmatpush1.bf16.msra.mxu0 %v3705
        %3709 = vmatprep.subr.bf16.mxu0 0
        %3710 = vmatpush1.bf16.msra.mxu0 0
        %3711 = vmatprep.subr.bf16.mxu0 0
        %3712 = vmatpush1.bf16.msra.mxu0 0
        %3713 = vmatprep.subr.bf16.mxu0 0
        %3714 = vmatpush1.bf16.msra.mxu0 0
        %3715 = vmatprep.subr.bf16.mxu0 0
        %3716 = vmatpush1.bf16.msra.mxu0 0
        %3717 = vmatprep.subr.bf16.mxu0 0
        %3718 = vmatpush1.bf16.msra.mxu0 0
        %3719 = vmatprep.subr.bf16.mxu0 0
        %3720 = vmatpush1.bf16.msra.mxu0 0
        %3721 = vmatprep.subr.bf16.mxu0 0
        %3722 = vmatpush1.bf16.msra.mxu0 0
        %3723 = vmatprep.subr.bf16.mxu0 0
        %3724 = vmatpush1.bf16.msra.mxu0 0
        %3725 = vmatprep.subr.bf16.mxu0 0
        %3726 = vmatpush1.bf16.msra.mxu0 0
        %3727 = vmatprep.subr.bf16.mxu0 0
        %3728 = vmatpush1.bf16.msra.mxu0 0
        %3729 = vmatprep.subr.bf16.mxu0 0
        %3730 = vmatpush1.bf16.msra.mxu0 0
        %3731 = vmatprep.subr.bf16.mxu0 0
        %3732 = vmatpush1.bf16.msra.mxu0 0
        %3733 = vmatprep.subr.bf16.mxu0 0
        %3734 = vmatpush1.bf16.msra.mxu0 0
        %3735 = vmatprep.subr.bf16.mxu0 0
        %3736 = vmatpush1.bf16.msra.mxu0 0
        %3737 = vmatprep.subr.bf16.mxu0 0
        %3738 = vmatpush1.bf16.msra.mxu0 0
        %3739 = vmatprep.mubr.bf16.mxu0 0
        %3740 = vmatmul.mubr.bf16.gmra.mrb[0].mxu0 %v3702
        %v3741 = vpop.f32.mrb[0].mxu0
        %v3742 = vadd.f32 0.0, %v3741
        %v3743 = vpop.f32.mrb[0].mxu0
        %v3744 = vpop.f32.mrb[0].mxu0
        %v3745 = vadd.f32 0.0, %v3744
        %v3746 = vpop.f32.mrb[0].mxu0
        %3747 = vdwg.mxu0
        %v3748 = vpack.c.bf16 %v3745, %v3742
        %v3750 = vsel %vm2410, %v3748, 0
        %v3753 = vsel %vm2539, %v3439, 0
        %3755 = vmatprep.subr.bf16.mxu0 0
        %3756 = vmatpush1.bf16.msra.mxu0 %v3753
        %3757 = vmatprep.subr.bf16.mxu0 0
        %3758 = vmatpush1.bf16.msra.mxu0 0
        %3759 = vmatprep.subr.bf16.mxu0 0
        %3760 = vmatpush1.bf16.msra.mxu0 0
        %3761 = vmatprep.subr.bf16.mxu0 0
        %3762 = vmatpush1.bf16.msra.mxu0 0
        %3763 = vmatprep.subr.bf16.mxu0 0
        %3764 = vmatpush1.bf16.msra.mxu0 0
        %3765 = vmatprep.subr.bf16.mxu0 0
        %3766 = vmatpush1.bf16.msra.mxu0 0
        %3767 = vmatprep.subr.bf16.mxu0 0
        %3768 = vmatpush1.bf16.msra.mxu0 0
        %3769 = vmatprep.subr.bf16.mxu0 0
        %3770 = vmatpush1.bf16.msra.mxu0 0
        %3771 = vmatprep.subr.bf16.mxu0 0
        %3772 = vmatpush1.bf16.msra.mxu0 0
        %3773 = vmatprep.subr.bf16.mxu0 0
        %3774 = vmatpush1.bf16.msra.mxu0 0
        %3775 = vmatprep.subr.bf16.mxu0 0
        %3776 = vmatpush1.bf16.msra.mxu0 0
        %3777 = vmatprep.subr.bf16.mxu0 0
        %3778 = vmatpush1.bf16.msra.mxu0 0
        %3779 = vmatprep.subr.bf16.mxu0 0
        %3780 = vmatpush1.bf16.msra.mxu0 0
        %3781 = vmatprep.subr.bf16.mxu0 0
        %3782 = vmatpush1.bf16.msra.mxu0 0
        %3783 = vmatprep.subr.bf16.mxu0 0
        %3784 = vmatpush1.bf16.msra.mxu0 0
        %3785 = vmatprep.subr.bf16.mxu0 0
        %3786 = vmatpush1.bf16.msra.mxu0 0
        %3787 = vmatprep.mubr.bf16.mxu0 0
        %3788 = vmatmul.mubr.bf16.gmra.mrb[0].mxu0 %v3750
        %v3789 = vpop.f32.mrb[0].mxu0
        %v3790 = vadd.f32 0.0, %v3789
        %v3791 = vpop.f32.mrb[0].mxu0
        %v3792 = vpop.f32.mrb[0].mxu0
        %v3793 = vadd.f32 0.0, %v3792
        %v3794 = vpop.f32.mrb[0].mxu0
        %3795 = vdwg.mxu0
        %v3796 = vadd.f32 %v3623, %v3790
        %v3797 = vadd.f32 %v3624, %v3793
        %3798 = vrot.lane.b32.xlu0 %v3452, 112
        %v3799 = vpop.permute.xlu0 %3798
        %3800 = vrot.lane.b32.xlu0 %v3452, 80
        %v3801 = vpop.permute.xlu0 %3800
        %v3803 = vsel %vm2410, %v3799, 0
        %v3806 = vsel %vm2410, %v3801, 0
        %3808 = vmatprep.subr.bf16.mxu0 0
        %3809 = vmatpush1.bf16.xpose.msra.mxu0 %v3806
        %3810 = vmatprep.subr.bf16.mxu0 0
        %3811 = vmatpush1.bf16.xpose.msra.mxu0 0
        %3812 = vmatprep.subr.bf16.mxu0 0
        %3813 = vmatpush1.bf16.xpose.msra.mxu0 0
        %3814 = vmatprep.subr.bf16.mxu0 0
        %3815 = vmatpush1.bf16.xpose.msra.mxu0 0
        %3816 = vmatprep.subr.bf16.mxu0 0
        %3817 = vmatpush1.bf16.xpose.msra.mxu0 0
        %3818 = vmatprep.subr.bf16.mxu0 0
        %3819 = vmatpush1.bf16.xpose.msra.mxu0 0
        %3820 = vmatprep.subr.bf16.mxu0 0
        %3821 = vmatpush1.bf16.xpose.msra.mxu0 0
        %3822 = vmatprep.subr.bf16.mxu0 0
        %3823 = vmatpush1.bf16.xpose.msra.mxu0 0
        %3824 = vmatprep.subr.bf16.mxu0 0
        %3825 = vmatpush1.bf16.xpose.msra.mxu0 0
        %3826 = vmatprep.subr.bf16.mxu0 0
        %3827 = vmatpush1.bf16.xpose.msra.mxu0 0
        %3828 = vmatprep.subr.bf16.mxu0 0
        %3829 = vmatpush1.bf16.xpose.msra.mxu0 0
        %3830 = vmatprep.subr.bf16.mxu0 0
        %3831 = vmatpush1.bf16.xpose.msra.mxu0 0
        %3832 = vmatprep.subr.bf16.mxu0 0
        %3833 = vmatpush1.bf16.xpose.msra.mxu0 0
        %3834 = vmatprep.subr.bf16.mxu0 0
        %3835 = vmatpush1.bf16.xpose.msra.mxu0 0
        %3836 = vmatprep.subr.bf16.mxu0 0
        %3837 = vmatpush1.bf16.xpose.msra.mxu0 0
        %3838 = vmatprep.subr.bf16.mxu0 0
        %3839 = vmatpush1.bf16.xpose.msra.mxu0 0
        %3840 = vmatprep.mubr.bf16.mxu0 0
        %3841 = vmatmul.mubr.bf16.gmra.mrb[0].mxu0 %v3803
        %v3842 = vpop.f32.mrb[0].mxu0
        %v3843 = vadd.f32 0.0, %v3842
        %v3844 = vpop.f32.mrb[0].mxu0
        %v3845 = vpop.f32.mrb[0].mxu0
        %v3846 = vadd.f32 0.0, %v3845
        %v3847 = vpop.f32.mrb[0].mxu0
        %3848 = vdwg.mxu0
        %v3849 = vsel %vm2458, %v3843, -inf
        %3850 = vmax.xlane.f32.xlu0 %v3849
        %v3851 = vpop.xlane.xlu0 %3850
        %v3852 = vsel %vm2462, %v3846, -inf
        %3853 = vmax.xlane.f32.xlu0 %v3852
        %v3854 = vpop.xlane.xlu0 %3853
        %v3855 = vsub.f32 %v3843, %v3851
        %v3856 = vsub.f32 %v3846, %v3854
        %v3857 = vmul.f32 %v3855, 1.442695
        %v3858 = vpow.pop %v3857
        %v3859 = vmul.f32 %v3856, 1.442695
        %v3860 = vpow.pop %v3859
        %v3861 = vsel %vm2458, %v3858, 0.0
        %3862 = vadd.xlane.f32.xlu0 %v3861
        %v3863 = vpop.xlane.xlu0 %3862
        %v3864 = vsel %vm2462, %v3860, 0.0
        %3865 = vadd.xlane.f32.xlu0 %v3864
        %v3866 = vpop.xlane.xlu0 %3865
        %v3867 = vrcp.pop %v3863
        %v3868 = vrcp.pop %v3866
        %v3869 = vmul.f32 %v3858, %v3867
        %v3870 = vmul.f32 %v3860, %v3868
        %v3871 = vpack.c.bf16 %v3870, %v3869
        %3872 = vrot.lane.b32.xlu0 %v3452, 48
        %v3873 = vpop.permute.xlu0 %3872
        %v3875 = vsel %vm2458, %v3871, 0
        %v3878 = vand.u32 %v3873, %v2490
        %3880 = vmatprep.subr.bf16.mxu0 0
        %3881 = vmatpush1.bf16.msra.mxu0 %v3878
        %3882 = vmatprep.subr.bf16.mxu0 0
        %3883 = vmatpush1.bf16.msra.mxu0 0
        %3884 = vmatprep.subr.bf16.mxu0 0
        %3885 = vmatpush1.bf16.msra.mxu0 0
        %3886 = vmatprep.subr.bf16.mxu0 0
        %3887 = vmatpush1.bf16.msra.mxu0 0
        %3888 = vmatprep.subr.bf16.mxu0 0
        %3889 = vmatpush1.bf16.msra.mxu0 0
        %3890 = vmatprep.subr.bf16.mxu0 0
        %3891 = vmatpush1.bf16.msra.mxu0 0
        %3892 = vmatprep.subr.bf16.mxu0 0
        %3893 = vmatpush1.bf16.msra.mxu0 0
        %3894 = vmatprep.subr.bf16.mxu0 0
        %3895 = vmatpush1.bf16.msra.mxu0 0
        %3896 = vmatprep.subr.bf16.mxu0 0
        %3897 = vmatpush1.bf16.msra.mxu0 0
        %3898 = vmatprep.subr.bf16.mxu0 0
        %3899 = vmatpush1.bf16.msra.mxu0 0
        %3900 = vmatprep.subr.bf16.mxu0 0
        %3901 = vmatpush1.bf16.msra.mxu0 0
        %3902 = vmatprep.subr.bf16.mxu0 0
        %3903 = vmatpush1.bf16.msra.mxu0 0
        %3904 = vmatprep.subr.bf16.mxu0 0
        %3905 = vmatpush1.bf16.msra.mxu0 0
        %3906 = vmatprep.subr.bf16.mxu0 0
        %3907 = vmatpush1.bf16.msra.mxu0 0
        %3908 = vmatprep.subr.bf16.mxu0 0
        %3909 = vmatpush1.bf16.msra.mxu0 0
        %3910 = vmatprep.subr.bf16.mxu0 0
        %3911 = vmatpush1.bf16.msra.mxu0 0
        %3912 = vmatprep.mubr.bf16.mxu0 0
        %3913 = vmatmul.mubr.bf16.gmra.mrb[0].mxu0 %v3875
        %v3914 = vpop.f32.mrb[0].mxu0
        %v3915 = vadd.f32 0.0, %v3914
        %v3916 = vpop.f32.mrb[0].mxu0
        %v3917 = vpop.f32.mrb[0].mxu0
        %v3918 = vadd.f32 0.0, %v3917
        %v3919 = vpop.f32.mrb[0].mxu0
        %3920 = vdwg.mxu0
        %v3921 = vpack.c.bf16 %v3918, %v3915
        %v3923 = vsel %vm2410, %v3921, 0
        %v3926 = vsel %vm2539, %v3440, 0
        %3928 = vmatprep.subr.bf16.mxu0 0
        %3929 = vmatpush1.bf16.msra.mxu0 %v3926
        %3930 = vmatprep.subr.bf16.mxu0 0
        %3931 = vmatpush1.bf16.msra.mxu0 0
        %3932 = vmatprep.subr.bf16.mxu0 0
        %3933 = vmatpush1.bf16.msra.mxu0 0
        %3934 = vmatprep.subr.bf16.mxu0 0
        %3935 = vmatpush1.bf16.msra.mxu0 0
        %3936 = vmatprep.subr.bf16.mxu0 0
        %3937 = vmatpush1.bf16.msra.mxu0 0
        %3938 = vmatprep.subr.bf16.mxu0 0
        %3939 = vmatpush1.bf16.msra.mxu0 0
        %3940 = vmatprep.subr.bf16.mxu0 0
        %3941 = vmatpush1.bf16.msra.mxu0 0
        %3942 = vmatprep.subr.bf16.mxu0 0
        %3943 = vmatpush1.bf16.msra.mxu0 0
        %3944 = vmatprep.subr.bf16.mxu0 0
        %3945 = vmatpush1.bf16.msra.mxu0 0
        %3946 = vmatprep.subr.bf16.mxu0 0
        %3947 = vmatpush1.bf16.msra.mxu0 0
        %3948 = vmatprep.subr.bf16.mxu0 0
        %3949 = vmatpush1.bf16.msra.mxu0 0
        %3950 = vmatprep.subr.bf16.mxu0 0
        %3951 = vmatpush1.bf16.msra.mxu0 0
        %3952 = vmatprep.subr.bf16.mxu0 0
        %3953 = vmatpush1.bf16.msra.mxu0 0
        %3954 = vmatprep.subr.bf16.mxu0 0
        %3955 = vmatpush1.bf16.msra.mxu0 0
        %3956 = vmatprep.subr.bf16.mxu0 0
        %3957 = vmatpush1.bf16.msra.mxu0 0
        %3958 = vmatprep.subr.bf16.mxu0 0
        %3959 = vmatpush1.bf16.msra.mxu0 0
        %3960 = vmatprep.mubr.bf16.mxu0 0
        %3961 = vmatmul.mubr.bf16.gmra.mrb[0].mxu0 %v3923
        %v3962 = vpop.f32.mrb[0].mxu0
        %v3963 = vadd.f32 0.0, %v3962
        %v3964 = vpop.f32.mrb[0].mxu0
        %v3965 = vpop.f32.mrb[0].mxu0
        %v3966 = vadd.f32 0.0, %v3965
        %v3967 = vpop.f32.mrb[0].mxu0
        %3968 = vdwg.mxu0
        %v3969 = vadd.f32 %v3796, %v3963
        %v3970 = vadd.f32 %v3797, %v3966
        %3971 = vrot.lane.b32.xlu0 %v3452, 104
        %v3972 = vpop.permute.xlu0 %3971
        %3973 = vrot.lane.b32.xlu0 %v3452, 72
        %v3974 = vpop.permute.xlu0 %3973
        %v3976 = vsel %vm2410, %v3972, 0
        %v3979 = vsel %vm2410, %v3974, 0
        %3981 = vmatprep.subr.bf16.mxu0 0
        %3982 = vmatpush1.bf16.xpose.msra.mxu0 %v3979
        %3983 = vmatprep.subr.bf16.mxu0 0
        %3984 = vmatpush1.bf16.xpose.msra.mxu0 0
        %3985 = vmatprep.subr.bf16.mxu0 0
        %3986 = vmatpush1.bf16.xpose.msra.mxu0 0
        %3987 = vmatprep.subr.bf16.mxu0 0
        %3988 = vmatpush1.bf16.xpose.msra.mxu0 0
        %3989 = vmatprep.subr.bf16.mxu0 0
        %3990 = vmatpush1.bf16.xpose.msra.mxu0 0
        %3991 = vmatprep.subr.bf16.mxu0 0
        %3992 = vmatpush1.bf16.xpose.msra.mxu0 0
        %3993 = vmatprep.subr.bf16.mxu0 0
        %3994 = vmatpush1.bf16.xpose.msra.mxu0 0
        %3995 = vmatprep.subr.bf16.mxu0 0
        %3996 = vmatpush1.bf16.xpose.msra.mxu0 0
        %3997 = vmatprep.subr.bf16.mxu0 0
        %3998 = vmatpush1.bf16.xpose.msra.mxu0 0
        %3999 = vmatprep.subr.bf16.mxu0 0
        %4000 = vmatpush1.bf16.xpose.msra.mxu0 0
        %4001 = vmatprep.subr.bf16.mxu0 0
        %4002 = vmatpush1.bf16.xpose.msra.mxu0 0
        %4003 = vmatprep.subr.bf16.mxu0 0
        %4004 = vmatpush1.bf16.xpose.msra.mxu0 0
        %4005 = vmatprep.subr.bf16.mxu0 0
        %4006 = vmatpush1.bf16.xpose.msra.mxu0 0
        %4007 = vmatprep.subr.bf16.mxu0 0
        %4008 = vmatpush1.bf16.xpose.msra.mxu0 0
        %4009 = vmatprep.subr.bf16.mxu0 0
        %4010 = vmatpush1.bf16.xpose.msra.mxu0 0
        %4011 = vmatprep.subr.bf16.mxu0 0
        %4012 = vmatpush1.bf16.xpose.msra.mxu0 0
        %4013 = vmatprep.mubr.bf16.mxu0 0
        %4014 = vmatmul.mubr.bf16.gmra.mrb[0].mxu0 %v3976
        %v4015 = vpop.f32.mrb[0].mxu0
        %v4016 = vadd.f32 0.0, %v4015
        %v4017 = vpop.f32.mrb[0].mxu0
        %v4018 = vpop.f32.mrb[0].mxu0
        %v4019 = vadd.f32 0.0, %v4018
        %v4020 = vpop.f32.mrb[0].mxu0
        %4021 = vdwg.mxu0
        %v4022 = vsel %vm2458, %v4016, -inf
        %4023 = vmax.xlane.f32.xlu0 %v4022
        %v4024 = vpop.xlane.xlu0 %4023
        %v4025 = vsel %vm2462, %v4019, -inf
        %4026 = vmax.xlane.f32.xlu0 %v4025
        %v4027 = vpop.xlane.xlu0 %4026
        %v4028 = vsub.f32 %v4016, %v4024
        %v4029 = vsub.f32 %v4019, %v4027
        %v4030 = vmul.f32 %v4028, 1.442695
        %v4031 = vpow.pop %v4030
        %v4032 = vmul.f32 %v4029, 1.442695
        %v4033 = vpow.pop %v4032
        %v4034 = vsel %vm2458, %v4031, 0.0
        %4035 = vadd.xlane.f32.xlu0 %v4034
        %v4036 = vpop.xlane.xlu0 %4035
        %v4037 = vsel %vm2462, %v4033, 0.0
        %4038 = vadd.xlane.f32.xlu0 %v4037
        %v4039 = vpop.xlane.xlu0 %4038
        %v4040 = vrcp.pop %v4036
        %v4041 = vrcp.pop %v4039
        %v4042 = vmul.f32 %v4031, %v4040
        %v4043 = vmul.f32 %v4033, %v4041
        %v4044 = vpack.c.bf16 %v4043, %v4042
        %4045 = vrot.lane.b32.xlu0 %v3452, 40
        %v4046 = vpop.permute.xlu0 %4045
        %v4048 = vsel %vm2458, %v4044, 0
        %v4051 = vand.u32 %v4046, %v2490
        %4053 = vmatprep.subr.bf16.mxu0 0
        %4054 = vmatpush1.bf16.msra.mxu0 %v4051
        %4055 = vmatprep.subr.bf16.mxu0 0
        %4056 = vmatpush1.bf16.msra.mxu0 0
        %4057 = vmatprep.subr.bf16.mxu0 0
        %4058 = vmatpush1.bf16.msra.mxu0 0
        %4059 = vmatprep.subr.bf16.mxu0 0
        %4060 = vmatpush1.bf16.msra.mxu0 0
        %4061 = vmatprep.subr.bf16.mxu0 0
        %4062 = vmatpush1.bf16.msra.mxu0 0
        %4063 = vmatprep.subr.bf16.mxu0 0
        %4064 = vmatpush1.bf16.msra.mxu0 0
        %4065 = vmatprep.subr.bf16.mxu0 0
        %4066 = vmatpush1.bf16.msra.mxu0 0
        %4067 = vmatprep.subr.bf16.mxu0 0
        %4068 = vmatpush1.bf16.msra.mxu0 0
        %4069 = vmatprep.subr.bf16.mxu0 0
        %4070 = vmatpush1.bf16.msra.mxu0 0
        %4071 = vmatprep.subr.bf16.mxu0 0
        %4072 = vmatpush1.bf16.msra.mxu0 0
        %4073 = vmatprep.subr.bf16.mxu0 0
        %4074 = vmatpush1.bf16.msra.mxu0 0
        %4075 = vmatprep.subr.bf16.mxu0 0
        %4076 = vmatpush1.bf16.msra.mxu0 0
        %4077 = vmatprep.subr.bf16.mxu0 0
        %4078 = vmatpush1.bf16.msra.mxu0 0
        %4079 = vmatprep.subr.bf16.mxu0 0
        %4080 = vmatpush1.bf16.msra.mxu0 0
        %4081 = vmatprep.subr.bf16.mxu0 0
        %4082 = vmatpush1.bf16.msra.mxu0 0
        %4083 = vmatprep.subr.bf16.mxu0 0
        %4084 = vmatpush1.bf16.msra.mxu0 0
        %4085 = vmatprep.mubr.bf16.mxu0 0
        %4086 = vmatmul.mubr.bf16.gmra.mrb[0].mxu0 %v4048
        %v4087 = vpop.f32.mrb[0].mxu0
        %v4088 = vadd.f32 0.0, %v4087
        %v4089 = vpop.f32.mrb[0].mxu0
        %v4090 = vpop.f32.mrb[0].mxu0
        %v4091 = vadd.f32 0.0, %v4090
        %v4092 = vpop.f32.mrb[0].mxu0
        %4093 = vdwg.mxu0
        %v4094 = vpack.c.bf16 %v4091, %v4088
        %v4096 = vsel %vm2410, %v4094, 0
        %v4099 = vsel %vm2539, %v3441, 0
        %4101 = vmatprep.subr.bf16.mxu0 0
        %4102 = vmatpush1.bf16.msra.mxu0 %v4099
        %4103 = vmatprep.subr.bf16.mxu0 0
        %4104 = vmatpush1.bf16.msra.mxu0 0
        %4105 = vmatprep.subr.bf16.mxu0 0
        %4106 = vmatpush1.bf16.msra.mxu0 0
        %4107 = vmatprep.subr.bf16.mxu0 0
        %4108 = vmatpush1.bf16.msra.mxu0 0
        %4109 = vmatprep.subr.bf16.mxu0 0
        %4110 = vmatpush1.bf16.msra.mxu0 0
        %4111 = vmatprep.subr.bf16.mxu0 0
        %4112 = vmatpush1.bf16.msra.mxu0 0
        %4113 = vmatprep.subr.bf16.mxu0 0
        %4114 = vmatpush1.bf16.msra.mxu0 0
        %4115 = vmatprep.subr.bf16.mxu0 0
        %4116 = vmatpush1.bf16.msra.mxu0 0
        %4117 = vmatprep.subr.bf16.mxu0 0
        %4118 = vmatpush1.bf16.msra.mxu0 0
        %4119 = vmatprep.subr.bf16.mxu0 0
        %4120 = vmatpush1.bf16.msra.mxu0 0
        %4121 = vmatprep.subr.bf16.mxu0 0
        %4122 = vmatpush1.bf16.msra.mxu0 0
        %4123 = vmatprep.subr.bf16.mxu0 0
        %4124 = vmatpush1.bf16.msra.mxu0 0
        %4125 = vmatprep.subr.bf16.mxu0 0
        %4126 = vmatpush1.bf16.msra.mxu0 0
        %4127 = vmatprep.subr.bf16.mxu0 0
        %4128 = vmatpush1.bf16.msra.mxu0 0
        %4129 = vmatprep.subr.bf16.mxu0 0
        %4130 = vmatpush1.bf16.msra.mxu0 0
        %4131 = vmatprep.subr.bf16.mxu0 0
        %4132 = vmatpush1.bf16.msra.mxu0 0
        %4133 = vmatprep.mubr.bf16.mxu0 0
        %4134 = vmatmul.mubr.bf16.gmra.mrb[0].mxu0 %v4096
        %v4135 = vpop.f32.mrb[0].mxu0
        %v4136 = vadd.f32 0.0, %v4135
        %v4137 = vpop.f32.mrb[0].mxu0
        %v4138 = vpop.f32.mrb[0].mxu0
        %v4139 = vadd.f32 0.0, %v4138
        %v4140 = vpop.f32.mrb[0].mxu0
        %4141 = vdwg.mxu0
        %v4142 = vadd.f32 %v3969, %v4136
        %v4143 = vadd.f32 %v3970, %v4139
        %s4144 = scalar_lea.vmem %s47, 1
        %v4145 = vld [vmem:[%s4144] sm:$0x1]
        %s4146 = scalar_lea.vmem %s49, 1
        %v4147 = vld [vmem:[%s4146] sm:$0x1]
        %v4148 = vsel %vm1179, %v4142, 0.0
        %4149 = vadd.xlane.f32.xlu0 %v4148
        %v4150 = vpop.xlane.xlu0 %4149
        %v4151 = vsel %vm1201, %v4143, 0.0
        %4152 = vadd.xlane.f32.xlu0 %v4151
        %v4153 = vpop.xlane.xlu0 %4152
        %v4154 = vmul.f32 %v4150, %v1205
        %v4155 = vmul.f32 %v4153, %v1205
        %v4156 = vsub.f32 %v4142, %v4154
        %v4157 = vsub.f32 %v4143, %v4155
        %v4158 = vmul.f32 %v4156, %v4156
        %v4159 = vmul.f32 %v4157, %v4157
        %v4160 = vsel %vm1179, %v4158, 0.0
        %4161 = vadd.xlane.f32.xlu0 %v4160
        %v4162 = vpop.xlane.xlu0 %4161
        %v4163 = vsel %vm1201, %v4159, 0.0
        %4164 = vadd.xlane.f32.xlu0 %v4163
        %v4165 = vpop.xlane.xlu0 %4164
        %v4166 = vmul.f32 %v4162, %v1205
        %v4167 = vmul.f32 %v4165, %v1205
        %v4168 = vadd.f32 %v4166, 1e-05
        %v4169 = vadd.f32 %v4167, 1e-05
        %v4170 = vrsqrt.pop %v4168
        %v4171 = vrsqrt.pop %v4169
        %v4172 = vmul.f32 %v4156, %v4170
        %v4173 = vmul.f32 %v4157, %v4171
        %v4175 = vlaneseq
        %v4176 = vshrl.u32 %v4175, 7
        %v4177 = vsub.s32 0, %v4176
        %v4178 = vrot.slane %v4145, %v4177
        %v4180 = vmul.f32 %v4172, %v4178
        %v4181 = vmul.f32 %v4173, %v4178
        %v4183 = vlaneseq
        %v4184 = vshrl.u32 %v4183, 7
        %v4185 = vsub.s32 0, %v4184
        %v4186 = vrot.slane %v4147, %v4185
        %v4188 = vadd.f32 %v4180, %v4186
        %v4189 = vadd.f32 %v4181, %v4186
        %v4190 = vpack.c.bf16 %v4189, %v4188
        %s4191 = scalar_lea.vmem %s51, 16
        %v4192 = vld [vmem:[%s4191] sm:$0xf]
        %v4193 = vld [vmem:[%s4191 + $0x4] sm:$0xf]
        %v4194 = vld [vmem:[%s4191 + $0x8] sm:$0xf]
        %v4195 = vld [vmem:[%s4191 + $0xc] sm:$0xf]
        %s4196 = scalar_lea.vmem %s53, 1
        %v4197 = vld [vmem:[%s4196] sm:$0x1]
        %v4199 = vlaneseq
        %v4200 = vshrl.u32 %v4199, 7
        %v4201 = vsub.s32 0, %v4200
        %v4202 = vrot.slane %v4197, %v4201
        %v4208 = vunpack.c.l.b16 %v4192
        %v4209 = vunpack.c.l.b16 %v4193
        %v4210 = vunpack.c.l.b16 %v4194
        %v4211 = vunpack.c.l.b16 %v4195
        %v4212 = vpack.c.b16 %v4209, %v4208
        %v4213 = vpack.c.b16 %v4211, %v4210
        %v4217 = vsel %vm1179, %v4190, 0
        %4219 = vmatprep.subr.bf16.mxu0 0
        %4220 = vmatpush1.bf16.msra.mxu0 %v4212
        %4221 = vmatprep.subr.bf16.mxu0 0
        %4222 = vmatpush1.bf16.msra.mxu0 %v4213
        %4223 = vmatprep.subr.bf16.mxu0 0
        %4224 = vmatpush1.bf16.msra.mxu0 0
        %4225 = vmatprep.subr.bf16.mxu0 0
        %4226 = vmatpush1.bf16.msra.mxu0 0
        %4227 = vmatprep.subr.bf16.mxu0 0
        %4228 = vmatpush1.bf16.msra.mxu0 0
        %4229 = vmatprep.subr.bf16.mxu0 0
        %4230 = vmatpush1.bf16.msra.mxu0 0
        %4231 = vmatprep.subr.bf16.mxu0 0
        %4232 = vmatpush1.bf16.msra.mxu0 0
        %4233 = vmatprep.subr.bf16.mxu0 0
        %4234 = vmatpush1.bf16.msra.mxu0 0
        %4235 = vmatprep.subr.bf16.mxu0 0
        %4236 = vmatpush1.bf16.msra.mxu0 0
        %4237 = vmatprep.subr.bf16.mxu0 0
        %4238 = vmatpush1.bf16.msra.mxu0 0
        %4239 = vmatprep.subr.bf16.mxu0 0
        %4240 = vmatpush1.bf16.msra.mxu0 0
        %4241 = vmatprep.subr.bf16.mxu0 0
        %4242 = vmatpush1.bf16.msra.mxu0 0
        %4243 = vmatprep.subr.bf16.mxu0 0
        %4244 = vmatpush1.bf16.msra.mxu0 0
        %4245 = vmatprep.subr.bf16.mxu0 0
        %4246 = vmatpush1.bf16.msra.mxu0 0
        %4247 = vmatprep.subr.bf16.mxu0 0
        %4248 = vmatpush1.bf16.msra.mxu0 0
        %4249 = vmatprep.subr.bf16.mxu0 0
        %4250 = vmatpush1.bf16.msra.mxu0 0
        %4251 = vmatprep.mubr.bf16.mxu0 0
        %4252 = vmatmul.mubr.bf16.gmra.mrb[0].mxu0 %v4217
        %v4253 = vpop.f32.mrb[0].mxu0
        %v4254 = vadd.f32 %v4202, %v4253
        %v4255 = vpop.f32.mrb[0].mxu0
        %v4256 = vpop.f32.mrb[0].mxu0
        %v4257 = vadd.f32 %v4202, %v4256
        %v4258 = vpop.f32.mrb[0].mxu0
        %4259 = vdwg.mxu0
        %v4260 = vmul.f32 %v4254, 0.5
        %v4261 = vmul.f32 %v4257, 0.5
        %v4262 = vmul.f32 %v4254, 0.044715
        %v4263 = vmul.f32 %v4257, 0.044715
        %v4264 = vmul.f32 %v4262, %v4254
        %v4265 = vmul.f32 %v4263, %v4257
        %v4266 = vmul.f32 %v4264, %v4254
        %v4267 = vmul.f32 %v4265, %v4257
        %v4268 = vadd.f32 %v4254, %v4266
        %v4269 = vadd.f32 %v4257, %v4267
        %v4270 = vmul.f32 %v4268, 0.7978846
        %v4271 = vmul.f32 %v4269, 0.7978846
        %v4272 = vtanh.pop %v4270
        %v4273 = vtanh.pop %v4271
        %v4274 = vadd.f32 %v4272, 1.0
        %v4275 = vadd.f32 %v4273, 1.0
        %v4276 = vmul.f32 %v4260, %v4274
        %v4277 = vmul.f32 %v4261, %v4275
        %v4278 = vpack.c.bf16 %v4277, %v4276
        %s4279 = scalar_lea.vmem %s55, 32
        %v4280 = vld [vmem:[%s4279] sm:$0xf]
        %v4281 = vld [vmem:[%s4279 + $0x4] sm:$0xf]
        %v4282 = vld [vmem:[%s4279 + $0x8] sm:$0xf]
        %v4283 = vld [vmem:[%s4279 + $0xc] sm:$0xf]
        %v4284 = vld [vmem:[%s4279 + $0x10] sm:$0xf]
        %v4285 = vld [vmem:[%s4279 + $0x14] sm:$0xf]
        %v4286 = vld [vmem:[%s4279 + $0x18] sm:$0xf]
        %v4287 = vld [vmem:[%s4279 + $0x1c] sm:$0xf]
        %s4288 = scalar_lea.vmem %s57, 1
        %v4289 = vld [vmem:[%s4288] sm:$0x1]
        %v4291 = vlaneseq
        %v4292 = vshrl.u32 %v4291, 7
        %v4293 = vsub.s32 0, %v4292
        %v4294 = vrot.slane %v4289, %v4293
        %v4304 = vunpack.c.l.b16 %v4280
        %v4305 = vunpack.c.l.b16 %v4281
        %v4306 = vunpack.c.l.b16 %v4282
        %v4307 = vunpack.c.l.b16 %v4283
        %v4308 = vunpack.c.l.b16 %v4284
        %v4309 = vunpack.c.l.b16 %v4285
        %v4310 = vunpack.c.l.b16 %v4286
        %v4311 = vunpack.c.l.b16 %v4287
        %v4312 = vpack.c.b16 %v4305, %v4304
        %v4313 = vpack.c.b16 %v4307, %v4306
        %v4314 = vpack.c.b16 %v4309, %v4308
        %v4315 = vpack.c.b16 %v4311, %v4310
        %v4321 = vsel %vm1482, %v4278, 0
        %4323 = vmatprep.subr.bf16.mxu0 0
        %4324 = vmatpush1.bf16.msra.mxu0 %v4312
        %4325 = vmatprep.subr.bf16.mxu0 0
        %4326 = vmatpush1.bf16.msra.mxu0 %v4313
        %4327 = vmatprep.subr.bf16.mxu0 0
        %4328 = vmatpush1.bf16.msra.mxu0 %v4314
        %4329 = vmatprep.subr.bf16.mxu0 0
        %4330 = vmatpush1.bf16.msra.mxu0 %v4315
        %4331 = vmatprep.subr.bf16.mxu0 0
        %4332 = vmatpush1.bf16.msra.mxu0 0
        %4333 = vmatprep.subr.bf16.mxu0 0
        %4334 = vmatpush1.bf16.msra.mxu0 0
        %4335 = vmatprep.subr.bf16.mxu0 0
        %4336 = vmatpush1.bf16.msra.mxu0 0
        %4337 = vmatprep.subr.bf16.mxu0 0
        %4338 = vmatpush1.bf16.msra.mxu0 0
        %4339 = vmatprep.subr.bf16.mxu0 0
        %4340 = vmatpush1.bf16.msra.mxu0 0
        %4341 = vmatprep.subr.bf16.mxu0 0
        %4342 = vmatpush1.bf16.msra.mxu0 0
        %4343 = vmatprep.subr.bf16.mxu0 0
        %4344 = vmatpush1.bf16.msra.mxu0 0
        %4345 = vmatprep.subr.bf16.mxu0 0
        %4346 = vmatpush1.bf16.msra.mxu0 0
        %4347 = vmatprep.subr.bf16.mxu0 0
        %4348 = vmatpush1.bf16.msra.mxu0 0
        %4349 = vmatprep.subr.bf16.mxu0 0
        %4350 = vmatpush1.bf16.msra.mxu0 0
        %4351 = vmatprep.subr.bf16.mxu0 0
        %4352 = vmatpush1.bf16.msra.mxu0 0
        %4353 = vmatprep.subr.bf16.mxu0 0
        %4354 = vmatpush1.bf16.msra.mxu0 0
        %4355 = vmatprep.mubr.bf16.mxu0 0
        %4356 = vmatmul.mubr.bf16.gmra.mrb[0].mxu0 %v4321
        %v4357 = vpop.f32.mrb[0].mxu0
        %v4358 = vadd.f32 %v4294, %v4357
        %v4359 = vpop.f32.mrb[0].mxu0
        %v4360 = vpop.f32.mrb[0].mxu0
        %v4361 = vadd.f32 %v4294, %v4360
        %v4362 = vpop.f32.mrb[0].mxu0
        %4363 = vdwg.mxu0
        %v4364 = vadd.f32 %v4142, %v4358
        %v4365 = vadd.f32 %v4143, %v4361
        %v4366 = vld [vmem:[%s59] sm:$0x1]
        %v4367 = vld [vmem:[%s61] sm:$0x1]
        %v4368 = vsel %vm1179, %v4364, 0.0
        %4369 = vadd.xlane.f32.xlu0 %v4368
        %v4370 = vpop.xlane.xlu0 %4369
        %v4371 = vsel %vm1201, %v4365, 0.0
        %4372 = vadd.xlane.f32.xlu0 %v4371
        %v4373 = vpop.xlane.xlu0 %4372
        %v4374 = vmul.f32 %v4370, %v1205
        %v4375 = vmul.f32 %v4373, %v1205
        %v4376 = vsub.f32 %v4364, %v4374
        %v4377 = vsub.f32 %v4365, %v4375
        %v4378 = vmul.f32 %v4376, %v4376
        %v4379 = vmul.f32 %v4377, %v4377
        %v4380 = vsel %vm1179, %v4378, 0.0
        %4381 = vadd.xlane.f32.xlu0 %v4380
        %v4382 = vpop.xlane.xlu0 %4381
        %v4383 = vsel %vm1201, %v4379, 0.0
        %4384 = vadd.xlane.f32.xlu0 %v4383
        %v4385 = vpop.xlane.xlu0 %4384
        %v4386 = vmul.f32 %v4382, %v1205
        %v4387 = vmul.f32 %v4385, %v1205
        %v4388 = vadd.f32 %v4386, 1e-05
        %v4389 = vadd.f32 %v4387, 1e-05
        %v4390 = vrsqrt.pop %v4388
        %v4391 = vrsqrt.pop %v4389
        %v4392 = vmul.f32 %v4376, %v4390
        %v4393 = vmul.f32 %v4377, %v4391
        %v4395 = vlaneseq
        %v4396 = vshrl.u32 %v4395, 7
        %v4397 = vsub.s32 0, %v4396
        %v4398 = vrot.slane %v4366, %v4397
        %v4400 = vmul.f32 %v4392, %v4398
        %v4401 = vmul.f32 %v4393, %v4398
        %v4403 = vlaneseq
        %v4404 = vshrl.u32 %v4403, 7
        %v4405 = vsub.s32 0, %v4404
        %v4406 = vrot.slane %v4367, %v4405
        %v4408 = vadd.f32 %v4400, %v4406
        %v4409 = vadd.f32 %v4401, %v4406
        %v4410 = vsel %vm1179, %v4408, 0.0
        %v4411 = vsel %vm1201, %v4409, 0.0
        %v4412 = vadd.f32 %v4410, %v4411
        %v4413 = vrot.slane %v4412, 4
        %v4414 = vadd.f32 %v4412, %v4413
        %v4415 = vrot.slane %v4414, 2
        %v4416 = vadd.f32 %v4414, %v4415
        %v4417 = vrot.slane %v4416, 1
        %v4418 = vadd.f32 %v4416, %v4417
        %v4419 = vrcp.pop 15.0
        %v4420 = vmul.f32 %v4418, %v4419
        %v4421 = vpack.c.bf16 %v4420, %v4420
        %v4422 = vld [vmem:[%s63] sm:$0xff]
        %v4423 = vld [vmem:[%s63 + $0x8] sm:$0xff]
        %v4424 = vld [vmem:[%s63 + $0x10] sm:$0xff]
        %v4425 = vld [vmem:[%s63 + $0x18] sm:$0xff]
        %v4426 = vld [vmem:[%s65] sm:$0x3]
        %v4431 = vunpack.c.l.b16 %v4422
        %v4432 = vunpack.c.h.b16 %v4422
        %v4433 = vunpack.c.l.b16 %v4423
        %v4434 = vunpack.c.h.b16 %v4423
        %v4435 = vunpack.c.l.b16 %v4424
        %v4436 = vunpack.c.h.b16 %v4424
        %v4437 = vunpack.c.l.b16 %v4425
        %v4438 = vunpack.c.h.b16 %v4425
        %v4439 = vpack.c.b16 %v4433, %v4431
        %v4440 = vpack.c.b16 %v4434, %v4432
        %v4441 = vpack.c.b16 %v4437, %v4435
        %v4442 = vpack.c.b16 %v4438, %v4436
        %v4448 = vlaneseq
        %v4449 = vshrl.u32 %v4448, 7
        %v4450 = vsub.s32 0, %v4449
        %v4451 = vrot.slane %v4426, %v4450
        %v4452 = vlaneseq
        %v4453 = vshrl.u32 %v4452, 7
        %v4454 = vsub.s32 1, %v4453
        %v4455 = vrot.slane %v4426, %v4454
        %v4459 = vsel %vm1179, %v4421, 0
        %4461 = vmatprep.subr.bf16.mxu0 %v4440
        %4462 = vmatpush1.bf16.msra.mxu0 %v4439
        %4463 = vmatprep.subr.bf16.mxu0 %v4442
        %4464 = vmatpush1.bf16.msra.mxu0 %v4441
        %4465 = vmatprep.subr.bf16.mxu0 0
        %4466 = vmatpush1.bf16.msra.mxu0 0
        %4467 = vmatprep.subr.bf16.mxu0 0
        %4468 = vmatpush1.bf16.msra.mxu0 0
        %4469 = vmatprep.subr.bf16.mxu0 0
        %4470 = vmatpush1.bf16.msra.mxu0 0
        %4471 = vmatprep.subr.bf16.mxu0 0
        %4472 = vmatpush1.bf16.msra.mxu0 0
        %4473 = vmatprep.subr.bf16.mxu0 0
        %4474 = vmatpush1.bf16.msra.mxu0 0
        %4475 = vmatprep.subr.bf16.mxu0 0
        %4476 = vmatpush1.bf16.msra.mxu0 0
        %4477 = vmatprep.subr.bf16.mxu0 0
        %4478 = vmatpush1.bf16.msra.mxu0 0
        %4479 = vmatprep.subr.bf16.mxu0 0
        %4480 = vmatpush1.bf16.msra.mxu0 0
        %4481 = vmatprep.subr.bf16.mxu0 0
        %4482 = vmatpush1.bf16.msra.mxu0 0
        %4483 = vmatprep.subr.bf16.mxu0 0
        %4484 = vmatpush1.bf16.msra.mxu0 0
        %4485 = vmatprep.subr.bf16.mxu0 0
        %4486 = vmatpush1.bf16.msra.mxu0 0
        %4487 = vmatprep.subr.bf16.mxu0 0
        %4488 = vmatpush1.bf16.msra.mxu0 0
        %4489 = vmatprep.subr.bf16.mxu0 0
        %4490 = vmatpush1.bf16.msra.mxu0 0
        %4491 = vmatprep.subr.bf16.mxu0 0
        %4492 = vmatpush1.bf16.msra.mxu0 0
        %4493 = vmatprep.mubr.bf16.mxu0 0
        %4494 = vmatmul.mubr.bf16.gmra.mrb[0].mxu0 %v4459
        %v4495 = vpop.f32.mrb[0].mxu0
        %v4496 = vadd.f32 %v4451, %v4495
        %v4497 = vpop.f32.mrb[0].mxu0
        %v4498 = vadd.f32 %v4455, %v4497
        %v4499 = vpop.f32.mrb[0].mxu0
        %v4500 = vpop.f32.mrb[0].mxu0
        %4501 = vdwg.mxu0
        %v4502 = vpack.c.bf16 %v4496, %v4496
        %v4503 = vpack.c.bf16 %v4498, %v4498
        %v4504 = vld [vmem:[%s67] sm:$0xf]
        %v4505 = vld [vmem:[%s67 + $0x4] sm:$0xf]
        %v4506 = vld [vmem:[%s67 + $0x8] sm:$0xf]
        %v4507 = vld [vmem:[%s67 + $0xc] sm:$0xf]
        %v4508 = vld [vmem:[%s67 + $0x10] sm:$0xf]
        %v4509 = vld [vmem:[%s67 + $0x14] sm:$0xf]
        %v4510 = vld [vmem:[%s67 + $0x18] sm:$0xf]
        %v4511 = vld [vmem:[%s67 + $0x1c] sm:$0xf]
        %v4512 = vld [vmem:[%s67 + $0x20] sm:$0xf]
        %v4513 = vld [vmem:[%s67 + $0x24] sm:$0xf]
        %v4514 = vld [vmem:[%s67 + $0x28] sm:$0xf]
        %v4515 = vld [vmem:[%s67 + $0x2c] sm:$0xf]
        %v4516 = vld [vmem:[%s67 + $0x30] sm:$0xf]
        %v4517 = vld [vmem:[%s67 + $0x34] sm:$0xf]
        %v4518 = vld [vmem:[%s67 + $0x38] sm:$0xf]
        %v4519 = vld [vmem:[%s67 + $0x3c] sm:$0xf]
        %v4520 = vld [vmem:[%s67 + $0x40] sm:$0xf]
        %v4521 = vld [vmem:[%s67 + $0x44] sm:$0xf]
        %v4522 = vld [vmem:[%s67 + $0x48] sm:$0xf]
        %v4523 = vld [vmem:[%s67 + $0x4c] sm:$0xf]
        %v4524 = vld [vmem:[%s67 + $0x50] sm:$0xf]
        %v4525 = vld [vmem:[%s67 + $0x54] sm:$0xf]
        %v4526 = vld [vmem:[%s67 + $0x58] sm:$0xf]
        %v4527 = vld [vmem:[%s67 + $0x5c] sm:$0xf]
        %v4528 = vld [vmem:[%s67 + $0x60] sm:$0xf]
        %v4529 = vld [vmem:[%s67 + $0x64] sm:$0xf]
        %v4530 = vld [vmem:[%s67 + $0x68] sm:$0xf]
        %v4531 = vld [vmem:[%s67 + $0x6c] sm:$0xf]
        %v4532 = vld [vmem:[%s67 + $0x70] sm:$0xf]
        %v4533 = vld [vmem:[%s67 + $0x74] sm:$0xf]
        %v4534 = vld [vmem:[%s67 + $0x78] sm:$0xf]
        %v4535 = vld [vmem:[%s67 + $0x7c] sm:$0xf]
        %v4536 = vld [vmem:[%s69] sm:$0x1]
        %v4569 = vunpack.c.l.b16 %v4504
        %v4570 = vunpack.c.l.b16 %v4505
        %v4571 = vunpack.c.l.b16 %v4506
        %v4572 = vunpack.c.l.b16 %v4507
        %v4573 = vunpack.c.l.b16 %v4508
        %v4574 = vunpack.c.l.b16 %v4509
        %v4575 = vunpack.c.l.b16 %v4510
        %v4576 = vunpack.c.l.b16 %v4511
        %v4577 = vunpack.c.l.b16 %v4512
        %v4578 = vunpack.c.l.b16 %v4513
        %v4579 = vunpack.c.l.b16 %v4514
        %v4580 = vunpack.c.l.b16 %v4515
        %v4581 = vunpack.c.l.b16 %v4516
        %v4582 = vunpack.c.l.b16 %v4517
        %v4583 = vunpack.c.l.b16 %v4518
        %v4584 = vunpack.c.l.b16 %v4519
        %v4585 = vunpack.c.l.b16 %v4520
        %v4586 = vunpack.c.l.b16 %v4521
        %v4587 = vunpack.c.l.b16 %v4522
        %v4588 = vunpack.c.l.b16 %v4523
        %v4589 = vunpack.c.l.b16 %v4524
        %v4590 = vunpack.c.l.b16 %v4525
        %v4591 = vunpack.c.l.b16 %v4526
        %v4592 = vunpack.c.l.b16 %v4527
        %v4593 = vunpack.c.l.b16 %v4528
        %v4594 = vunpack.c.l.b16 %v4529
        %v4595 = vunpack.c.l.b16 %v4530
        %v4596 = vunpack.c.l.b16 %v4531
        %v4597 = vunpack.c.l.b16 %v4532
        %v4598 = vunpack.c.l.b16 %v4533
        %v4599 = vunpack.c.l.b16 %v4534
        %v4600 = vunpack.c.l.b16 %v4535
        %v4601 = vpack.c.b16 %v4570, %v4569
        %v4602 = vpack.c.b16 %v4572, %v4571
        %v4603 = vpack.c.b16 %v4574, %v4573
        %v4604 = vpack.c.b16 %v4576, %v4575
        %v4605 = vpack.c.b16 %v4578, %v4577
        %v4606 = vpack.c.b16 %v4580, %v4579
        %v4607 = vpack.c.b16 %v4582, %v4581
        %v4608 = vpack.c.b16 %v4584, %v4583
        %v4609 = vpack.c.b16 %v4586, %v4585
        %v4610 = vpack.c.b16 %v4588, %v4587
        %v4611 = vpack.c.b16 %v4590, %v4589
        %v4612 = vpack.c.b16 %v4592, %v4591
        %v4613 = vpack.c.b16 %v4594, %v4593
        %v4614 = vpack.c.b16 %v4596, %v4595
        %v4615 = vpack.c.b16 %v4598, %v4597
        %v4616 = vpack.c.b16 %v4600, %v4599
        %4633 = vmatprep.subr.bf16.mxu0 0
        %4634 = vmatpush1.bf16.msra.mxu0 %v4601
        %4635 = vmatprep.subr.bf16.mxu0 0
        %4636 = vmatpush1.bf16.msra.mxu0 %v4602
        %4637 = vmatprep.subr.bf16.mxu0 0
        %4638 = vmatpush1.bf16.msra.mxu0 %v4603
        %4639 = vmatprep.subr.bf16.mxu0 0
        %4640 = vmatpush1.bf16.msra.mxu0 %v4604
        %4641 = vmatprep.subr.bf16.mxu0 0
        %4642 = vmatpush1.bf16.msra.mxu0 %v4605
        %4643 = vmatprep.subr.bf16.mxu0 0
        %4644 = vmatpush1.bf16.msra.mxu0 %v4606
        %4645 = vmatprep.subr.bf16.mxu0 0
        %4646 = vmatpush1.bf16.msra.mxu0 %v4607
        %4647 = vmatprep.subr.bf16.mxu0 0
        %4648 = vmatpush1.bf16.msra.mxu0 %v4608
        %4649 = vmatprep.subr.bf16.mxu0 0
        %4650 = vmatpush1.bf16.msra.mxu0 %v4609
        %4651 = vmatprep.subr.bf16.mxu0 0
        %4652 = vmatpush1.bf16.msra.mxu0 %v4610
        %4653 = vmatprep.subr.bf16.mxu0 0
        %4654 = vmatpush1.bf16.msra.mxu0 %v4611
        %4655 = vmatprep.subr.bf16.mxu0 0
        %4656 = vmatpush1.bf16.msra.mxu0 %v4612
        %4657 = vmatprep.subr.bf16.mxu0 0
        %4658 = vmatpush1.bf16.msra.mxu0 %v4613
        %4659 = vmatprep.subr.bf16.mxu0 0
        %4660 = vmatpush1.bf16.msra.mxu0 %v4614
        %4661 = vmatprep.subr.bf16.mxu0 0
        %4662 = vmatpush1.bf16.msra.mxu0 %v4615
        %4663 = vmatprep.subr.bf16.mxu0 0
        %4664 = vmatpush1.bf16.msra.mxu0 %v4616
        %4665 = vmatprep.mubr.bf16.mxu0 %v4503
        %4666 = vmatmul.mubr.bf16.gmra.mrb[0].mxu0 %v4502
        %v4667 = vpop.f32.mrb[0].mxu0
        %v4668 = vadd.f32 %v4536, %v4667
        %v4669 = vpop.f32.mrb[0].mxu0
        %v4670 = vpop.f32.mrb[0].mxu0
        %v4671 = vpop.f32.mrb[0].mxu0
        %4672 = vdwg.mxu0
        %vm4673 = vcmask 40960
        %4674 = vst.msk [vmem:[%s1062] sm:$0x1] %vm4673, %v4668
        %s4675 = sand.u32 %s833, 1
        %s4676 = scalar_lea.sflag [#allocation3], %s4675
        %s4677 = sand.u32 %s833, 1
        %s4678 = scalar_lea.vmem [#allocation2], %s4677
        // Predicated region
        $region161: #{wav2vec_cls_forward.1} parent=159 // pred_check
          %p4679 = pneg %p843
        $region162: #{wav2vec_cls_forward.1} parent=159 // pred_check_branch
          %4681 = sbr.rel (%p4679) target = $region164
        $region163: #{wav2vec_cls_forward.1} parent=159 // pred_region
          %s4683 = ssub.s32 16, 16
          %4684 = vsyncadd %s4676, %s4683
          %s4685 = smul.addr %s85, 16
          %s4686 = scalar_lea.hbm %s71, %s4685
          %s4688 = sshll.u32 %s4678, 4
          %s4689 = int_to_ptr.vmem [resolvable:$true] %s4688
          %4691 = dma.vmem_to_hbm [thread:$0]  %s4689, 16, %s4686, %s4676
        $region164: #{wav2vec_cls_forward.1} parent=159 // pred_fallthru
          _
      $region160: #{wav2vec_cls_forward.1} parent=5 // pred_fallthru
        _
      %p4692 = scmp.le.s32.totalorder 2, %s80
      // Predicated region
      $region165: #{wav2vec_cls_forward.1} parent=5 // pred_check
        %p4693 = pneg %p4692
      $region166: #{wav2vec_cls_forward.1} parent=5 // pred_check_branch
        %4695 = sbr.rel (%p4693) target = $region168
      $region167: #{wav2vec_cls_forward.1} parent=5 // pred_region
        %s4696 = ssub.s32 %s80, 2
        // Predicated region
        $region169: #{wav2vec_cls_forward.1} parent=167 // pred_check
          %p4697 = pneg %p849
        $region170: #{wav2vec_cls_forward.1} parent=167 // pred_check_branch
          %4699 = sbr.rel (%p4697) target = $region172
        $region171: #{wav2vec_cls_forward.1} parent=167 // pred_region
          %s4700 = sand.u32 %s834, 1
          %s4701 = scalar_lea.sflag [#allocation3], %s4700
          %s4702 = sand.u32 %s834, 1
          %s4703 = scalar_lea.vmem [#allocation2], %s4702
          %4704 = dma.done %s4701, 16
        $region172: #{wav2vec_cls_forward.1} parent=167 // pred_fallthru
          _
      $region168: #{wav2vec_cls_forward.1} parent=5 // pred_fallthru
        _
    $region6: #{wav2vec_cls_forward.1} parent=1 // loop_footer
      %s84 = sadd.s32 1, %s80
    $region7: #{wav2vec_cls_forward.1} parent=1 // loop_footer_branch
      %79 = sbr.rel target = $region3
    $region8: #{wav2vec_cls_forward.1} parent=1 // loop_exit
      _
    %4705 = vsyncpa [#allocation3], 1
    %s4706 = scalar_lea.sflag [#allocation3], 1
    %4707 = vsyncpa %s4706, 1

</llo_original>
